<compile_context>
chip_gen: v7x
topology: tpu7x:2x2x1
jax: 0.10.0
libtpu: 0.0.40
codegen_flags: <defaults>
</compile_context>

<pallas_src>
import functools

import jax
import jax.numpy as jnp
from jax import lax
from jax.experimental import pallas as pl
from jax.experimental.pallas import tpu as pltpu

KSIZE = 7
PAD = 3          # padding for kernel_size=7
N_ACC = 4        # independent partial accumulators for the 98-tap conv


def _spatial_attention_kernel(x_ref, w_ref, o_ref, pad_ref, attf_ref, *, H, W):
    # x_ref   : (Nb, C, H*W)          input tile, native dtype, lane-dense
    # w_ref   : (2*7*7,)              f32 conv weights in SMEM
    # o_ref   : (Nb, C, H*W)          output tile
    # pad_ref : (2, Nb, H+2P, LANE)   f32 zero-padded avg/max maps (scratch)
    # attf_ref: (Nb, H*W)             f32 flattened attention map (scratch)
    Nb, C, HW = x_ref.shape
    W2 = W + 2 * PAD

    # ---- channel mean / max: one sublane-axis reduce over the whole block ----
    xf = x_ref[...].astype(jnp.float32)            # no-op copy for f32 inputs
    avg = jnp.sum(xf, axis=1) * (1.0 / C)          # (Nb, HW)
    smax = jnp.max(xf, axis=1)                     # (Nb, HW)

    # ---- zero only the PAD border the 7x7 conv reads ----
    # (re-zeroed every step: cheap, and safe under "parallel" megacore
    #  scheduling where per-core scratch may start uninitialized)
    zcol = jnp.zeros((Nb, H + 2 * PAD, PAD), jnp.float32)
    zrow = jnp.zeros((Nb, W2), jnp.float32)
    for c in range(2):
        pad_ref[c, :, :, 0:PAD] = zcol             # left pad columns (all rows)
        pad_ref[c, :, :, PAD + W:W2] = zcol        # right pad columns (all rows)
        for r in range(PAD):
            pad_ref[c, :, r, 0:W2] = zrow          # top pad rows
            pad_ref[c, :, PAD + H + r, 0:W2] = zrow  # bottom pad rows

    # ---- scatter the two reduced maps row-by-row into the padded scratch ----
    for h in range(H):
        pad_ref[0, :, PAD + h, PAD:PAD + W] = avg[:, h * W:(h + 1) * W]
        pad_ref[1, :, PAD + h, PAD:PAD + W] = smax[:, h * W:(h + 1) * W]

    # ---- 7x7 "same" conv, 2 -> 1 channels, no bias (kept on VPU/XLU) ----
    # Lane (dx) shift hoisted out of the inner loop (14 shifted views, not 98);
    # the 98 taps are spread over N_ACC independent accumulators, each
    # initialized from its first tap (no zero fill).
    accs = [None] * N_ACC
    t = 0
    for c in range(2):
        for dx in range(KSIZE):
            shifted = pad_ref[c, :, :, dx:dx + W]          # (Nb, H+2P, W)
            for dy in range(KSIZE):
                wgt = w_ref[c * KSIZE * KSIZE + dy * KSIZE + dx]
                tap = wgt * shifted[:, dy:dy + H, :]       # (Nb, H, W)
                a = t % N_ACC
                accs[a] = tap if accs[a] is None else accs[a] + tap
                t += 1
    att2d = jax.nn.sigmoid((accs[0] + accs[1]) + (accs[2] + accs[3]))  # (Nb,H,W)

    # ---- back to the flat, lane-dense layout (row-by-row via scratch) ----
    for h in range(H):
        attf_ref[:, h * W:(h + 1) * W] = att2d[:, h, :]

    # ---- broadcast multiply over channels (broadcast stays an operand; the
    #      multiply/store run in the native dtype) ----
    att = attf_ref[...].astype(o_ref.dtype)                # (Nb, HW)
    o_ref[...] = x_ref[...] * att[:, None, :]


def _round_up(x, m):
    return ((x + m - 1) // m) * m


def _block_vmem_bytes(nb, C, H, W, itemsize):
    """Total per-step VMEM footprint: double-buffered in+out blocks (with
    sublane/lane padding) + pad/attf scratch (lanes pad to 128)."""
    HW = H * W
    sub = max(8 * 4 // itemsize, 8)             # sublane pack: 8 f32 / 16 bf16 / 32 i8
    hw_pad = _round_up(HW, 128)
    c_pad = _round_up(C, sub)
    block = nb * c_pad * hw_pad * itemsize
    io = 2 * (2 * block)                        # double-buffered input + output
    lane = _round_up(W + 2 * PAD, 128)
    rows = _round_up(H + 2 * PAD, 8)
    pad_scratch = 2 * nb * rows * lane * 4
    attf_scratch = _round_up(nb, 8) * hw_pad * 4
    return io + pad_scratch + attf_scratch


def _chip_config():
    """(vmem_budget_bytes, vmem_limit_bytes, num_tensorcores) per generation."""
    vmem_bytes = 64 * 1024 * 1024               # conservative default (v7x-like)
    try:
        vmem_bytes = int(pltpu.get_tpu_info().vmem_capacity_bytes)
    except Exception:
        pass
    if vmem_bytes <= 64 * 1024 * 1024:
        # v7x: 64 MiB physical VMEM per TC, 2 TensorCores -> stay well under.
        return 40 * 1024 * 1024, 48 * 1024 * 1024, 2
    # v5e / v6e: 128 MiB physical VMEM, 1 TensorCore -> bigger blocks, fewer steps.
    return 64 * 1024 * 1024, 96 * 1024 * 1024, 1


def _pick_batch_block(N, C, H, W, itemsize, budget, num_tc):
    """Largest nb dividing N whose full footprint fits the budget; on 2-TC
    chips keep >= 2 balanced grid steps so both TensorCores get work."""
    per1 = max(_block_vmem_bytes(1, C, H, W, itemsize), 1)
    nb = max(1, min(N, budget // per1))
    while nb > 1 and (N % nb or _block_vmem_bytes(nb, C, H, W, itemsize) > budget):
        nb -= 1
    if num_tc >= 2 and N >= 2 and N // nb < 2:
        nb = max(1, N // 2)
        while N % nb:
            nb -= 1
    return nb


def spatial_attention(x, conv_weight):
    """x: (N, C, H, W); conv_weight: (1, 2, 7, 7). Returns (N, C, H, W)."""
    N, C, H, W = x.shape
    HW = H * W
    x_flat = x.reshape(N, C, HW)                           # lane-dense layout
    w_flat = conv_weight.reshape(-1).astype(jnp.float32)   # (98,) -> SMEM

    budget, vmem_limit, num_tc = _chip_config()
    nb = _pick_batch_block(N, C, H, W, x.dtype.itemsize, budget, num_tc)
    lane = _round_up(W + 2 * PAD, 128)                     # lane-aligned scratch

    kernel = functools.partial(_spatial_attention_kernel, H=H, W=W)

    out_flat = pl.pallas_call(
        kernel,
        out_shape=jax.ShapeDtypeStruct((N, C, HW), x.dtype),
        grid_spec=pltpu.PrefetchScalarGridSpec(
            num_scalar_prefetch=0,
            grid=(N // nb,),
            in_specs=[
                pl.BlockSpec((nb, C, HW), lambda n: (n, 0, 0)),
                pl.BlockSpec(memory_space=pltpu.MemorySpace.SMEM),
            ],
            out_specs=pl.BlockSpec((nb, C, HW), lambda n: (n, 0, 0)),
            scratch_shapes=[
                pltpu.VMEM((2, nb, H + 2 * PAD, lane), jnp.float32),
                pltpu.VMEM((nb, HW), jnp.float32),
            ],
        ),
        compiler_params=pltpu.CompilerParams(
            dimension_semantics=("parallel",),
            vmem_limit_bytes=vmem_limit,
        ),
    )(x_flat, w_flat)

    return out_flat.reshape(N, C, H, W)


def reference_forward(x, conv_weight):
    """Pure-JAX reference matching the PyTorch module semantics."""
    avg = jnp.mean(x, axis=1, keepdims=True)
    mx = jnp.max(x, axis=1, keepdims=True)
    cat = jnp.concatenate([avg, mx], axis=1)
    conv = lax.conv_general_dilated(
        cat, conv_weight, window_strides=(1, 1),
        padding=((PAD, PAD), (PAD, PAD)),
        dimension_numbers=("NCHW", "OIHW", "NCHW"))
    att = jax.nn.sigmoid(conv)
    return x * att


if __name__ == "__main__":
    key = jax.random.PRNGKey(0)
    k_x, k_w = jax.random.split(key)

    # Small shapes consistent with the module: batch=2, channels=4, 16x16.
    N, C, H, W = 2, 4, 16, 16
    x = jax.random.normal(k_x, (N, C, H, W), dtype=jnp.float32)

    # Deterministic conv weight init (Kaiming-uniform-like bound, no bias).
    fan_in = 2 * KSIZE * KSIZE
    bound = 1.0 / (fan_in ** 0.5)
    conv_weight = jax.random.uniform(
        k_w, (1, 2, KSIZE, KSIZE), minval=-bound, maxval=bound,
        dtype=jnp.float32)

    out = jax.block_until_ready(spatial_attention(x, conv_weight))

    ref = reference_forward(x, conv_weight)
    assert out.shape == ref.shape == (N, C, H, W)
    assert jnp.allclose(out, ref, rtol=1e-5, atol=1e-5), (
        f"max abs diff = {jnp.max(jnp.abs(out - ref))}")

    print("KERNEL_OK")
</pallas_src>

<mosaic_0001>
module attributes {stable_mosaic.version = 11 : i64} {
  func.func @_spatial_attention_kernel(%arg0: i32, %arg1: memref<1x4x256xf32, #tpu.memory_space<vmem>>, %arg2: memref<98xf32, #tpu.memory_space<smem>>, %arg3: memref<1x4x256xf32, #tpu.memory_space<vmem>>, %arg4: memref<2x1x22x128xf32, #tpu.memory_space<vmem>>, %arg5: memref<1x256xf32, #tpu.memory_space<vmem>>) attributes {dimension_semantics = [#tpu.dimension_semantics<parallel>], iteration_bounds = array<i64: 2>, scalar_prefetch = 0 : i64, scratch_operands = 2 : i64, tpu.core_type = #tpu.core_type<tc>, window_params = [{transform_indices = @transform_0, window_bounds = array<i64: 1, 4, 256>}, {transform_indices = @transform_1, window_bounds = array<i64: 98>}, {transform_indices = @transform_2, window_bounds = array<i64: 1, 4, 256>}]} {
    %c0 = arith.constant 0 : index
    %c0_0 = arith.constant 0 : index
    %c0_1 = arith.constant 0 : index
    %0 = vector.load %arg1[%c0, %c0_0, %c0_1] : memref<1x4x256xf32, #tpu.memory_space<vmem>>, vector<1x4x256xf32>
    %cst = arith.constant dense<0.000000e+00> : vector<1x256xf32>
    %1 = vector.multi_reduction <add>, %0, %cst [1] : vector<1x4x256xf32> to vector<1x256xf32>
    %cst_2 = arith.constant 2.500000e-01 : f32
    %2 = vector.broadcast %cst_2 : f32 to vector<1x256xf32>
    %3 = arith.mulf %1, %2 : vector<1x256xf32>
    %cst_3 = arith.constant dense<0xFF800000> : vector<1x256xf32>
    %4 = vector.multi_reduction <maximumf>, %0, %cst_3 [1] : vector<1x4x256xf32> to vector<1x256xf32>
    %cst_4 = arith.constant 0.000000e+00 : f32
    %5 = vector.broadcast %cst_4 : f32 to vector<1x22x3xf32>
    %cst_5 = arith.constant 0.000000e+00 : f32
    %6 = vector.broadcast %cst_5 : f32 to vector<1x22xf32>
    %c0_6 = arith.constant 0 : index
    %c0_7 = arith.constant 0 : index
    %c0_8 = arith.constant 0 : index
    %c0_9 = arith.constant 0 : index
    %7 = vector.load %arg4[%c0_6, %c0_7, %c0_8, %c0_9] : memref<2x1x22x128xf32, #tpu.memory_space<vmem>>, vector<1x1x22x3xf32>
    %8 = vector.shape_cast %7 : vector<1x1x22x3xf32> to vector<1x22x3xf32>
    %9 = vector.shape_cast %5 : vector<1x22x3xf32> to vector<1x1x22x3xf32>
    tpu.vector_store %arg4[%c0_6, %c0_7, %c0_8, %c0_9], %9 {strides = array<i32>} : memref<2x1x22x128xf32, #tpu.memory_space<vmem>>, vector<1x1x22x3xf32>,
    %c0_10 = arith.constant 0 : index
    %c0_11 = arith.constant 0 : index
    %c0_12 = arith.constant 0 : index
    %c19 = arith.constant 19 : index
    %10 = vector.load %arg4[%c0_10, %c0_11, %c0_12, %c19] : memref<2x1x22x128xf32, #tpu.memory_space<vmem>>, vector<1x1x22x3xf32>
    %11 = vector.shape_cast %10 : vector<1x1x22x3xf32> to vector<1x22x3xf32>
    %12 = vector.shape_cast %5 : vector<1x22x3xf32> to vector<1x1x22x3xf32>
    tpu.vector_store %arg4[%c0_10, %c0_11, %c0_12, %c19], %12 {strides = array<i32>} : memref<2x1x22x128xf32, #tpu.memory_space<vmem>>, vector<1x1x22x3xf32>,
    %c0_13 = arith.constant 0 : index
    %c0_14 = arith.constant 0 : index
    %c0_15 = arith.constant 0 : index
    %c0_16 = arith.constant 0 : index
    %13 = vector.load %arg4[%c0_13, %c0_14, %c0_15, %c0_16] : memref<2x1x22x128xf32, #tpu.memory_space<vmem>>, vector<1x1x1x22xf32>
    %14 = vector.shape_cast %13 : vector<1x1x1x22xf32> to vector<1x22xf32>
    %15 = vector.shape_cast %6 : vector<1x22xf32> to vector<1x1x1x22xf32>
    tpu.vector_store %arg4[%c0_13, %c0_14, %c0_15, %c0_16], %15 {strides = array<i32>} : memref<2x1x22x128xf32, #tpu.memory_space<vmem>>, vector<1x1x1x22xf32>,
    %c0_17 = arith.constant 0 : index
    %c0_18 = arith.constant 0 : index
    %c19_19 = arith.constant 19 : index
    %c0_20 = arith.constant 0 : index
    %16 = vector.load %arg4[%c0_17, %c0_18, %c19_19, %c0_20] : memref<2x1x22x128xf32, #tpu.memory_space<vmem>>, vector<1x1x1x22xf32>
    %17 = vector.shape_cast %16 : vector<1x1x1x22xf32> to vector<1x22xf32>
    %18 = vector.shape_cast %6 : vector<1x22xf32> to vector<1x1x1x22xf32>
    tpu.vector_store %arg4[%c0_17, %c0_18, %c19_19, %c0_20], %18 {strides = array<i32>} : memref<2x1x22x128xf32, #tpu.memory_space<vmem>>, vector<1x1x1x22xf32>,
    %c0_21 = arith.constant 0 : index
    %c0_22 = arith.constant 0 : index
    %c1 = arith.constant 1 : index
    %c0_23 = arith.constant 0 : index
    %19 = vector.load %arg4[%c0_21, %c0_22, %c1, %c0_23] : memref<2x1x22x128xf32, #tpu.memory_space<vmem>>, vector<1x1x1x22xf32>
    %20 = vector.shape_cast %19 : vector<1x1x1x22xf32> to vector<1x22xf32>
    %21 = vector.shape_cast %6 : vector<1x22xf32> to vector<1x1x1x22xf32>
    tpu.vector_store %arg4[%c0_21, %c0_22, %c1, %c0_23], %21 {strides = array<i32>} : memref<2x1x22x128xf32, #tpu.memory_space<vmem>>, vector<1x1x1x22xf32>,
    %c0_24 = arith.constant 0 : index
    %c0_25 = arith.constant 0 : index
    %c20 = arith.constant 20 : index
    %c0_26 = arith.constant 0 : index
    %22 = vector.load %arg4[%c0_24, %c0_25, %c20, %c0_26] : memref<2x1x22x128xf32, #tpu.memory_space<vmem>>, vector<1x1x1x22xf32>
    %23 = vector.shape_cast %22 : vector<1x1x1x22xf32> to vector<1x22xf32>
    %24 = vector.shape_cast %6 : vector<1x22xf32> to vector<1x1x1x22xf32>
    tpu.vector_store %arg4[%c0_24, %c0_25, %c20, %c0_26], %24 {strides = array<i32>} : memref<2x1x22x128xf32, #tpu.memory_space<vmem>>, vector<1x1x1x22xf32>,
    %c0_27 = arith.constant 0 : index
    %c0_28 = arith.constant 0 : index
    %c2 = arith.constant 2 : index
    %c0_29 = arith.constant 0 : index
    %25 = vector.load %arg4[%c0_27, %c0_28, %c2, %c0_29] : memref<2x1x22x128xf32, #tpu.memory_space<vmem>>, vector<1x1x1x22xf32>
    %26 = vector.shape_cast %25 : vector<1x1x1x22xf32> to vector<1x22xf32>
    %27 = vector.shape_cast %6 : vector<1x22xf32> to vector<1x1x1x22xf32>
    tpu.vector_store %arg4[%c0_27, %c0_28, %c2, %c0_29], %27 {strides = array<i32>} : memref<2x1x22x128xf32, #tpu.memory_space<vmem>>, vector<1x1x1x22xf32>,
    %c0_30 = arith.constant 0 : index
    %c0_31 = arith.constant 0 : index
    %c21 = arith.constant 21 : index
    %c0_32 = arith.constant 0 : index
    %28 = vector.load %arg4[%c0_30, %c0_31, %c21, %c0_32] : memref<2x1x22x128xf32, #tpu.memory_space<vmem>>, vector<1x1x1x22xf32>
    %29 = vector.shape_cast %28 : vector<1x1x1x22xf32> to vector<1x22xf32>
    %30 = vector.shape_cast %6 : vector<1x22xf32> to vector<1x1x1x22xf32>
    tpu.vector_store %arg4[%c0_30, %c0_31, %c21, %c0_32], %30 {strides = array<i32>} : memref<2x1x22x128xf32, #tpu.memory_space<vmem>>, vector<1x1x1x22xf32>,
    %c1_33 = arith.constant 1 : index
    %c0_34 = arith.constant 0 : index
    %c0_35 = arith.constant 0 : index
    %c0_36 = arith.constant 0 : index
    %31 = vector.load %arg4[%c1_33, %c0_34, %c0_35, %c0_36] : memref<2x1x22x128xf32, #tpu.memory_space<vmem>>, vector<1x1x22x3xf32>
    %32 = vector.shape_cast %31 : vector<1x1x22x3xf32> to vector<1x22x3xf32>
    %33 = vector.shape_cast %5 : vector<1x22x3xf32> to vector<1x1x22x3xf32>
    tpu.vector_store %arg4[%c1_33, %c0_34, %c0_35, %c0_36], %33 {strides = array<i32>} : memref<2x1x22x128xf32, #tpu.memory_space<vmem>>, vector<1x1x22x3xf32>,
    %c1_37 = arith.constant 1 : index
    %c0_38 = arith.constant 0 : index
    %c0_39 = arith.constant 0 : index
    %c19_40 = arith.constant 19 : index
    %34 = vector.load %arg4[%c1_37, %c0_38, %c0_39, %c19_40] : memref<2x1x22x128xf32, #tpu.memory_space<vmem>>, vector<1x1x22x3xf32>
    %35 = vector.shape_cast %34 : vector<1x1x22x3xf32> to vector<1x22x3xf32>
    %36 = vector.shape_cast %5 : vector<1x22x3xf32> to vector<1x1x22x3xf32>
    tpu.vector_store %arg4[%c1_37, %c0_38, %c0_39, %c19_40], %36 {strides = array<i32>} : memref<2x1x22x128xf32, #tpu.memory_space<vmem>>, vector<1x1x22x3xf32>,
    %c1_41 = arith.constant 1 : index
    %c0_42 = arith.constant 0 : index
    %c0_43 = arith.constant 0 : index
    %c0_44 = arith.constant 0 : index
    %37 = vector.load %arg4[%c1_41, %c0_42, %c0_43, %c0_44] : memref<2x1x22x128xf32, #tpu.memory_space<vmem>>, vector<1x1x1x22xf32>
    %38 = vector.shape_cast %37 : vector<1x1x1x22xf32> to vector<1x22xf32>
    %39 = vector.shape_cast %6 : vector<1x22xf32> to vector<1x1x1x22xf32>
    tpu.vector_store %arg4[%c1_41, %c0_42, %c0_43, %c0_44], %39 {strides = array<i32>} : memref<2x1x22x128xf32, #tpu.memory_space<vmem>>, vector<1x1x1x22xf32>,
    %c1_45 = arith.constant 1 : index
    %c0_46 = arith.constant 0 : index
    %c19_47 = arith.constant 19 : index
    %c0_48 = arith.constant 0 : index
    %40 = vector.load %arg4[%c1_45, %c0_46, %c19_47, %c0_48] : memref<2x1x22x128xf32, #tpu.memory_space<vmem>>, vector<1x1x1x22xf32>
    %41 = vector.shape_cast %40 : vector<1x1x1x22xf32> to vector<1x22xf32>
    %42 = vector.shape_cast %6 : vector<1x22xf32> to vector<1x1x1x22xf32>
    tpu.vector_store %arg4[%c1_45, %c0_46, %c19_47, %c0_48], %42 {strides = array<i32>} : memref<2x1x22x128xf32, #tpu.memory_space<vmem>>, vector<1x1x1x22xf32>,
    %c1_49 = arith.constant 1 : index
    %c0_50 = arith.constant 0 : index
    %c1_51 = arith.constant 1 : index
    %c0_52 = arith.constant 0 : index
    %43 = vector.load %arg4[%c1_49, %c0_50, %c1_51, %c0_52] : memref<2x1x22x128xf32, #tpu.memory_space<vmem>>, vector<1x1x1x22xf32>
    %44 = vector.shape_cast %43 : vector<1x1x1x22xf32> to vector<1x22xf32>
    %45 = vector.shape_cast %6 : vector<1x22xf32> to vector<1x1x1x22xf32>
    tpu.vector_store %arg4[%c1_49, %c0_50, %c1_51, %c0_52], %45 {strides = array<i32>} : memref<2x1x22x128xf32, #tpu.memory_space<vmem>>, vector<1x1x1x22xf32>,
    %c1_53 = arith.constant 1 : index
    %c0_54 = arith.constant 0 : index
    %c20_55 = arith.constant 20 : index
    %c0_56 = arith.constant 0 : index
    %46 = vector.load %arg4[%c1_53, %c0_54, %c20_55, %c0_56] : memref<2x1x22x128xf32, #tpu.memory_space<vmem>>, vector<1x1x1x22xf32>
    %47 = vector.shape_cast %46 : vector<1x1x1x22xf32> to vector<1x22xf32>
    %48 = vector.shape_cast %6 : vector<1x22xf32> to vector<1x1x1x22xf32>
    tpu.vector_store %arg4[%c1_53, %c0_54, %c20_55, %c0_56], %48 {strides = array<i32>} : memref<2x1x22x128xf32, #tpu.memory_space<vmem>>, vector<1x1x1x22xf32>,
    %c1_57 = arith.constant 1 : index
    %c0_58 = arith.constant 0 : index
    %c2_59 = arith.constant 2 : index
    %c0_60 = arith.constant 0 : index
    %49 = vector.load %arg4[%c1_57, %c0_58, %c2_59, %c0_60] : memref<2x1x22x128xf32, #tpu.memory_space<vmem>>, vector<1x1x1x22xf32>
    %50 = vector.shape_cast %49 : vector<1x1x1x22xf32> to vector<1x22xf32>
    %51 = vector.shape_cast %6 : vector<1x22xf32> to vector<1x1x1x22xf32>
    tpu.vector_store %arg4[%c1_57, %c0_58, %c2_59, %c0_60], %51 {strides = array<i32>} : memref<2x1x22x128xf32, #tpu.memory_space<vmem>>, vector<1x1x1x22xf32>,
    %c1_61 = arith.constant 1 : index
    %c0_62 = arith.constant 0 : index
    %c21_63 = arith.constant 21 : index
    %c0_64 = arith.constant 0 : index
    %52 = vector.load %arg4[%c1_61, %c0_62, %c21_63, %c0_64] : memref<2x1x22x128xf32, #tpu.memory_space<vmem>>, vector<1x1x1x22xf32>
    %53 = vector.shape_cast %52 : vector<1x1x1x22xf32> to vector<1x22xf32>
    %54 = vector.shape_cast %6 : vector<1x22xf32> to vector<1x1x1x22xf32>
    tpu.vector_store %arg4[%c1_61, %c0_62, %c21_63, %c0_64], %54 {strides = array<i32>} : memref<2x1x22x128xf32, #tpu.memory_space<vmem>>, vector<1x1x1x22xf32>,
    %55 = vector.extract_strided_slice %3 {offsets = [0, 0], sizes = [1, 16], strides = [1, 1]} : vector<1x256xf32> to vector<1x16xf32>
    %c0_65 = arith.constant 0 : index
    %c0_66 = arith.constant 0 : index
    %c3 = arith.constant 3 : index
    %c3_67 = arith.constant 3 : index
    %56 = vector.load %arg4[%c0_65, %c0_66, %c3, %c3_67] : memref<2x1x22x128xf32, #tpu.memory_space<vmem>>, vector<1x1x1x16xf32>
    %57 = vector.shape_cast %56 : vector<1x1x1x16xf32> to vector<1x16xf32>
    %58 = vector.shape_cast %55 : vector<1x16xf32> to vector<1x1x1x16xf32>
    tpu.vector_store %arg4[%c0_65, %c0_66, %c3, %c3_67], %58 {strides = array<i32>} : memref<2x1x22x128xf32, #tpu.memory_space<vmem>>, vector<1x1x1x16xf32>,
    %59 = vector.extract_strided_slice %4 {offsets = [0, 0], sizes = [1, 16], strides = [1, 1]} : vector<1x256xf32> to vector<1x16xf32>
    %c1_68 = arith.constant 1 : index
    %c0_69 = arith.constant 0 : index
    %c3_70 = arith.constant 3 : index
    %c3_71 = arith.constant 3 : index
    %60 = vector.load %arg4[%c1_68, %c0_69, %c3_70, %c3_71] : memref<2x1x22x128xf32, #tpu.memory_space<vmem>>, vector<1x1x1x16xf32>
    %61 = vector.shape_cast %60 : vector<1x1x1x16xf32> to vector<1x16xf32>
    %62 = vector.shape_cast %59 : vector<1x16xf32> to vector<1x1x1x16xf32>
    tpu.vector_store %arg4[%c1_68, %c0_69, %c3_70, %c3_71], %62 {strides = array<i32>} : memref<2x1x22x128xf32, #tpu.memory_space<vmem>>, vector<1x1x1x16xf32>,
    %63 = vector.extract_strided_slice %3 {offsets = [0, 16], sizes = [1, 16], strides = [1, 1]} : vector<1x256xf32> to vector<1x16xf32>
    %c0_72 = arith.constant 0 : index
    %c0_73 = arith.constant 0 : index
    %c4 = arith.constant 4 : index
    %c3_74 = arith.constant 3 : index
    %64 = vector.load %arg4[%c0_72, %c0_73, %c4, %c3_74] : memref<2x1x22x128xf32, #tpu.memory_space<vmem>>, vector<1x1x1x16xf32>
    %65 = vector.shape_cast %64 : vector<1x1x1x16xf32> to vector<1x16xf32>
    %66 = vector.shape_cast %63 : vector<1x16xf32> to vector<1x1x1x16xf32>
    tpu.vector_store %arg4[%c0_72, %c0_73, %c4, %c3_74], %66 {strides = array<i32>} : memref<2x1x22x128xf32, #tpu.memory_space<vmem>>, vector<1x1x1x16xf32>,
    %67 = vector.extract_strided_slice %4 {offsets = [0, 16], sizes = [1, 16], strides = [1, 1]} : vector<1x256xf32> to vector<1x16xf32>
    %c1_75 = arith.constant 1 : index
    %c0_76 = arith.constant 0 : index
    %c4_77 = arith.constant 4 : index
    %c3_78 = arith.constant 3 : index
    %68 = vector.load %arg4[%c1_75, %c0_76, %c4_77, %c3_78] : memref<2x1x22x128xf32, #tpu.memory_space<vmem>>, vector<1x1x1x16xf32>
    %69 = vector.shape_cast %68 : vector<1x1x1x16xf32> to vector<1x16xf32>
    %70 = vector.shape_cast %67 : vector<1x16xf32> to vector<1x1x1x16xf32>
    tpu.vector_store %arg4[%c1_75, %c0_76, %c4_77, %c3_78], %70 {strides = array<i32>} : memref<2x1x22x128xf32, #tpu.memory_space<vmem>>, vector<1x1x1x16xf32>,
    %71 = vector.extract_strided_slice %3 {offsets = [0, 32], sizes = [1, 16], strides = [1, 1]} : vector<1x256xf32> to vector<1x16xf32>
    %c0_79 = arith.constant 0 : index
    %c0_80 = arith.constant 0 : index
    %c5 = arith.constant 5 : index
    %c3_81 = arith.constant 3 : index
    %72 = vector.load %arg4[%c0_79, %c0_80, %c5, %c3_81] : memref<2x1x22x128xf32, #tpu.memory_space<vmem>>, vector<1x1x1x16xf32>
    %73 = vector.shape_cast %72 : vector<1x1x1x16xf32> to vector<1x16xf32>
    %74 = vector.shape_cast %71 : vector<1x16xf32> to vector<1x1x1x16xf32>
    tpu.vector_store %arg4[%c0_79, %c0_80, %c5, %c3_81], %74 {strides = array<i32>} : memref<2x1x22x128xf32, #tpu.memory_space<vmem>>, vector<1x1x1x16xf32>,
    %75 = vector.extract_strided_slice %4 {offsets = [0, 32], sizes = [1, 16], strides = [1, 1]} : vector<1x256xf32> to vector<1x16xf32>
    %c1_82 = arith.constant 1 : index
    %c0_83 = arith.constant 0 : index
    %c5_84 = arith.constant 5 : index
    %c3_85 = arith.constant 3 : index
    %76 = vector.load %arg4[%c1_82, %c0_83, %c5_84, %c3_85] : memref<2x1x22x128xf32, #tpu.memory_space<vmem>>, vector<1x1x1x16xf32>
    %77 = vector.shape_cast %76 : vector<1x1x1x16xf32> to vector<1x16xf32>
    %78 = vector.shape_cast %75 : vector<1x16xf32> to vector<1x1x1x16xf32>
    tpu.vector_store %arg4[%c1_82, %c0_83, %c5_84, %c3_85], %78 {strides = array<i32>} : memref<2x1x22x128xf32, #tpu.memory_space<vmem>>, vector<1x1x1x16xf32>,
    %79 = vector.extract_strided_slice %3 {offsets = [0, 48], sizes = [1, 16], strides = [1, 1]} : vector<1x256xf32> to vector<1x16xf32>
    %c0_86 = arith.constant 0 : index
    %c0_87 = arith.constant 0 : index
    %c6 = arith.constant 6 : index
    %c3_88 = arith.constant 3 : index
    %80 = vector.load %arg4[%c0_86, %c0_87, %c6, %c3_88] : memref<2x1x22x128xf32, #tpu.memory_space<vmem>>, vector<1x1x1x16xf32>
    %81 = vector.shape_cast %80 : vector<1x1x1x16xf32> to vector<1x16xf32>
    %82 = vector.shape_cast %79 : vector<1x16xf32> to vector<1x1x1x16xf32>
    tpu.vector_store %arg4[%c0_86, %c0_87, %c6, %c3_88], %82 {strides = array<i32>} : memref<2x1x22x128xf32, #tpu.memory_space<vmem>>, vector<1x1x1x16xf32>,
    %83 = vector.extract_strided_slice %4 {offsets = [0, 48], sizes = [1, 16], strides = [1, 1]} : vector<1x256xf32> to vector<1x16xf32>
    %c1_89 = arith.constant 1 : index
    %c0_90 = arith.constant 0 : index
    %c6_91 = arith.constant 6 : index
    %c3_92 = arith.constant 3 : index
    %84 = vector.load %arg4[%c1_89, %c0_90, %c6_91, %c3_92] : memref<2x1x22x128xf32, #tpu.memory_space<vmem>>, vector<1x1x1x16xf32>
    %85 = vector.shape_cast %84 : vector<1x1x1x16xf32> to vector<1x16xf32>
    %86 = vector.shape_cast %83 : vector<1x16xf32> to vector<1x1x1x16xf32>
    tpu.vector_store %arg4[%c1_89, %c0_90, %c6_91, %c3_92], %86 {strides = array<i32>} : memref<2x1x22x128xf32, #tpu.memory_space<vmem>>, vector<1x1x1x16xf32>,
    %87 = vector.extract_strided_slice %3 {offsets = [0, 64], sizes = [1, 16], strides = [1, 1]} : vector<1x256xf32> to vector<1x16xf32>
    %c0_93 = arith.constant 0 : index
    %c0_94 = arith.constant 0 : index
    %c7 = arith.constant 7 : index
    %c3_95 = arith.constant 3 : index
    %88 = vector.load %arg4[%c0_93, %c0_94, %c7, %c3_95] : memref<2x1x22x128xf32, #tpu.memory_space<vmem>>, vector<1x1x1x16xf32>
    %89 = vector.shape_cast %88 : vector<1x1x1x16xf32> to vector<1x16xf32>
    %90 = vector.shape_cast %87 : vector<1x16xf32> to vector<1x1x1x16xf32>
    tpu.vector_store %arg4[%c0_93, %c0_94, %c7, %c3_95], %90 {strides = array<i32>} : memref<2x1x22x128xf32, #tpu.memory_space<vmem>>, vector<1x1x1x16xf32>,
    %91 = vector.extract_strided_slice %4 {offsets = [0, 64], sizes = [1, 16], strides = [1, 1]} : vector<1x256xf32> to vector<1x16xf32>
    %c1_96 = arith.constant 1 : index
    %c0_97 = arith.constant 0 : index
    %c7_98 = arith.constant 7 : index
    %c3_99 = arith.constant 3 : index
    %92 = vector.load %arg4[%c1_96, %c0_97, %c7_98, %c3_99] : memref<2x1x22x128xf32, #tpu.memory_space<vmem>>, vector<1x1x1x16xf32>
    %93 = vector.shape_cast %92 : vector<1x1x1x16xf32> to vector<1x16xf32>
    %94 = vector.shape_cast %91 : vector<1x16xf32> to vector<1x1x1x16xf32>
    tpu.vector_store %arg4[%c1_96, %c0_97, %c7_98, %c3_99], %94 {strides = array<i32>} : memref<2x1x22x128xf32, #tpu.memory_space<vmem>>, vector<1x1x1x16xf32>,
    %95 = vector.extract_strided_slice %3 {offsets = [0, 80], sizes = [1, 16], strides = [1, 1]} : vector<1x256xf32> to vector<1x16xf32>
    %c0_100 = arith.constant 0 : index
    %c0_101 = arith.constant 0 : index
    %c8 = arith.constant 8 : index
    %c3_102 = arith.constant 3 : index
    %96 = vector.load %arg4[%c0_100, %c0_101, %c8, %c3_102] : memref<2x1x22x128xf32, #tpu.memory_space<vmem>>, vector<1x1x1x16xf32>
    %97 = vector.shape_cast %96 : vector<1x1x1x16xf32> to vector<1x16xf32>
    %98 = vector.shape_cast %95 : vector<1x16xf32> to vector<1x1x1x16xf32>
    tpu.vector_store %arg4[%c0_100, %c0_101, %c8, %c3_102], %98 {strides = array<i32>} : memref<2x1x22x128xf32, #tpu.memory_space<vmem>>, vector<1x1x1x16xf32>,
    %99 = vector.extract_strided_slice %4 {offsets = [0, 80], sizes = [1, 16], strides = [1, 1]} : vector<1x256xf32> to vector<1x16xf32>
    %c1_103 = arith.constant 1 : index
    %c0_104 = arith.constant 0 : index
    %c8_105 = arith.constant 8 : index
    %c3_106 = arith.constant 3 : index
    %100 = vector.load %arg4[%c1_103, %c0_104, %c8_105, %c3_106] : memref<2x1x22x128xf32, #tpu.memory_space<vmem>>, vector<1x1x1x16xf32>
    %101 = vector.shape_cast %100 : vector<1x1x1x16xf32> to vector<1x16xf32>
    %102 = vector.shape_cast %99 : vector<1x16xf32> to vector<1x1x1x16xf32>
    tpu.vector_store %arg4[%c1_103, %c0_104, %c8_105, %c3_106], %102 {strides = array<i32>} : memref<2x1x22x128xf32, #tpu.memory_space<vmem>>, vector<1x1x1x16xf32>,
    %103 = vector.extract_strided_slice %3 {offsets = [0, 96], sizes = [1, 16], strides = [1, 1]} : vector<1x256xf32> to vector<1x16xf32>
    %c0_107 = arith.constant 0 : index
    %c0_108 = arith.constant 0 : index
    %c9 = arith.constant 9 : index
    %c3_109 = arith.constant 3 : index
    %104 = vector.load %arg4[%c0_107, %c0_108, %c9, %c3_109] : memref<2x1x22x128xf32, #tpu.memory_space<vmem>>, vector<1x1x1x16xf32>
    %105 = vector.shape_cast %104 : vector<1x1x1x16xf32> to vector<1x16xf32>
    %106 = vector.shape_cast %103 : vector<1x16xf32> to vector<1x1x1x16xf32>
    tpu.vector_store %arg4[%c0_107, %c0_108, %c9, %c3_109], %106 {strides = array<i32>} : memref<2x1x22x128xf32, #tpu.memory_space<vmem>>, vector<1x1x1x16xf32>,
    %107 = vector.extract_strided_slice %4 {offsets = [0, 96], sizes = [1, 16], strides = [1, 1]} : vector<1x256xf32> to vector<1x16xf32>
    %c1_110 = arith.constant 1 : index
    %c0_111 = arith.constant 0 : index
    %c9_112 = arith.constant 9 : index
    %c3_113 = arith.constant 3 : index
    %108 = vector.load %arg4[%c1_110, %c0_111, %c9_112, %c3_113] : memref<2x1x22x128xf32, #tpu.memory_space<vmem>>, vector<1x1x1x16xf32>
    %109 = vector.shape_cast %108 : vector<1x1x1x16xf32> to vector<1x16xf32>
    %110 = vector.shape_cast %107 : vector<1x16xf32> to vector<1x1x1x16xf32>
    tpu.vector_store %arg4[%c1_110, %c0_111, %c9_112, %c3_113], %110 {strides = array<i32>} : memref<2x1x22x128xf32, #tpu.memory_space<vmem>>, vector<1x1x1x16xf32>,
    %111 = vector.extract_strided_slice %3 {offsets = [0, 112], sizes = [1, 16], strides = [1, 1]} : vector<1x256xf32> to vector<1x16xf32>
    %c0_114 = arith.constant 0 : index
    %c0_115 = arith.constant 0 : index
    %c10 = arith.constant 10 : index
    %c3_116 = arith.constant 3 : index
    %112 = vector.load %arg4[%c0_114, %c0_115, %c10, %c3_116] : memref<2x1x22x128xf32, #tpu.memory_space<vmem>>, vector<1x1x1x16xf32>
    %113 = vector.shape_cast %112 : vector<1x1x1x16xf32> to vector<1x16xf32>
    %114 = vector.shape_cast %111 : vector<1x16xf32> to vector<1x1x1x16xf32>
    tpu.vector_store %arg4[%c0_114, %c0_115, %c10, %c3_116], %114 {strides = array<i32>} : memref<2x1x22x128xf32, #tpu.memory_space<vmem>>, vector<1x1x1x16xf32>,
    %115 = vector.extract_strided_slice %4 {offsets = [0, 112], sizes = [1, 16], strides = [1, 1]} : vector<1x256xf32> to vector<1x16xf32>
    %c1_117 = arith.constant 1 : index
    %c0_118 = arith.constant 0 : index
    %c10_119 = arith.constant 10 : index
    %c3_120 = arith.constant 3 : index
    %116 = vector.load %arg4[%c1_117, %c0_118, %c10_119, %c3_120] : memref<2x1x22x128xf32, #tpu.memory_space<vmem>>, vector<1x1x1x16xf32>
    %117 = vector.shape_cast %116 : vector<1x1x1x16xf32> to vector<1x16xf32>
    %118 = vector.shape_cast %115 : vector<1x16xf32> to vector<1x1x1x16xf32>
    tpu.vector_store %arg4[%c1_117, %c0_118, %c10_119, %c3_120], %118 {strides = array<i32>} : memref<2x1x22x128xf32, #tpu.memory_space<vmem>>, vector<1x1x1x16xf32>,
    %119 = vector.extract_strided_slice %3 {offsets = [0, 128], sizes = [1, 16], strides = [1, 1]} : vector<1x256xf32> to vector<1x16xf32>
    %c0_121 = arith.constant 0 : index
    %c0_122 = arith.constant 0 : index
    %c11 = arith.constant 11 : index
    %c3_123 = arith.constant 3 : index
    %120 = vector.load %arg4[%c0_121, %c0_122, %c11, %c3_123] : memref<2x1x22x128xf32, #tpu.memory_space<vmem>>, vector<1x1x1x16xf32>
    %121 = vector.shape_cast %120 : vector<1x1x1x16xf32> to vector<1x16xf32>
    %122 = vector.shape_cast %119 : vector<1x16xf32> to vector<1x1x1x16xf32>
    tpu.vector_store %arg4[%c0_121, %c0_122, %c11, %c3_123], %122 {strides = array<i32>} : memref<2x1x22x128xf32, #tpu.memory_space<vmem>>, vector<1x1x1x16xf32>,
    %123 = vector.extract_strided_slice %4 {offsets = [0, 128], sizes = [1, 16], strides = [1, 1]} : vector<1x256xf32> to vector<1x16xf32>
    %c1_124 = arith.constant 1 : index
    %c0_125 = arith.constant 0 : index
    %c11_126 = arith.constant 11 : index
    %c3_127 = arith.constant 3 : index
    %124 = vector.load %arg4[%c1_124, %c0_125, %c11_126, %c3_127] : memref<2x1x22x128xf32, #tpu.memory_space<vmem>>, vector<1x1x1x16xf32>
    %125 = vector.shape_cast %124 : vector<1x1x1x16xf32> to vector<1x16xf32>
    %126 = vector.shape_cast %123 : vector<1x16xf32> to vector<1x1x1x16xf32>
    tpu.vector_store %arg4[%c1_124, %c0_125, %c11_126, %c3_127], %126 {strides = array<i32>} : memref<2x1x22x128xf32, #tpu.memory_space<vmem>>, vector<1x1x1x16xf32>,
    %127 = vector.extract_strided_slice %3 {offsets = [0, 144], sizes = [1, 16], strides = [1, 1]} : vector<1x256xf32> to vector<1x16xf32>
    %c0_128 = arith.constant 0 : index
    %c0_129 = arith.constant 0 : index
    %c12 = arith.constant 12 : index
    %c3_130 = arith.constant 3 : index
    %128 = vector.load %arg4[%c0_128, %c0_129, %c12, %c3_130] : memref<2x1x22x128xf32, #tpu.memory_space<vmem>>, vector<1x1x1x16xf32>
    %129 = vector.shape_cast %128 : vector<1x1x1x16xf32> to vector<1x16xf32>
    %130 = vector.shape_cast %127 : vector<1x16xf32> to vector<1x1x1x16xf32>
    tpu.vector_store %arg4[%c0_128, %c0_129, %c12, %c3_130], %130 {strides = array<i32>} : memref<2x1x22x128xf32, #tpu.memory_space<vmem>>, vector<1x1x1x16xf32>,
    %131 = vector.extract_strided_slice %4 {offsets = [0, 144], sizes = [1, 16], strides = [1, 1]} : vector<1x256xf32> to vector<1x16xf32>
    %c1_131 = arith.constant 1 : index
    %c0_132 = arith.constant 0 : index
    %c12_133 = arith.constant 12 : index
    %c3_134 = arith.constant 3 : index
    %132 = vector.load %arg4[%c1_131, %c0_132, %c12_133, %c3_134] : memref<2x1x22x128xf32, #tpu.memory_space<vmem>>, vector<1x1x1x16xf32>
    %133 = vector.shape_cast %132 : vector<1x1x1x16xf32> to vector<1x16xf32>
    %134 = vector.shape_cast %131 : vector<1x16xf32> to vector<1x1x1x16xf32>
    tpu.vector_store %arg4[%c1_131, %c0_132, %c12_133, %c3_134], %134 {strides = array<i32>} : memref<2x1x22x128xf32, #tpu.memory_space<vmem>>, vector<1x1x1x16xf32>,
    %135 = vector.extract_strided_slice %3 {offsets = [0, 160], sizes = [1, 16], strides = [1, 1]} : vector<1x256xf32> to vector<1x16xf32>
    %c0_135 = arith.constant 0 : index
    %c0_136 = arith.constant 0 : index
    %c13 = arith.constant 13 : index
    %c3_137 = arith.constant 3 : index
    %136 = vector.load %arg4[%c0_135, %c0_136, %c13, %c3_137] : memref<2x1x22x128xf32, #tpu.memory_space<vmem>>, vector<1x1x1x16xf32>
    %137 = vector.shape_cast %136 : vector<1x1x1x16xf32> to vector<1x16xf32>
    %138 = vector.shape_cast %135 : vector<1x16xf32> to vector<1x1x1x16xf32>
    tpu.vector_store %arg4[%c0_135, %c0_136, %c13, %c3_137], %138 {strides = array<i32>} : memref<2x1x22x128xf32, #tpu.memory_space<vmem>>, vector<1x1x1x16xf32>,
    %139 = vector.extract_strided_slice %4 {offsets = [0, 160], sizes = [1, 16], strides = [1, 1]} : vector<1x256xf32> to vector<1x16xf32>
    %c1_138 = arith.constant 1 : index
    %c0_139 = arith.constant 0 : index
    %c13_140 = arith.constant 13 : index
    %c3_141 = arith.constant 3 : index
    %140 = vector.load %arg4[%c1_138, %c0_139, %c13_140, %c3_141] : memref<2x1x22x128xf32, #tpu.memory_space<vmem>>, vector<1x1x1x16xf32>
    %141 = vector.shape_cast %140 : vector<1x1x1x16xf32> to vector<1x16xf32>
    %142 = vector.shape_cast %139 : vector<1x16xf32> to vector<1x1x1x16xf32>
    tpu.vector_store %arg4[%c1_138, %c0_139, %c13_140, %c3_141], %142 {strides = array<i32>} : memref<2x1x22x128xf32, #tpu.memory_space<vmem>>, vector<1x1x1x16xf32>,
    %143 = vector.extract_strided_slice %3 {offsets = [0, 176], sizes = [1, 16], strides = [1, 1]} : vector<1x256xf32> to vector<1x16xf32>
    %c0_142 = arith.constant 0 : index
    %c0_143 = arith.constant 0 : index
    %c14 = arith.constant 14 : index
    %c3_144 = arith.constant 3 : index
    %144 = vector.load %arg4[%c0_142, %c0_143, %c14, %c3_144] : memref<2x1x22x128xf32, #tpu.memory_space<vmem>>, vector<1x1x1x16xf32>
    %145 = vector.shape_cast %144 : vector<1x1x1x16xf32> to vector<1x16xf32>
    %146 = vector.shape_cast %143 : vector<1x16xf32> to vector<1x1x1x16xf32>
    tpu.vector_store %arg4[%c0_142, %c0_143, %c14, %c3_144], %146 {strides = array<i32>} : memref<2x1x22x128xf32, #tpu.memory_space<vmem>>, vector<1x1x1x16xf32>,
    %147 = vector.extract_strided_slice %4 {offsets = [0, 176], sizes = [1, 16], strides = [1, 1]} : vector<1x256xf32> to vector<1x16xf32>
    %c1_145 = arith.constant 1 : index
    %c0_146 = arith.constant 0 : index
    %c14_147 = arith.constant 14 : index
    %c3_148 = arith.constant 3 : index
    %148 = vector.load %arg4[%c1_145, %c0_146, %c14_147, %c3_148] : memref<2x1x22x128xf32, #tpu.memory_space<vmem>>, vector<1x1x1x16xf32>
    %149 = vector.shape_cast %148 : vector<1x1x1x16xf32> to vector<1x16xf32>
    %150 = vector.shape_cast %147 : vector<1x16xf32> to vector<1x1x1x16xf32>
    tpu.vector_store %arg4[%c1_145, %c0_146, %c14_147, %c3_148], %150 {strides = array<i32>} : memref<2x1x22x128xf32, #tpu.memory_space<vmem>>, vector<1x1x1x16xf32>,
    %151 = vector.extract_strided_slice %3 {offsets = [0, 192], sizes = [1, 16], strides = [1, 1]} : vector<1x256xf32> to vector<1x16xf32>
    %c0_149 = arith.constant 0 : index
    %c0_150 = arith.constant 0 : index
    %c15 = arith.constant 15 : index
    %c3_151 = arith.constant 3 : index
    %152 = vector.load %arg4[%c0_149, %c0_150, %c15, %c3_151] : memref<2x1x22x128xf32, #tpu.memory_space<vmem>>, vector<1x1x1x16xf32>
    %153 = vector.shape_cast %152 : vector<1x1x1x16xf32> to vector<1x16xf32>
    %154 = vector.shape_cast %151 : vector<1x16xf32> to vector<1x1x1x16xf32>
    tpu.vector_store %arg4[%c0_149, %c0_150, %c15, %c3_151], %154 {strides = array<i32>} : memref<2x1x22x128xf32, #tpu.memory_space<vmem>>, vector<1x1x1x16xf32>,
    %155 = vector.extract_strided_slice %4 {offsets = [0, 192], sizes = [1, 16], strides = [1, 1]} : vector<1x256xf32> to vector<1x16xf32>
    %c1_152 = arith.constant 1 : index
    %c0_153 = arith.constant 0 : index
    %c15_154 = arith.constant 15 : index
    %c3_155 = arith.constant 3 : index
    %156 = vector.load %arg4[%c1_152, %c0_153, %c15_154, %c3_155] : memref<2x1x22x128xf32, #tpu.memory_space<vmem>>, vector<1x1x1x16xf32>
    %157 = vector.shape_cast %156 : vector<1x1x1x16xf32> to vector<1x16xf32>
    %158 = vector.shape_cast %155 : vector<1x16xf32> to vector<1x1x1x16xf32>
    tpu.vector_store %arg4[%c1_152, %c0_153, %c15_154, %c3_155], %158 {strides = array<i32>} : memref<2x1x22x128xf32, #tpu.memory_space<vmem>>, vector<1x1x1x16xf32>,
    %159 = vector.extract_strided_slice %3 {offsets = [0, 208], sizes = [1, 16], strides = [1, 1]} : vector<1x256xf32> to vector<1x16xf32>
    %c0_156 = arith.constant 0 : index
    %c0_157 = arith.constant 0 : index
    %c16 = arith.constant 16 : index
    %c3_158 = arith.constant 3 : index
    %160 = vector.load %arg4[%c0_156, %c0_157, %c16, %c3_158] : memref<2x1x22x128xf32, #tpu.memory_space<vmem>>, vector<1x1x1x16xf32>
    %161 = vector.shape_cast %160 : vector<1x1x1x16xf32> to vector<1x16xf32>
    %162 = vector.shape_cast %159 : vector<1x16xf32> to vector<1x1x1x16xf32>
    tpu.vector_store %arg4[%c0_156, %c0_157, %c16, %c3_158], %162 {strides = array<i32>} : memref<2x1x22x128xf32, #tpu.memory_space<vmem>>, vector<1x1x1x16xf32>,
    %163 = vector.extract_strided_slice %4 {offsets = [0, 208], sizes = [1, 16], strides = [1, 1]} : vector<1x256xf32> to vector<1x16xf32>
    %c1_159 = arith.constant 1 : index
    %c0_160 = arith.constant 0 : index
    %c16_161 = arith.constant 16 : index
    %c3_162 = arith.constant 3 : index
    %164 = vector.load %arg4[%c1_159, %c0_160, %c16_161, %c3_162] : memref<2x1x22x128xf32, #tpu.memory_space<vmem>>, vector<1x1x1x16xf32>
    %165 = vector.shape_cast %164 : vector<1x1x1x16xf32> to vector<1x16xf32>
    %166 = vector.shape_cast %163 : vector<1x16xf32> to vector<1x1x1x16xf32>
    tpu.vector_store %arg4[%c1_159, %c0_160, %c16_161, %c3_162], %166 {strides = array<i32>} : memref<2x1x22x128xf32, #tpu.memory_space<vmem>>, vector<1x1x1x16xf32>,
    %167 = vector.extract_strided_slice %3 {offsets = [0, 224], sizes = [1, 16], strides = [1, 1]} : vector<1x256xf32> to vector<1x16xf32>
    %c0_163 = arith.constant 0 : index
    %c0_164 = arith.constant 0 : index
    %c17 = arith.constant 17 : index
    %c3_165 = arith.constant 3 : index
    %168 = vector.load %arg4[%c0_163, %c0_164, %c17, %c3_165] : memref<2x1x22x128xf32, #tpu.memory_space<vmem>>, vector<1x1x1x16xf32>
    %169 = vector.shape_cast %168 : vector<1x1x1x16xf32> to vector<1x16xf32>
    %170 = vector.shape_cast %167 : vector<1x16xf32> to vector<1x1x1x16xf32>
    tpu.vector_store %arg4[%c0_163, %c0_164, %c17, %c3_165], %170 {strides = array<i32>} : memref<2x1x22x128xf32, #tpu.memory_space<vmem>>, vector<1x1x1x16xf32>,
    %171 = vector.extract_strided_slice %4 {offsets = [0, 224], sizes = [1, 16], strides = [1, 1]} : vector<1x256xf32> to vector<1x16xf32>
    %c1_166 = arith.constant 1 : index
    %c0_167 = arith.constant 0 : index
    %c17_168 = arith.constant 17 : index
    %c3_169 = arith.constant 3 : index
    %172 = vector.load %arg4[%c1_166, %c0_167, %c17_168, %c3_169] : memref<2x1x22x128xf32, #tpu.memory_space<vmem>>, vector<1x1x1x16xf32>
    %173 = vector.shape_cast %172 : vector<1x1x1x16xf32> to vector<1x16xf32>
    %174 = vector.shape_cast %171 : vector<1x16xf32> to vector<1x1x1x16xf32>
    tpu.vector_store %arg4[%c1_166, %c0_167, %c17_168, %c3_169], %174 {strides = array<i32>} : memref<2x1x22x128xf32, #tpu.memory_space<vmem>>, vector<1x1x1x16xf32>,
    %175 = vector.extract_strided_slice %3 {offsets = [0, 240], sizes = [1, 16], strides = [1, 1]} : vector<1x256xf32> to vector<1x16xf32>
    %c0_170 = arith.constant 0 : index
    %c0_171 = arith.constant 0 : index
    %c18 = arith.constant 18 : index
    %c3_172 = arith.constant 3 : index
    %176 = vector.load %arg4[%c0_170, %c0_171, %c18, %c3_172] : memref<2x1x22x128xf32, #tpu.memory_space<vmem>>, vector<1x1x1x16xf32>
    %177 = vector.shape_cast %176 : vector<1x1x1x16xf32> to vector<1x16xf32>
    %178 = vector.shape_cast %175 : vector<1x16xf32> to vector<1x1x1x16xf32>
    tpu.vector_store %arg4[%c0_170, %c0_171, %c18, %c3_172], %178 {strides = array<i32>} : memref<2x1x22x128xf32, #tpu.memory_space<vmem>>, vector<1x1x1x16xf32>,
    %179 = vector.extract_strided_slice %4 {offsets = [0, 240], sizes = [1, 16], strides = [1, 1]} : vector<1x256xf32> to vector<1x16xf32>
    %c1_173 = arith.constant 1 : index
    %c0_174 = arith.constant 0 : index
    %c18_175 = arith.constant 18 : index
    %c3_176 = arith.constant 3 : index
    %180 = vector.load %arg4[%c1_173, %c0_174, %c18_175, %c3_176] : memref<2x1x22x128xf32, #tpu.memory_space<vmem>>, vector<1x1x1x16xf32>
    %181 = vector.shape_cast %180 : vector<1x1x1x16xf32> to vector<1x16xf32>
    %182 = vector.shape_cast %179 : vector<1x16xf32> to vector<1x1x1x16xf32>
    tpu.vector_store %arg4[%c1_173, %c0_174, %c18_175, %c3_176], %182 {strides = array<i32>} : memref<2x1x22x128xf32, #tpu.memory_space<vmem>>, vector<1x1x1x16xf32>,
    %c0_177 = arith.constant 0 : index
    %c0_178 = arith.constant 0 : index
    %c0_179 = arith.constant 0 : index
    %c0_180 = arith.constant 0 : index
    %183 = vector.load %arg4[%c0_177, %c0_178, %c0_179, %c0_180] : memref<2x1x22x128xf32, #tpu.memory_space<vmem>>, vector<1x1x22x16xf32>
    %184 = vector.shape_cast %183 : vector<1x1x22x16xf32> to vector<1x22x16xf32>
    %c0_181 = arith.constant 0 : index
    %185 = memref.load %arg2[%c0_181] : memref<98xf32, #tpu.memory_space<smem>>
    %186 = vector.extract_strided_slice %184 {offsets = [0, 0, 0], sizes = [1, 16, 16], strides = [1, 1, 1]} : vector<1x22x16xf32> to vector<1x16x16xf32>
    %187 = vector.broadcast %185 : f32 to vector<1x16x16xf32>
    %188 = arith.mulf %187, %186 : vector<1x16x16xf32>
    %c7_182 = arith.constant 7 : index
    %189 = memref.load %arg2[%c7_182] : memref<98xf32, #tpu.memory_space<smem>>
    %190 = vector.extract_strided_slice %184 {offsets = [0, 1, 0], sizes = [1, 16, 16], strides = [1, 1, 1]} : vector<1x22x16xf32> to vector<1x16x16xf32>
    %191 = vector.broadcast %189 : f32 to vector<1x16x16xf32>
    %192 = arith.mulf %191, %190 : vector<1x16x16xf32>
    %c14_183 = arith.constant 14 : index
    %193 = memref.load %arg2[%c14_183] : memref<98xf32, #tpu.memory_space<smem>>
    %194 = vector.extract_strided_slice %184 {offsets = [0, 2, 0], sizes = [1, 16, 16], strides = [1, 1, 1]} : vector<1x22x16xf32> to vector<1x16x16xf32>
    %195 = vector.broadcast %193 : f32 to vector<1x16x16xf32>
    %196 = arith.mulf %195, %194 : vector<1x16x16xf32>
    %c21_184 = arith.constant 21 : index
    %197 = memref.load %arg2[%c21_184] : memref<98xf32, #tpu.memory_space<smem>>
    %198 = vector.extract_strided_slice %184 {offsets = [0, 3, 0], sizes = [1, 16, 16], strides = [1, 1, 1]} : vector<1x22x16xf32> to vector<1x16x16xf32>
    %199 = vector.broadcast %197 : f32 to vector<1x16x16xf32>
    %200 = arith.mulf %199, %198 : vector<1x16x16xf32>
    %c28 = arith.constant 28 : index
    %201 = memref.load %arg2[%c28] : memref<98xf32, #tpu.memory_space<smem>>
    %202 = vector.extract_strided_slice %184 {offsets = [0, 4, 0], sizes = [1, 16, 16], strides = [1, 1, 1]} : vector<1x22x16xf32> to vector<1x16x16xf32>
    %203 = vector.broadcast %201 : f32 to vector<1x16x16xf32>
    %204 = arith.mulf %203, %202 : vector<1x16x16xf32>
    %205 = arith.addf %188, %204 : vector<1x16x16xf32>
    %c35 = arith.constant 35 : index
    %206 = memref.load %arg2[%c35] : memref<98xf32, #tpu.memory_space<smem>>
    %207 = vector.extract_strided_slice %184 {offsets = [0, 5, 0], sizes = [1, 16, 16], strides = [1, 1, 1]} : vector<1x22x16xf32> to vector<1x16x16xf32>
    %208 = vector.broadcast %206 : f32 to vector<1x16x16xf32>
    %209 = arith.mulf %208, %207 : vector<1x16x16xf32>
    %210 = arith.addf %192, %209 : vector<1x16x16xf32>
    %c42 = arith.constant 42 : index
    %211 = memref.load %arg2[%c42] : memref<98xf32, #tpu.memory_space<smem>>
    %212 = vector.extract_strided_slice %184 {offsets = [0, 6, 0], sizes = [1, 16, 16], strides = [1, 1, 1]} : vector<1x22x16xf32> to vector<1x16x16xf32>
    %213 = vector.broadcast %211 : f32 to vector<1x16x16xf32>
    %214 = arith.mulf %213, %212 : vector<1x16x16xf32>
    %215 = arith.addf %196, %214 : vector<1x16x16xf32>
    %c0_185 = arith.constant 0 : index
    %c0_186 = arith.constant 0 : index
    %c0_187 = arith.constant 0 : index
    %c1_188 = arith.constant 1 : index
    %216 = vector.load %arg4[%c0_185, %c0_186, %c0_187, %c1_188] : memref<2x1x22x128xf32, #tpu.memory_space<vmem>>, vector<1x1x22x16xf32>
    %217 = vector.shape_cast %216 : vector<1x1x22x16xf32> to vector<1x22x16xf32>
    %c1_189 = arith.constant 1 : index
    %218 = memref.load %arg2[%c1_189] : memref<98xf32, #tpu.memory_space<smem>>
    %219 = vector.extract_strided_slice %217 {offsets = [0, 0, 0], sizes = [1, 16, 16], strides = [1, 1, 1]} : vector<1x22x16xf32> to vector<1x16x16xf32>
    %220 = vector.broadcast %218 : f32 to vector<1x16x16xf32>
    %221 = arith.mulf %220, %219 : vector<1x16x16xf32>
    %222 = arith.addf %200, %221 : vector<1x16x16xf32>
    %c8_190 = arith.constant 8 : index
    %223 = memref.load %arg2[%c8_190] : memref<98xf32, #tpu.memory_space<smem>>
    %224 = vector.extract_strided_slice %217 {offsets = [0, 1, 0], sizes = [1, 16, 16], strides = [1, 1, 1]} : vector<1x22x16xf32> to vector<1x16x16xf32>
    %225 = vector.broadcast %223 : f32 to vector<1x16x16xf32>
    %226 = arith.mulf %225, %224 : vector<1x16x16xf32>
    %227 = arith.addf %205, %226 : vector<1x16x16xf32>
    %c15_191 = arith.constant 15 : index
    %228 = memref.load %arg2[%c15_191] : memref<98xf32, #tpu.memory_space<smem>>
    %229 = vector.extract_strided_slice %217 {offsets = [0, 2, 0], sizes = [1, 16, 16], strides = [1, 1, 1]} : vector<1x22x16xf32> to vector<1x16x16xf32>
    %230 = vector.broadcast %228 : f32 to vector<1x16x16xf32>
    %231 = arith.mulf %230, %229 : vector<1x16x16xf32>
    %232 = arith.addf %210, %231 : vector<1x16x16xf32>
    %c22 = arith.constant 22 : index
    %233 = memref.load %arg2[%c22] : memref<98xf32, #tpu.memory_space<smem>>
    %234 = vector.extract_strided_slice %217 {offsets = [0, 3, 0], sizes = [1, 16, 16], strides = [1, 1, 1]} : vector<1x22x16xf32> to vector<1x16x16xf32>
    %235 = vector.broadcast %233 : f32 to vector<1x16x16xf32>
    %236 = arith.mulf %235, %234 : vector<1x16x16xf32>
    %237 = arith.addf %215, %236 : vector<1x16x16xf32>
    %c29 = arith.constant 29 : index
    %238 = memref.load %arg2[%c29] : memref<98xf32, #tpu.memory_space<smem>>
    %239 = vector.extract_strided_slice %217 {offsets = [0, 4, 0], sizes = [1, 16, 16], strides = [1, 1, 1]} : vector<1x22x16xf32> to vector<1x16x16xf32>
    %240 = vector.broadcast %238 : f32 to vector<1x16x16xf32>
    %241 = arith.mulf %240, %239 : vector<1x16x16xf32>
    %242 = arith.addf %222, %241 : vector<1x16x16xf32>
    %c36 = arith.constant 36 : index
    %243 = memref.load %arg2[%c36] : memref<98xf32, #tpu.memory_space<smem>>
    %244 = vector.extract_strided_slice %217 {offsets = [0, 5, 0], sizes = [1, 16, 16], strides = [1, 1, 1]} : vector<1x22x16xf32> to vector<1x16x16xf32>
    %245 = vector.broadcast %243 : f32 to vector<1x16x16xf32>
    %246 = arith.mulf %245, %244 : vector<1x16x16xf32>
    %247 = arith.addf %227, %246 : vector<1x16x16xf32>
    %c43 = arith.constant 43 : index
    %248 = memref.load %arg2[%c43] : memref<98xf32, #tpu.memory_space<smem>>
    %249 = vector.extract_strided_slice %217 {offsets = [0, 6, 0], sizes = [1, 16, 16], strides = [1, 1, 1]} : vector<1x22x16xf32> to vector<1x16x16xf32>
    %250 = vector.broadcast %248 : f32 to vector<1x16x16xf32>
    %251 = arith.mulf %250, %249 : vector<1x16x16xf32>
    %252 = arith.addf %232, %251 : vector<1x16x16xf32>
    %c0_192 = arith.constant 0 : index
    %c0_193 = arith.constant 0 : index
    %c0_194 = arith.constant 0 : index
    %c2_195 = arith.constant 2 : index
    %253 = vector.load %arg4[%c0_192, %c0_193, %c0_194, %c2_195] : memref<2x1x22x128xf32, #tpu.memory_space<vmem>>, vector<1x1x22x16xf32>
    %254 = vector.shape_cast %253 : vector<1x1x22x16xf32> to vector<1x22x16xf32>
    %c2_196 = arith.constant 2 : index
    %255 = memref.load %arg2[%c2_196] : memref<98xf32, #tpu.memory_space<smem>>
    %256 = vector.extract_strided_slice %254 {offsets = [0, 0, 0], sizes = [1, 16, 16], strides = [1, 1, 1]} : vector<1x22x16xf32> to vector<1x16x16xf32>
    %257 = vector.broadcast %255 : f32 to vector<1x16x16xf32>
    %258 = arith.mulf %257, %256 : vector<1x16x16xf32>
    %259 = arith.addf %237, %258 : vector<1x16x16xf32>
    %c9_197 = arith.constant 9 : index
    %260 = memref.load %arg2[%c9_197] : memref<98xf32, #tpu.memory_space<smem>>
    %261 = vector.extract_strided_slice %254 {offsets = [0, 1, 0], sizes = [1, 16, 16], strides = [1, 1, 1]} : vector<1x22x16xf32> to vector<1x16x16xf32>
    %262 = vector.broadcast %260 : f32 to vector<1x16x16xf32>
    %263 = arith.mulf %262, %261 : vector<1x16x16xf32>
    %264 = arith.addf %242, %263 : vector<1x16x16xf32>
    %c16_198 = arith.constant 16 : index
    %265 = memref.load %arg2[%c16_198] : memref<98xf32, #tpu.memory_space<smem>>
    %266 = vector.extract_strided_slice %254 {offsets = [0, 2, 0], sizes = [1, 16, 16], strides = [1, 1, 1]} : vector<1x22x16xf32> to vector<1x16x16xf32>
    %267 = vector.broadcast %265 : f32 to vector<1x16x16xf32>
    %268 = arith.mulf %267, %266 : vector<1x16x16xf32>
    %269 = arith.addf %247, %268 : vector<1x16x16xf32>
    %c23 = arith.constant 23 : index
    %270 = memref.load %arg2[%c23] : memref<98xf32, #tpu.memory_space<smem>>
    %271 = vector.extract_strided_slice %254 {offsets = [0, 3, 0], sizes = [1, 16, 16], strides = [1, 1, 1]} : vector<1x22x16xf32> to vector<1x16x16xf32>
    %272 = vector.broadcast %270 : f32 to vector<1x16x16xf32>
    %273 = arith.mulf %272, %271 : vector<1x16x16xf32>
    %274 = arith.addf %252, %273 : vector<1x16x16xf32>
    %c30 = arith.constant 30 : index
    %275 = memref.load %arg2[%c30] : memref<98xf32, #tpu.memory_space<smem>>
    %276 = vector.extract_strided_slice %254 {offsets = [0, 4, 0], sizes = [1, 16, 16], strides = [1, 1, 1]} : vector<1x22x16xf32> to vector<1x16x16xf32>
    %277 = vector.broadcast %275 : f32 to vector<1x16x16xf32>
    %278 = arith.mulf %277, %276 : vector<1x16x16xf32>
    %279 = arith.addf %259, %278 : vector<1x16x16xf32>
    %c37 = arith.constant 37 : index
    %280 = memref.load %arg2[%c37] : memref<98xf32, #tpu.memory_space<smem>>
    %281 = vector.extract_strided_slice %254 {offsets = [0, 5, 0], sizes = [1, 16, 16], strides = [1, 1, 1]} : vector<1x22x16xf32> to vector<1x16x16xf32>
    %282 = vector.broadcast %280 : f32 to vector<1x16x16xf32>
    %283 = arith.mulf %282, %281 : vector<1x16x16xf32>
    %284 = arith.addf %264, %283 : vector<1x16x16xf32>
    %c44 = arith.constant 44 : index
    %285 = memref.load %arg2[%c44] : memref<98xf32, #tpu.memory_space<smem>>
    %286 = vector.extract_strided_slice %254 {offsets = [0, 6, 0], sizes = [1, 16, 16], strides = [1, 1, 1]} : vector<1x22x16xf32> to vector<1x16x16xf32>
    %287 = vector.broadcast %285 : f32 to vector<1x16x16xf32>
    %288 = arith.mulf %287, %286 : vector<1x16x16xf32>
    %289 = arith.addf %269, %288 : vector<1x16x16xf32>
    %c0_199 = arith.constant 0 : index
    %c0_200 = arith.constant 0 : index
    %c0_201 = arith.constant 0 : index
    %c3_202 = arith.constant 3 : index
    %290 = vector.load %arg4[%c0_199, %c0_200, %c0_201, %c3_202] : memref<2x1x22x128xf32, #tpu.memory_space<vmem>>, vector<1x1x22x16xf32>
    %291 = vector.shape_cast %290 : vector<1x1x22x16xf32> to vector<1x22x16xf32>
    %c3_203 = arith.constant 3 : index
    %292 = memref.load %arg2[%c3_203] : memref<98xf32, #tpu.memory_space<smem>>
    %293 = vector.extract_strided_slice %291 {offsets = [0, 0, 0], sizes = [1, 16, 16], strides = [1, 1, 1]} : vector<1x22x16xf32> to vector<1x16x16xf32>
    %294 = vector.broadcast %292 : f32 to vector<1x16x16xf32>
    %295 = arith.mulf %294, %293 : vector<1x16x16xf32>
    %296 = arith.addf %274, %295 : vector<1x16x16xf32>
    %c10_204 = arith.constant 10 : index
    %297 = memref.load %arg2[%c10_204] : memref<98xf32, #tpu.memory_space<smem>>
    %298 = vector.extract_strided_slice %291 {offsets = [0, 1, 0], sizes = [1, 16, 16], strides = [1, 1, 1]} : vector<1x22x16xf32> to vector<1x16x16xf32>
    %299 = vector.broadcast %297 : f32 to vector<1x16x16xf32>
    %300 = arith.mulf %299, %298 : vector<1x16x16xf32>
    %301 = arith.addf %279, %300 : vector<1x16x16xf32>
    %c17_205 = arith.constant 17 : index
    %302 = memref.load %arg2[%c17_205] : memref<98xf32, #tpu.memory_space<smem>>
    %303 = vector.extract_strided_slice %291 {offsets = [0, 2, 0], sizes = [1, 16, 16], strides = [1, 1, 1]} : vector<1x22x16xf32> to vector<1x16x16xf32>
    %304 = vector.broadcast %302 : f32 to vector<1x16x16xf32>
    %305 = arith.mulf %304, %303 : vector<1x16x16xf32>
    %306 = arith.addf %284, %305 : vector<1x16x16xf32>
    %c24 = arith.constant 24 : index
    %307 = memref.load %arg2[%c24] : memref<98xf32, #tpu.memory_space<smem>>
    %308 = vector.extract_strided_slice %291 {offsets = [0, 3, 0], sizes = [1, 16, 16], strides = [1, 1, 1]} : vector<1x22x16xf32> to vector<1x16x16xf32>
    %309 = vector.broadcast %307 : f32 to vector<1x16x16xf32>
    %310 = arith.mulf %309, %308 : vector<1x16x16xf32>
    %311 = arith.addf %289, %310 : vector<1x16x16xf32>
    %c31 = arith.constant 31 : index
    %312 = memref.load %arg2[%c31] : memref<98xf32, #tpu.memory_space<smem>>
    %313 = vector.extract_strided_slice %291 {offsets = [0, 4, 0], sizes = [1, 16, 16], strides = [1, 1, 1]} : vector<1x22x16xf32> to vector<1x16x16xf32>
    %314 = vector.broadcast %312 : f32 to vector<1x16x16xf32>
    %315 = arith.mulf %314, %313 : vector<1x16x16xf32>
    %316 = arith.addf %296, %315 : vector<1x16x16xf32>
    %c38 = arith.constant 38 : index
    %317 = memref.load %arg2[%c38] : memref<98xf32, #tpu.memory_space<smem>>
    %318 = vector.extract_strided_slice %291 {offsets = [0, 5, 0], sizes = [1, 16, 16], strides = [1, 1, 1]} : vector<1x22x16xf32> to vector<1x16x16xf32>
    %319 = vector.broadcast %317 : f32 to vector<1x16x16xf32>
    %320 = arith.mulf %319, %318 : vector<1x16x16xf32>
    %321 = arith.addf %301, %320 : vector<1x16x16xf32>
    %c45 = arith.constant 45 : index
    %322 = memref.load %arg2[%c45] : memref<98xf32, #tpu.memory_space<smem>>
    %323 = vector.extract_strided_slice %291 {offsets = [0, 6, 0], sizes = [1, 16, 16], strides = [1, 1, 1]} : vector<1x22x16xf32> to vector<1x16x16xf32>
    %324 = vector.broadcast %322 : f32 to vector<1x16x16xf32>
    %325 = arith.mulf %324, %323 : vector<1x16x16xf32>
    %326 = arith.addf %306, %325 : vector<1x16x16xf32>
    %c0_206 = arith.constant 0 : index
    %c0_207 = arith.constant 0 : index
    %c0_208 = arith.constant 0 : index
    %c4_209 = arith.constant 4 : index
    %327 = vector.load %arg4[%c0_206, %c0_207, %c0_208, %c4_209] : memref<2x1x22x128xf32, #tpu.memory_space<vmem>>, vector<1x1x22x16xf32>
    %328 = vector.shape_cast %327 : vector<1x1x22x16xf32> to vector<1x22x16xf32>
    %c4_210 = arith.constant 4 : index
    %329 = memref.load %arg2[%c4_210] : memref<98xf32, #tpu.memory_space<smem>>
    %330 = vector.extract_strided_slice %328 {offsets = [0, 0, 0], sizes = [1, 16, 16], strides = [1, 1, 1]} : vector<1x22x16xf32> to vector<1x16x16xf32>
    %331 = vector.broadcast %329 : f32 to vector<1x16x16xf32>
    %332 = arith.mulf %331, %330 : vector<1x16x16xf32>
    %333 = arith.addf %311, %332 : vector<1x16x16xf32>
    %c11_211 = arith.constant 11 : index
    %334 = memref.load %arg2[%c11_211] : memref<98xf32, #tpu.memory_space<smem>>
    %335 = vector.extract_strided_slice %328 {offsets = [0, 1, 0], sizes = [1, 16, 16], strides = [1, 1, 1]} : vector<1x22x16xf32> to vector<1x16x16xf32>
    %336 = vector.broadcast %334 : f32 to vector<1x16x16xf32>
    %337 = arith.mulf %336, %335 : vector<1x16x16xf32>
    %338 = arith.addf %316, %337 : vector<1x16x16xf32>
    %c18_212 = arith.constant 18 : index
    %339 = memref.load %arg2[%c18_212] : memref<98xf32, #tpu.memory_space<smem>>
    %340 = vector.extract_strided_slice %328 {offsets = [0, 2, 0], sizes = [1, 16, 16], strides = [1, 1, 1]} : vector<1x22x16xf32> to vector<1x16x16xf32>
    %341 = vector.broadcast %339 : f32 to vector<1x16x16xf32>
    %342 = arith.mulf %341, %340 : vector<1x16x16xf32>
    %343 = arith.addf %321, %342 : vector<1x16x16xf32>
    %c25 = arith.constant 25 : index
    %344 = memref.load %arg2[%c25] : memref<98xf32, #tpu.memory_space<smem>>
    %345 = vector.extract_strided_slice %328 {offsets = [0, 3, 0], sizes = [1, 16, 16], strides = [1, 1, 1]} : vector<1x22x16xf32> to vector<1x16x16xf32>
    %346 = vector.broadcast %344 : f32 to vector<1x16x16xf32>
    %347 = arith.mulf %346, %345 : vector<1x16x16xf32>
    %348 = arith.addf %326, %347 : vector<1x16x16xf32>
    %c32 = arith.constant 32 : index
    %349 = memref.load %arg2[%c32] : memref<98xf32, #tpu.memory_space<smem>>
    %350 = vector.extract_strided_slice %328 {offsets = [0, 4, 0], sizes = [1, 16, 16], strides = [1, 1, 1]} : vector<1x22x16xf32> to vector<1x16x16xf32>
    %351 = vector.broadcast %349 : f32 to vector<1x16x16xf32>
    %352 = arith.mulf %351, %350 : vector<1x16x16xf32>
    %353 = arith.addf %333, %352 : vector<1x16x16xf32>
    %c39 = arith.constant 39 : index
    %354 = memref.load %arg2[%c39] : memref<98xf32, #tpu.memory_space<smem>>
    %355 = vector.extract_strided_slice %328 {offsets = [0, 5, 0], sizes = [1, 16, 16], strides = [1, 1, 1]} : vector<1x22x16xf32> to vector<1x16x16xf32>
    %356 = vector.broadcast %354 : f32 to vector<1x16x16xf32>
    %357 = arith.mulf %356, %355 : vector<1x16x16xf32>
    %358 = arith.addf %338, %357 : vector<1x16x16xf32>
    %c46 = arith.constant 46 : index
    %359 = memref.load %arg2[%c46] : memref<98xf32, #tpu.memory_space<smem>>
    %360 = vector.extract_strided_slice %328 {offsets = [0, 6, 0], sizes = [1, 16, 16], strides = [1, 1, 1]} : vector<1x22x16xf32> to vector<1x16x16xf32>
    %361 = vector.broadcast %359 : f32 to vector<1x16x16xf32>
    %362 = arith.mulf %361, %360 : vector<1x16x16xf32>
    %363 = arith.addf %343, %362 : vector<1x16x16xf32>
    %c0_213 = arith.constant 0 : index
    %c0_214 = arith.constant 0 : index
    %c0_215 = arith.constant 0 : index
    %c5_216 = arith.constant 5 : index
    %364 = vector.load %arg4[%c0_213, %c0_214, %c0_215, %c5_216] : memref<2x1x22x128xf32, #tpu.memory_space<vmem>>, vector<1x1x22x16xf32>
    %365 = vector.shape_cast %364 : vector<1x1x22x16xf32> to vector<1x22x16xf32>
    %c5_217 = arith.constant 5 : index
    %366 = memref.load %arg2[%c5_217] : memref<98xf32, #tpu.memory_space<smem>>
    %367 = vector.extract_strided_slice %365 {offsets = [0, 0, 0], sizes = [1, 16, 16], strides = [1, 1, 1]} : vector<1x22x16xf32> to vector<1x16x16xf32>
    %368 = vector.broadcast %366 : f32 to vector<1x16x16xf32>
    %369 = arith.mulf %368, %367 : vector<1x16x16xf32>
    %370 = arith.addf %348, %369 : vector<1x16x16xf32>
    %c12_218 = arith.constant 12 : index
    %371 = memref.load %arg2[%c12_218] : memref<98xf32, #tpu.memory_space<smem>>
    %372 = vector.extract_strided_slice %365 {offsets = [0, 1, 0], sizes = [1, 16, 16], strides = [1, 1, 1]} : vector<1x22x16xf32> to vector<1x16x16xf32>
    %373 = vector.broadcast %371 : f32 to vector<1x16x16xf32>
    %374 = arith.mulf %373, %372 : vector<1x16x16xf32>
    %375 = arith.addf %353, %374 : vector<1x16x16xf32>
    %c19_219 = arith.constant 19 : index
    %376 = memref.load %arg2[%c19_219] : memref<98xf32, #tpu.memory_space<smem>>
    %377 = vector.extract_strided_slice %365 {offsets = [0, 2, 0], sizes = [1, 16, 16], strides = [1, 1, 1]} : vector<1x22x16xf32> to vector<1x16x16xf32>
    %378 = vector.broadcast %376 : f32 to vector<1x16x16xf32>
    %379 = arith.mulf %378, %377 : vector<1x16x16xf32>
    %380 = arith.addf %358, %379 : vector<1x16x16xf32>
    %c26 = arith.constant 26 : index
    %381 = memref.load %arg2[%c26] : memref<98xf32, #tpu.memory_space<smem>>
    %382 = vector.extract_strided_slice %365 {offsets = [0, 3, 0], sizes = [1, 16, 16], strides = [1, 1, 1]} : vector<1x22x16xf32> to vector<1x16x16xf32>
    %383 = vector.broadcast %381 : f32 to vector<1x16x16xf32>
    %384 = arith.mulf %383, %382 : vector<1x16x16xf32>
    %385 = arith.addf %363, %384 : vector<1x16x16xf32>
    %c33 = arith.constant 33 : index
    %386 = memref.load %arg2[%c33] : memref<98xf32, #tpu.memory_space<smem>>
    %387 = vector.extract_strided_slice %365 {offsets = [0, 4, 0], sizes = [1, 16, 16], strides = [1, 1, 1]} : vector<1x22x16xf32> to vector<1x16x16xf32>
    %388 = vector.broadcast %386 : f32 to vector<1x16x16xf32>
    %389 = arith.mulf %388, %387 : vector<1x16x16xf32>
    %390 = arith.addf %370, %389 : vector<1x16x16xf32>
    %c40 = arith.constant 40 : index
    %391 = memref.load %arg2[%c40] : memref<98xf32, #tpu.memory_space<smem>>
    %392 = vector.extract_strided_slice %365 {offsets = [0, 5, 0], sizes = [1, 16, 16], strides = [1, 1, 1]} : vector<1x22x16xf32> to vector<1x16x16xf32>
    %393 = vector.broadcast %391 : f32 to vector<1x16x16xf32>
    %394 = arith.mulf %393, %392 : vector<1x16x16xf32>
    %395 = arith.addf %375, %394 : vector<1x16x16xf32>
    %c47 = arith.constant 47 : index
    %396 = memref.load %arg2[%c47] : memref<98xf32, #tpu.memory_space<smem>>
    %397 = vector.extract_strided_slice %365 {offsets = [0, 6, 0], sizes = [1, 16, 16], strides = [1, 1, 1]} : vector<1x22x16xf32> to vector<1x16x16xf32>
    %398 = vector.broadcast %396 : f32 to vector<1x16x16xf32>
    %399 = arith.mulf %398, %397 : vector<1x16x16xf32>
    %400 = arith.addf %380, %399 : vector<1x16x16xf32>
    %c0_220 = arith.constant 0 : index
    %c0_221 = arith.constant 0 : index
    %c0_222 = arith.constant 0 : index
    %c6_223 = arith.constant 6 : index
    %401 = vector.load %arg4[%c0_220, %c0_221, %c0_222, %c6_223] : memref<2x1x22x128xf32, #tpu.memory_space<vmem>>, vector<1x1x22x16xf32>
    %402 = vector.shape_cast %401 : vector<1x1x22x16xf32> to vector<1x22x16xf32>
    %c6_224 = arith.constant 6 : index
    %403 = memref.load %arg2[%c6_224] : memref<98xf32, #tpu.memory_space<smem>>
    %404 = vector.extract_strided_slice %402 {offsets = [0, 0, 0], sizes = [1, 16, 16], strides = [1, 1, 1]} : vector<1x22x16xf32> to vector<1x16x16xf32>
    %405 = vector.broadcast %403 : f32 to vector<1x16x16xf32>
    %406 = arith.mulf %405, %404 : vector<1x16x16xf32>
    %407 = arith.addf %385, %406 : vector<1x16x16xf32>
    %c13_225 = arith.constant 13 : index
    %408 = memref.load %arg2[%c13_225] : memref<98xf32, #tpu.memory_space<smem>>
    %409 = vector.extract_strided_slice %402 {offsets = [0, 1, 0], sizes = [1, 16, 16], strides = [1, 1, 1]} : vector<1x22x16xf32> to vector<1x16x16xf32>
    %410 = vector.broadcast %408 : f32 to vector<1x16x16xf32>
    %411 = arith.mulf %410, %409 : vector<1x16x16xf32>
    %412 = arith.addf %390, %411 : vector<1x16x16xf32>
    %c20_226 = arith.constant 20 : index
    %413 = memref.load %arg2[%c20_226] : memref<98xf32, #tpu.memory_space<smem>>
    %414 = vector.extract_strided_slice %402 {offsets = [0, 2, 0], sizes = [1, 16, 16], strides = [1, 1, 1]} : vector<1x22x16xf32> to vector<1x16x16xf32>
    %415 = vector.broadcast %413 : f32 to vector<1x16x16xf32>
    %416 = arith.mulf %415, %414 : vector<1x16x16xf32>
    %417 = arith.addf %395, %416 : vector<1x16x16xf32>
    %c27 = arith.constant 27 : index
    %418 = memref.load %arg2[%c27] : memref<98xf32, #tpu.memory_space<smem>>
    %419 = vector.extract_strided_slice %402 {offsets = [0, 3, 0], sizes = [1, 16, 16], strides = [1, 1, 1]} : vector<1x22x16xf32> to vector<1x16x16xf32>
    %420 = vector.broadcast %418 : f32 to vector<1x16x16xf32>
    %421 = arith.mulf %420, %419 : vector<1x16x16xf32>
    %422 = arith.addf %400, %421 : vector<1x16x16xf32>
    %c34 = arith.constant 34 : index
    %423 = memref.load %arg2[%c34] : memref<98xf32, #tpu.memory_space<smem>>
    %424 = vector.extract_strided_slice %402 {offsets = [0, 4, 0], sizes = [1, 16, 16], strides = [1, 1, 1]} : vector<1x22x16xf32> to vector<1x16x16xf32>
    %425 = vector.broadcast %423 : f32 to vector<1x16x16xf32>
    %426 = arith.mulf %425, %424 : vector<1x16x16xf32>
    %427 = arith.addf %407, %426 : vector<1x16x16xf32>
    %c41 = arith.constant 41 : index
    %428 = memref.load %arg2[%c41] : memref<98xf32, #tpu.memory_space<smem>>
    %429 = vector.extract_strided_slice %402 {offsets = [0, 5, 0], sizes = [1, 16, 16], strides = [1, 1, 1]} : vector<1x22x16xf32> to vector<1x16x16xf32>
    %430 = vector.broadcast %428 : f32 to vector<1x16x16xf32>
    %431 = arith.mulf %430, %429 : vector<1x16x16xf32>
    %432 = arith.addf %412, %431 : vector<1x16x16xf32>
    %c48 = arith.constant 48 : index
    %433 = memref.load %arg2[%c48] : memref<98xf32, #tpu.memory_space<smem>>
    %434 = vector.extract_strided_slice %402 {offsets = [0, 6, 0], sizes = [1, 16, 16], strides = [1, 1, 1]} : vector<1x22x16xf32> to vector<1x16x16xf32>
    %435 = vector.broadcast %433 : f32 to vector<1x16x16xf32>
    %436 = arith.mulf %435, %434 : vector<1x16x16xf32>
    %437 = arith.addf %417, %436 : vector<1x16x16xf32>
    %c1_227 = arith.constant 1 : index
    %c0_228 = arith.constant 0 : index
    %c0_229 = arith.constant 0 : index
    %c0_230 = arith.constant 0 : index
    %438 = vector.load %arg4[%c1_227, %c0_228, %c0_229, %c0_230] : memref<2x1x22x128xf32, #tpu.memory_space<vmem>>, vector<1x1x22x16xf32>
    %439 = vector.shape_cast %438 : vector<1x1x22x16xf32> to vector<1x22x16xf32>
    %c49 = arith.constant 49 : index
    %440 = memref.load %arg2[%c49] : memref<98xf32, #tpu.memory_space<smem>>
    %441 = vector.extract_strided_slice %439 {offsets = [0, 0, 0], sizes = [1, 16, 16], strides = [1, 1, 1]} : vector<1x22x16xf32> to vector<1x16x16xf32>
    %442 = vector.broadcast %440 : f32 to vector<1x16x16xf32>
    %443 = arith.mulf %442, %441 : vector<1x16x16xf32>
    %444 = arith.addf %422, %443 : vector<1x16x16xf32>
    %c56 = arith.constant 56 : index
    %445 = memref.load %arg2[%c56] : memref<98xf32, #tpu.memory_space<smem>>
    %446 = vector.extract_strided_slice %439 {offsets = [0, 1, 0], sizes = [1, 16, 16], strides = [1, 1, 1]} : vector<1x22x16xf32> to vector<1x16x16xf32>
    %447 = vector.broadcast %445 : f32 to vector<1x16x16xf32>
    %448 = arith.mulf %447, %446 : vector<1x16x16xf32>
    %449 = arith.addf %427, %448 : vector<1x16x16xf32>
    %c63 = arith.constant 63 : index
    %450 = memref.load %arg2[%c63] : memref<98xf32, #tpu.memory_space<smem>>
    %451 = vector.extract_strided_slice %439 {offsets = [0, 2, 0], sizes = [1, 16, 16], strides = [1, 1, 1]} : vector<1x22x16xf32> to vector<1x16x16xf32>
    %452 = vector.broadcast %450 : f32 to vector<1x16x16xf32>
    %453 = arith.mulf %452, %451 : vector<1x16x16xf32>
    %454 = arith.addf %432, %453 : vector<1x16x16xf32>
    %c70 = arith.constant 70 : index
    %455 = memref.load %arg2[%c70] : memref<98xf32, #tpu.memory_space<smem>>
    %456 = vector.extract_strided_slice %439 {offsets = [0, 3, 0], sizes = [1, 16, 16], strides = [1, 1, 1]} : vector<1x22x16xf32> to vector<1x16x16xf32>
    %457 = vector.broadcast %455 : f32 to vector<1x16x16xf32>
    %458 = arith.mulf %457, %456 : vector<1x16x16xf32>
    %459 = arith.addf %437, %458 : vector<1x16x16xf32>
    %c77 = arith.constant 77 : index
    %460 = memref.load %arg2[%c77] : memref<98xf32, #tpu.memory_space<smem>>
    %461 = vector.extract_strided_slice %439 {offsets = [0, 4, 0], sizes = [1, 16, 16], strides = [1, 1, 1]} : vector<1x22x16xf32> to vector<1x16x16xf32>
    %462 = vector.broadcast %460 : f32 to vector<1x16x16xf32>
    %463 = arith.mulf %462, %461 : vector<1x16x16xf32>
    %464 = arith.addf %444, %463 : vector<1x16x16xf32>
    %c84 = arith.constant 84 : index
    %465 = memref.load %arg2[%c84] : memref<98xf32, #tpu.memory_space<smem>>
    %466 = vector.extract_strided_slice %439 {offsets = [0, 5, 0], sizes = [1, 16, 16], strides = [1, 1, 1]} : vector<1x22x16xf32> to vector<1x16x16xf32>
    %467 = vector.broadcast %465 : f32 to vector<1x16x16xf32>
    %468 = arith.mulf %467, %466 : vector<1x16x16xf32>
    %469 = arith.addf %449, %468 : vector<1x16x16xf32>
    %c91 = arith.constant 91 : index
    %470 = memref.load %arg2[%c91] : memref<98xf32, #tpu.memory_space<smem>>
    %471 = vector.extract_strided_slice %439 {offsets = [0, 6, 0], sizes = [1, 16, 16], strides = [1, 1, 1]} : vector<1x22x16xf32> to vector<1x16x16xf32>
    %472 = vector.broadcast %470 : f32 to vector<1x16x16xf32>
    %473 = arith.mulf %472, %471 : vector<1x16x16xf32>
    %474 = arith.addf %454, %473 : vector<1x16x16xf32>
    %c1_231 = arith.constant 1 : index
    %c0_232 = arith.constant 0 : index
    %c0_233 = arith.constant 0 : index
    %c1_234 = arith.constant 1 : index
    %475 = vector.load %arg4[%c1_231, %c0_232, %c0_233, %c1_234] : memref<2x1x22x128xf32, #tpu.memory_space<vmem>>, vector<1x1x22x16xf32>
    %476 = vector.shape_cast %475 : vector<1x1x22x16xf32> to vector<1x22x16xf32>
    %c50 = arith.constant 50 : index
    %477 = memref.load %arg2[%c50] : memref<98xf32, #tpu.memory_space<smem>>
    %478 = vector.extract_strided_slice %476 {offsets = [0, 0, 0], sizes = [1, 16, 16], strides = [1, 1, 1]} : vector<1x22x16xf32> to vector<1x16x16xf32>
    %479 = vector.broadcast %477 : f32 to vector<1x16x16xf32>
    %480 = arith.mulf %479, %478 : vector<1x16x16xf32>
    %481 = arith.addf %459, %480 : vector<1x16x16xf32>
    %c57 = arith.constant 57 : index
    %482 = memref.load %arg2[%c57] : memref<98xf32, #tpu.memory_space<smem>>
    %483 = vector.extract_strided_slice %476 {offsets = [0, 1, 0], sizes = [1, 16, 16], strides = [1, 1, 1]} : vector<1x22x16xf32> to vector<1x16x16xf32>
    %484 = vector.broadcast %482 : f32 to vector<1x16x16xf32>
    %485 = arith.mulf %484, %483 : vector<1x16x16xf32>
    %486 = arith.addf %464, %485 : vector<1x16x16xf32>
    %c64 = arith.constant 64 : index
    %487 = memref.load %arg2[%c64] : memref<98xf32, #tpu.memory_space<smem>>
    %488 = vector.extract_strided_slice %476 {offsets = [0, 2, 0], sizes = [1, 16, 16], strides = [1, 1, 1]} : vector<1x22x16xf32> to vector<1x16x16xf32>
    %489 = vector.broadcast %487 : f32 to vector<1x16x16xf32>
    %490 = arith.mulf %489, %488 : vector<1x16x16xf32>
    %491 = arith.addf %469, %490 : vector<1x16x16xf32>
    %c71 = arith.constant 71 : index
    %492 = memref.load %arg2[%c71] : memref<98xf32, #tpu.memory_space<smem>>
    %493 = vector.extract_strided_slice %476 {offsets = [0, 3, 0], sizes = [1, 16, 16], strides = [1, 1, 1]} : vector<1x22x16xf32> to vector<1x16x16xf32>
    %494 = vector.broadcast %492 : f32 to vector<1x16x16xf32>
    %495 = arith.mulf %494, %493 : vector<1x16x16xf32>
    %496 = arith.addf %474, %495 : vector<1x16x16xf32>
    %c78 = arith.constant 78 : index
    %497 = memref.load %arg2[%c78] : memref<98xf32, #tpu.memory_space<smem>>
    %498 = vector.extract_strided_slice %476 {offsets = [0, 4, 0], sizes = [1, 16, 16], strides = [1, 1, 1]} : vector<1x22x16xf32> to vector<1x16x16xf32>
    %499 = vector.broadcast %497 : f32 to vector<1x16x16xf32>
    %500 = arith.mulf %499, %498 : vector<1x16x16xf32>
    %501 = arith.addf %481, %500 : vector<1x16x16xf32>
    %c85 = arith.constant 85 : index
    %502 = memref.load %arg2[%c85] : memref<98xf32, #tpu.memory_space<smem>>
    %503 = vector.extract_strided_slice %476 {offsets = [0, 5, 0], sizes = [1, 16, 16], strides = [1, 1, 1]} : vector<1x22x16xf32> to vector<1x16x16xf32>
    %504 = vector.broadcast %502 : f32 to vector<1x16x16xf32>
    %505 = arith.mulf %504, %503 : vector<1x16x16xf32>
    %506 = arith.addf %486, %505 : vector<1x16x16xf32>
    %c92 = arith.constant 92 : index
    %507 = memref.load %arg2[%c92] : memref<98xf32, #tpu.memory_space<smem>>
    %508 = vector.extract_strided_slice %476 {offsets = [0, 6, 0], sizes = [1, 16, 16], strides = [1, 1, 1]} : vector<1x22x16xf32> to vector<1x16x16xf32>
    %509 = vector.broadcast %507 : f32 to vector<1x16x16xf32>
    %510 = arith.mulf %509, %508 : vector<1x16x16xf32>
    %511 = arith.addf %491, %510 : vector<1x16x16xf32>
    %c1_235 = arith.constant 1 : index
    %c0_236 = arith.constant 0 : index
    %c0_237 = arith.constant 0 : index
    %c2_238 = arith.constant 2 : index
    %512 = vector.load %arg4[%c1_235, %c0_236, %c0_237, %c2_238] : memref<2x1x22x128xf32, #tpu.memory_space<vmem>>, vector<1x1x22x16xf32>
    %513 = vector.shape_cast %512 : vector<1x1x22x16xf32> to vector<1x22x16xf32>
    %c51 = arith.constant 51 : index
    %514 = memref.load %arg2[%c51] : memref<98xf32, #tpu.memory_space<smem>>
    %515 = vector.extract_strided_slice %513 {offsets = [0, 0, 0], sizes = [1, 16, 16], strides = [1, 1, 1]} : vector<1x22x16xf32> to vector<1x16x16xf32>
    %516 = vector.broadcast %514 : f32 to vector<1x16x16xf32>
    %517 = arith.mulf %516, %515 : vector<1x16x16xf32>
    %518 = arith.addf %496, %517 : vector<1x16x16xf32>
    %c58 = arith.constant 58 : index
    %519 = memref.load %arg2[%c58] : memref<98xf32, #tpu.memory_space<smem>>
    %520 = vector.extract_strided_slice %513 {offsets = [0, 1, 0], sizes = [1, 16, 16], strides = [1, 1, 1]} : vector<1x22x16xf32> to vector<1x16x16xf32>
    %521 = vector.broadcast %519 : f32 to vector<1x16x16xf32>
    %522 = arith.mulf %521, %520 : vector<1x16x16xf32>
    %523 = arith.addf %501, %522 : vector<1x16x16xf32>
    %c65 = arith.constant 65 : index
    %524 = memref.load %arg2[%c65] : memref<98xf32, #tpu.memory_space<smem>>
    %525 = vector.extract_strided_slice %513 {offsets = [0, 2, 0], sizes = [1, 16, 16], strides = [1, 1, 1]} : vector<1x22x16xf32> to vector<1x16x16xf32>
    %526 = vector.broadcast %524 : f32 to vector<1x16x16xf32>
    %527 = arith.mulf %526, %525 : vector<1x16x16xf32>
    %528 = arith.addf %506, %527 : vector<1x16x16xf32>
    %c72 = arith.constant 72 : index
    %529 = memref.load %arg2[%c72] : memref<98xf32, #tpu.memory_space<smem>>
    %530 = vector.extract_strided_slice %513 {offsets = [0, 3, 0], sizes = [1, 16, 16], strides = [1, 1, 1]} : vector<1x22x16xf32> to vector<1x16x16xf32>
    %531 = vector.broadcast %529 : f32 to vector<1x16x16xf32>
    %532 = arith.mulf %531, %530 : vector<1x16x16xf32>
    %533 = arith.addf %511, %532 : vector<1x16x16xf32>
    %c79 = arith.constant 79 : index
    %534 = memref.load %arg2[%c79] : memref<98xf32, #tpu.memory_space<smem>>
    %535 = vector.extract_strided_slice %513 {offsets = [0, 4, 0], sizes = [1, 16, 16], strides = [1, 1, 1]} : vector<1x22x16xf32> to vector<1x16x16xf32>
    %536 = vector.broadcast %534 : f32 to vector<1x16x16xf32>
    %537 = arith.mulf %536, %535 : vector<1x16x16xf32>
    %538 = arith.addf %518, %537 : vector<1x16x16xf32>
    %c86 = arith.constant 86 : index
    %539 = memref.load %arg2[%c86] : memref<98xf32, #tpu.memory_space<smem>>
    %540 = vector.extract_strided_slice %513 {offsets = [0, 5, 0], sizes = [1, 16, 16], strides = [1, 1, 1]} : vector<1x22x16xf32> to vector<1x16x16xf32>
    %541 = vector.broadcast %539 : f32 to vector<1x16x16xf32>
    %542 = arith.mulf %541, %540 : vector<1x16x16xf32>
    %543 = arith.addf %523, %542 : vector<1x16x16xf32>
    %c93 = arith.constant 93 : index
    %544 = memref.load %arg2[%c93] : memref<98xf32, #tpu.memory_space<smem>>
    %545 = vector.extract_strided_slice %513 {offsets = [0, 6, 0], sizes = [1, 16, 16], strides = [1, 1, 1]} : vector<1x22x16xf32> to vector<1x16x16xf32>
    %546 = vector.broadcast %544 : f32 to vector<1x16x16xf32>
    %547 = arith.mulf %546, %545 : vector<1x16x16xf32>
    %548 = arith.addf %528, %547 : vector<1x16x16xf32>
    %c1_239 = arith.constant 1 : index
    %c0_240 = arith.constant 0 : index
    %c0_241 = arith.constant 0 : index
    %c3_242 = arith.constant 3 : index
    %549 = vector.load %arg4[%c1_239, %c0_240, %c0_241, %c3_242] : memref<2x1x22x128xf32, #tpu.memory_space<vmem>>, vector<1x1x22x16xf32>
    %550 = vector.shape_cast %549 : vector<1x1x22x16xf32> to vector<1x22x16xf32>
    %c52 = arith.constant 52 : index
    %551 = memref.load %arg2[%c52] : memref<98xf32, #tpu.memory_space<smem>>
    %552 = vector.extract_strided_slice %550 {offsets = [0, 0, 0], sizes = [1, 16, 16], strides = [1, 1, 1]} : vector<1x22x16xf32> to vector<1x16x16xf32>
    %553 = vector.broadcast %551 : f32 to vector<1x16x16xf32>
    %554 = arith.mulf %553, %552 : vector<1x16x16xf32>
    %555 = arith.addf %533, %554 : vector<1x16x16xf32>
    %c59 = arith.constant 59 : index
    %556 = memref.load %arg2[%c59] : memref<98xf32, #tpu.memory_space<smem>>
    %557 = vector.extract_strided_slice %550 {offsets = [0, 1, 0], sizes = [1, 16, 16], strides = [1, 1, 1]} : vector<1x22x16xf32> to vector<1x16x16xf32>
    %558 = vector.broadcast %556 : f32 to vector<1x16x16xf32>
    %559 = arith.mulf %558, %557 : vector<1x16x16xf32>
    %560 = arith.addf %538, %559 : vector<1x16x16xf32>
    %c66 = arith.constant 66 : index
    %561 = memref.load %arg2[%c66] : memref<98xf32, #tpu.memory_space<smem>>
    %562 = vector.extract_strided_slice %550 {offsets = [0, 2, 0], sizes = [1, 16, 16], strides = [1, 1, 1]} : vector<1x22x16xf32> to vector<1x16x16xf32>
    %563 = vector.broadcast %561 : f32 to vector<1x16x16xf32>
    %564 = arith.mulf %563, %562 : vector<1x16x16xf32>
    %565 = arith.addf %543, %564 : vector<1x16x16xf32>
    %c73 = arith.constant 73 : index
    %566 = memref.load %arg2[%c73] : memref<98xf32, #tpu.memory_space<smem>>
    %567 = vector.extract_strided_slice %550 {offsets = [0, 3, 0], sizes = [1, 16, 16], strides = [1, 1, 1]} : vector<1x22x16xf32> to vector<1x16x16xf32>
    %568 = vector.broadcast %566 : f32 to vector<1x16x16xf32>
    %569 = arith.mulf %568, %567 : vector<1x16x16xf32>
    %570 = arith.addf %548, %569 : vector<1x16x16xf32>
    %c80 = arith.constant 80 : index
    %571 = memref.load %arg2[%c80] : memref<98xf32, #tpu.memory_space<smem>>
    %572 = vector.extract_strided_slice %550 {offsets = [0, 4, 0], sizes = [1, 16, 16], strides = [1, 1, 1]} : vector<1x22x16xf32> to vector<1x16x16xf32>
    %573 = vector.broadcast %571 : f32 to vector<1x16x16xf32>
    %574 = arith.mulf %573, %572 : vector<1x16x16xf32>
    %575 = arith.addf %555, %574 : vector<1x16x16xf32>
    %c87 = arith.constant 87 : index
    %576 = memref.load %arg2[%c87] : memref<98xf32, #tpu.memory_space<smem>>
    %577 = vector.extract_strided_slice %550 {offsets = [0, 5, 0], sizes = [1, 16, 16], strides = [1, 1, 1]} : vector<1x22x16xf32> to vector<1x16x16xf32>
    %578 = vector.broadcast %576 : f32 to vector<1x16x16xf32>
    %579 = arith.mulf %578, %577 : vector<1x16x16xf32>
    %580 = arith.addf %560, %579 : vector<1x16x16xf32>
    %c94 = arith.constant 94 : index
    %581 = memref.load %arg2[%c94] : memref<98xf32, #tpu.memory_space<smem>>
    %582 = vector.extract_strided_slice %550 {offsets = [0, 6, 0], sizes = [1, 16, 16], strides = [1, 1, 1]} : vector<1x22x16xf32> to vector<1x16x16xf32>
    %583 = vector.broadcast %581 : f32 to vector<1x16x16xf32>
    %584 = arith.mulf %583, %582 : vector<1x16x16xf32>
    %585 = arith.addf %565, %584 : vector<1x16x16xf32>
    %c1_243 = arith.constant 1 : index
    %c0_244 = arith.constant 0 : index
    %c0_245 = arith.constant 0 : index
    %c4_246 = arith.constant 4 : index
    %586 = vector.load %arg4[%c1_243, %c0_244, %c0_245, %c4_246] : memref<2x1x22x128xf32, #tpu.memory_space<vmem>>, vector<1x1x22x16xf32>
    %587 = vector.shape_cast %586 : vector<1x1x22x16xf32> to vector<1x22x16xf32>
    %c53 = arith.constant 53 : index
    %588 = memref.load %arg2[%c53] : memref<98xf32, #tpu.memory_space<smem>>
    %589 = vector.extract_strided_slice %587 {offsets = [0, 0, 0], sizes = [1, 16, 16], strides = [1, 1, 1]} : vector<1x22x16xf32> to vector<1x16x16xf32>
    %590 = vector.broadcast %588 : f32 to vector<1x16x16xf32>
    %591 = arith.mulf %590, %589 : vector<1x16x16xf32>
    %592 = arith.addf %570, %591 : vector<1x16x16xf32>
    %c60 = arith.constant 60 : index
    %593 = memref.load %arg2[%c60] : memref<98xf32, #tpu.memory_space<smem>>
    %594 = vector.extract_strided_slice %587 {offsets = [0, 1, 0], sizes = [1, 16, 16], strides = [1, 1, 1]} : vector<1x22x16xf32> to vector<1x16x16xf32>
    %595 = vector.broadcast %593 : f32 to vector<1x16x16xf32>
    %596 = arith.mulf %595, %594 : vector<1x16x16xf32>
    %597 = arith.addf %575, %596 : vector<1x16x16xf32>
    %c67 = arith.constant 67 : index
    %598 = memref.load %arg2[%c67] : memref<98xf32, #tpu.memory_space<smem>>
    %599 = vector.extract_strided_slice %587 {offsets = [0, 2, 0], sizes = [1, 16, 16], strides = [1, 1, 1]} : vector<1x22x16xf32> to vector<1x16x16xf32>
    %600 = vector.broadcast %598 : f32 to vector<1x16x16xf32>
    %601 = arith.mulf %600, %599 : vector<1x16x16xf32>
    %602 = arith.addf %580, %601 : vector<1x16x16xf32>
    %c74 = arith.constant 74 : index
    %603 = memref.load %arg2[%c74] : memref<98xf32, #tpu.memory_space<smem>>
    %604 = vector.extract_strided_slice %587 {offsets = [0, 3, 0], sizes = [1, 16, 16], strides = [1, 1, 1]} : vector<1x22x16xf32> to vector<1x16x16xf32>
    %605 = vector.broadcast %603 : f32 to vector<1x16x16xf32>
    %606 = arith.mulf %605, %604 : vector<1x16x16xf32>
    %607 = arith.addf %585, %606 : vector<1x16x16xf32>
    %c81 = arith.constant 81 : index
    %608 = memref.load %arg2[%c81] : memref<98xf32, #tpu.memory_space<smem>>
    %609 = vector.extract_strided_slice %587 {offsets = [0, 4, 0], sizes = [1, 16, 16], strides = [1, 1, 1]} : vector<1x22x16xf32> to vector<1x16x16xf32>
    %610 = vector.broadcast %608 : f32 to vector<1x16x16xf32>
    %611 = arith.mulf %610, %609 : vector<1x16x16xf32>
    %612 = arith.addf %592, %611 : vector<1x16x16xf32>
    %c88 = arith.constant 88 : index
    %613 = memref.load %arg2[%c88] : memref<98xf32, #tpu.memory_space<smem>>
    %614 = vector.extract_strided_slice %587 {offsets = [0, 5, 0], sizes = [1, 16, 16], strides = [1, 1, 1]} : vector<1x22x16xf32> to vector<1x16x16xf32>
    %615 = vector.broadcast %613 : f32 to vector<1x16x16xf32>
    %616 = arith.mulf %615, %614 : vector<1x16x16xf32>
    %617 = arith.addf %597, %616 : vector<1x16x16xf32>
    %c95 = arith.constant 95 : index
    %618 = memref.load %arg2[%c95] : memref<98xf32, #tpu.memory_space<smem>>
    %619 = vector.extract_strided_slice %587 {offsets = [0, 6, 0], sizes = [1, 16, 16], strides = [1, 1, 1]} : vector<1x22x16xf32> to vector<1x16x16xf32>
    %620 = vector.broadcast %618 : f32 to vector<1x16x16xf32>
    %621 = arith.mulf %620, %619 : vector<1x16x16xf32>
    %622 = arith.addf %602, %621 : vector<1x16x16xf32>
    %c1_247 = arith.constant 1 : index
    %c0_248 = arith.constant 0 : index
    %c0_249 = arith.constant 0 : index
    %c5_250 = arith.constant 5 : index
    %623 = vector.load %arg4[%c1_247, %c0_248, %c0_249, %c5_250] : memref<2x1x22x128xf32, #tpu.memory_space<vmem>>, vector<1x1x22x16xf32>
    %624 = vector.shape_cast %623 : vector<1x1x22x16xf32> to vector<1x22x16xf32>
    %c54 = arith.constant 54 : index
    %625 = memref.load %arg2[%c54] : memref<98xf32, #tpu.memory_space<smem>>
    %626 = vector.extract_strided_slice %624 {offsets = [0, 0, 0], sizes = [1, 16, 16], strides = [1, 1, 1]} : vector<1x22x16xf32> to vector<1x16x16xf32>
    %627 = vector.broadcast %625 : f32 to vector<1x16x16xf32>
    %628 = arith.mulf %627, %626 : vector<1x16x16xf32>
    %629 = arith.addf %607, %628 : vector<1x16x16xf32>
    %c61 = arith.constant 61 : index
    %630 = memref.load %arg2[%c61] : memref<98xf32, #tpu.memory_space<smem>>
    %631 = vector.extract_strided_slice %624 {offsets = [0, 1, 0], sizes = [1, 16, 16], strides = [1, 1, 1]} : vector<1x22x16xf32> to vector<1x16x16xf32>
    %632 = vector.broadcast %630 : f32 to vector<1x16x16xf32>
    %633 = arith.mulf %632, %631 : vector<1x16x16xf32>
    %634 = arith.addf %612, %633 : vector<1x16x16xf32>
    %c68 = arith.constant 68 : index
    %635 = memref.load %arg2[%c68] : memref<98xf32, #tpu.memory_space<smem>>
    %636 = vector.extract_strided_slice %624 {offsets = [0, 2, 0], sizes = [1, 16, 16], strides = [1, 1, 1]} : vector<1x22x16xf32> to vector<1x16x16xf32>
    %637 = vector.broadcast %635 : f32 to vector<1x16x16xf32>
    %638 = arith.mulf %637, %636 : vector<1x16x16xf32>
    %639 = arith.addf %617, %638 : vector<1x16x16xf32>
    %c75 = arith.constant 75 : index
    %640 = memref.load %arg2[%c75] : memref<98xf32, #tpu.memory_space<smem>>
    %641 = vector.extract_strided_slice %624 {offsets = [0, 3, 0], sizes = [1, 16, 16], strides = [1, 1, 1]} : vector<1x22x16xf32> to vector<1x16x16xf32>
    %642 = vector.broadcast %640 : f32 to vector<1x16x16xf32>
    %643 = arith.mulf %642, %641 : vector<1x16x16xf32>
    %644 = arith.addf %622, %643 : vector<1x16x16xf32>
    %c82 = arith.constant 82 : index
    %645 = memref.load %arg2[%c82] : memref<98xf32, #tpu.memory_space<smem>>
    %646 = vector.extract_strided_slice %624 {offsets = [0, 4, 0], sizes = [1, 16, 16], strides = [1, 1, 1]} : vector<1x22x16xf32> to vector<1x16x16xf32>
    %647 = vector.broadcast %645 : f32 to vector<1x16x16xf32>
    %648 = arith.mulf %647, %646 : vector<1x16x16xf32>
    %649 = arith.addf %629, %648 : vector<1x16x16xf32>
    %c89 = arith.constant 89 : index
    %650 = memref.load %arg2[%c89] : memref<98xf32, #tpu.memory_space<smem>>
    %651 = vector.extract_strided_slice %624 {offsets = [0, 5, 0], sizes = [1, 16, 16], strides = [1, 1, 1]} : vector<1x22x16xf32> to vector<1x16x16xf32>
    %652 = vector.broadcast %650 : f32 to vector<1x16x16xf32>
    %653 = arith.mulf %652, %651 : vector<1x16x16xf32>
    %654 = arith.addf %634, %653 : vector<1x16x16xf32>
    %c96 = arith.constant 96 : index
    %655 = memref.load %arg2[%c96] : memref<98xf32, #tpu.memory_space<smem>>
    %656 = vector.extract_strided_slice %624 {offsets = [0, 6, 0], sizes = [1, 16, 16], strides = [1, 1, 1]} : vector<1x22x16xf32> to vector<1x16x16xf32>
    %657 = vector.broadcast %655 : f32 to vector<1x16x16xf32>
    %658 = arith.mulf %657, %656 : vector<1x16x16xf32>
    %659 = arith.addf %639, %658 : vector<1x16x16xf32>
    %c1_251 = arith.constant 1 : index
    %c0_252 = arith.constant 0 : index
    %c0_253 = arith.constant 0 : index
    %c6_254 = arith.constant 6 : index
    %660 = vector.load %arg4[%c1_251, %c0_252, %c0_253, %c6_254] : memref<2x1x22x128xf32, #tpu.memory_space<vmem>>, vector<1x1x22x16xf32>
    %661 = vector.shape_cast %660 : vector<1x1x22x16xf32> to vector<1x22x16xf32>
    %c55 = arith.constant 55 : index
    %662 = memref.load %arg2[%c55] : memref<98xf32, #tpu.memory_space<smem>>
    %663 = vector.extract_strided_slice %661 {offsets = [0, 0, 0], sizes = [1, 16, 16], strides = [1, 1, 1]} : vector<1x22x16xf32> to vector<1x16x16xf32>
    %664 = vector.broadcast %662 : f32 to vector<1x16x16xf32>
    %665 = arith.mulf %664, %663 : vector<1x16x16xf32>
    %666 = arith.addf %644, %665 : vector<1x16x16xf32>
    %c62 = arith.constant 62 : index
    %667 = memref.load %arg2[%c62] : memref<98xf32, #tpu.memory_space<smem>>
    %668 = vector.extract_strided_slice %661 {offsets = [0, 1, 0], sizes = [1, 16, 16], strides = [1, 1, 1]} : vector<1x22x16xf32> to vector<1x16x16xf32>
    %669 = vector.broadcast %667 : f32 to vector<1x16x16xf32>
    %670 = arith.mulf %669, %668 : vector<1x16x16xf32>
    %671 = arith.addf %649, %670 : vector<1x16x16xf32>
    %c69 = arith.constant 69 : index
    %672 = memref.load %arg2[%c69] : memref<98xf32, #tpu.memory_space<smem>>
    %673 = vector.extract_strided_slice %661 {offsets = [0, 2, 0], sizes = [1, 16, 16], strides = [1, 1, 1]} : vector<1x22x16xf32> to vector<1x16x16xf32>
    %674 = vector.broadcast %672 : f32 to vector<1x16x16xf32>
    %675 = arith.mulf %674, %673 : vector<1x16x16xf32>
    %676 = arith.addf %654, %675 : vector<1x16x16xf32>
    %c76 = arith.constant 76 : index
    %677 = memref.load %arg2[%c76] : memref<98xf32, #tpu.memory_space<smem>>
    %678 = vector.extract_strided_slice %661 {offsets = [0, 3, 0], sizes = [1, 16, 16], strides = [1, 1, 1]} : vector<1x22x16xf32> to vector<1x16x16xf32>
    %679 = vector.broadcast %677 : f32 to vector<1x16x16xf32>
    %680 = arith.mulf %679, %678 : vector<1x16x16xf32>
    %681 = arith.addf %659, %680 : vector<1x16x16xf32>
    %c83 = arith.constant 83 : index
    %682 = memref.load %arg2[%c83] : memref<98xf32, #tpu.memory_space<smem>>
    %683 = vector.extract_strided_slice %661 {offsets = [0, 4, 0], sizes = [1, 16, 16], strides = [1, 1, 1]} : vector<1x22x16xf32> to vector<1x16x16xf32>
    %684 = vector.broadcast %682 : f32 to vector<1x16x16xf32>
    %685 = arith.mulf %684, %683 : vector<1x16x16xf32>
    %686 = arith.addf %666, %685 : vector<1x16x16xf32>
    %c90 = arith.constant 90 : index
    %687 = memref.load %arg2[%c90] : memref<98xf32, #tpu.memory_space<smem>>
    %688 = vector.extract_strided_slice %661 {offsets = [0, 5, 0], sizes = [1, 16, 16], strides = [1, 1, 1]} : vector<1x22x16xf32> to vector<1x16x16xf32>
    %689 = vector.broadcast %687 : f32 to vector<1x16x16xf32>
    %690 = arith.mulf %689, %688 : vector<1x16x16xf32>
    %691 = arith.addf %671, %690 : vector<1x16x16xf32>
    %c97 = arith.constant 97 : index
    %692 = memref.load %arg2[%c97] : memref<98xf32, #tpu.memory_space<smem>>
    %693 = vector.extract_strided_slice %661 {offsets = [0, 6, 0], sizes = [1, 16, 16], strides = [1, 1, 1]} : vector<1x22x16xf32> to vector<1x16x16xf32>
    %694 = vector.broadcast %692 : f32 to vector<1x16x16xf32>
    %695 = arith.mulf %694, %693 : vector<1x16x16xf32>
    %696 = arith.addf %676, %695 : vector<1x16x16xf32>
    %697 = arith.addf %691, %696 : vector<1x16x16xf32>
    %698 = arith.addf %681, %686 : vector<1x16x16xf32>
    %699 = arith.addf %697, %698 : vector<1x16x16xf32>
    %700 = arith.negf %699 : vector<1x16x16xf32>
    %701 = math.exp %700 : vector<1x16x16xf32>
    %cst_255 = arith.constant 1.000000e+00 : f32
    %702 = vector.broadcast %cst_255 : f32 to vector<1x16x16xf32>
    %703 = arith.addf %702, %701 : vector<1x16x16xf32>
    %704 = arith.divf %702, %703 : vector<1x16x16xf32>
    %705 = vector.extract_strided_slice %704 {offsets = [0, 0, 0], sizes = [1, 1, 16], strides = [1, 1, 1]} : vector<1x16x16xf32> to vector<1x1x16xf32>
    %706 = vector.shape_cast %705 : vector<1x1x16xf32> to vector<1x16xf32>
    %c0_256 = arith.constant 0 : index
    %c0_257 = arith.constant 0 : index
    %707 = vector.load %arg5[%c0_256, %c0_257] : memref<1x256xf32, #tpu.memory_space<vmem>>, vector<1x16xf32>
    tpu.vector_store %arg5[%c0_256, %c0_257], %706 {strides = array<i32>} : memref<1x256xf32, #tpu.memory_space<vmem>>, vector<1x16xf32>,
    %708 = vector.extract_strided_slice %704 {offsets = [0, 1, 0], sizes = [1, 1, 16], strides = [1, 1, 1]} : vector<1x16x16xf32> to vector<1x1x16xf32>
    %709 = vector.shape_cast %708 : vector<1x1x16xf32> to vector<1x16xf32>
    %c0_258 = arith.constant 0 : index
    %c16_259 = arith.constant 16 : index
    %710 = vector.load %arg5[%c0_258, %c16_259] : memref<1x256xf32, #tpu.memory_space<vmem>>, vector<1x16xf32>
    tpu.vector_store %arg5[%c0_258, %c16_259], %709 {strides = array<i32>} : memref<1x256xf32, #tpu.memory_space<vmem>>, vector<1x16xf32>,
    %711 = vector.extract_strided_slice %704 {offsets = [0, 2, 0], sizes = [1, 1, 16], strides = [1, 1, 1]} : vector<1x16x16xf32> to vector<1x1x16xf32>
    %712 = vector.shape_cast %711 : vector<1x1x16xf32> to vector<1x16xf32>
    %c0_260 = arith.constant 0 : index
    %c32_261 = arith.constant 32 : index
    %713 = vector.load %arg5[%c0_260, %c32_261] : memref<1x256xf32, #tpu.memory_space<vmem>>, vector<1x16xf32>
    tpu.vector_store %arg5[%c0_260, %c32_261], %712 {strides = array<i32>} : memref<1x256xf32, #tpu.memory_space<vmem>>, vector<1x16xf32>,
    %714 = vector.extract_strided_slice %704 {offsets = [0, 3, 0], sizes = [1, 1, 16], strides = [1, 1, 1]} : vector<1x16x16xf32> to vector<1x1x16xf32>
    %715 = vector.shape_cast %714 : vector<1x1x16xf32> to vector<1x16xf32>
    %c0_262 = arith.constant 0 : index
    %c48_263 = arith.constant 48 : index
    %716 = vector.load %arg5[%c0_262, %c48_263] : memref<1x256xf32, #tpu.memory_space<vmem>>, vector<1x16xf32>
    tpu.vector_store %arg5[%c0_262, %c48_263], %715 {strides = array<i32>} : memref<1x256xf32, #tpu.memory_space<vmem>>, vector<1x16xf32>,
    %717 = vector.extract_strided_slice %704 {offsets = [0, 4, 0], sizes = [1, 1, 16], strides = [1, 1, 1]} : vector<1x16x16xf32> to vector<1x1x16xf32>
    %718 = vector.shape_cast %717 : vector<1x1x16xf32> to vector<1x16xf32>
    %c0_264 = arith.constant 0 : index
    %c64_265 = arith.constant 64 : index
    %719 = vector.load %arg5[%c0_264, %c64_265] : memref<1x256xf32, #tpu.memory_space<vmem>>, vector<1x16xf32>
    tpu.vector_store %arg5[%c0_264, %c64_265], %718 {strides = array<i32>} : memref<1x256xf32, #tpu.memory_space<vmem>>, vector<1x16xf32>,
    %720 = vector.extract_strided_slice %704 {offsets = [0, 5, 0], sizes = [1, 1, 16], strides = [1, 1, 1]} : vector<1x16x16xf32> to vector<1x1x16xf32>
    %721 = vector.shape_cast %720 : vector<1x1x16xf32> to vector<1x16xf32>
    %c0_266 = arith.constant 0 : index
    %c80_267 = arith.constant 80 : index
    %722 = vector.load %arg5[%c0_266, %c80_267] : memref<1x256xf32, #tpu.memory_space<vmem>>, vector<1x16xf32>
    tpu.vector_store %arg5[%c0_266, %c80_267], %721 {strides = array<i32>} : memref<1x256xf32, #tpu.memory_space<vmem>>, vector<1x16xf32>,
    %723 = vector.extract_strided_slice %704 {offsets = [0, 6, 0], sizes = [1, 1, 16], strides = [1, 1, 1]} : vector<1x16x16xf32> to vector<1x1x16xf32>
    %724 = vector.shape_cast %723 : vector<1x1x16xf32> to vector<1x16xf32>
    %c0_268 = arith.constant 0 : index
    %c96_269 = arith.constant 96 : index
    %725 = vector.load %arg5[%c0_268, %c96_269] : memref<1x256xf32, #tpu.memory_space<vmem>>, vector<1x16xf32>
    tpu.vector_store %arg5[%c0_268, %c96_269], %724 {strides = array<i32>} : memref<1x256xf32, #tpu.memory_space<vmem>>, vector<1x16xf32>,
    %726 = vector.extract_strided_slice %704 {offsets = [0, 7, 0], sizes = [1, 1, 16], strides = [1, 1, 1]} : vector<1x16x16xf32> to vector<1x1x16xf32>
    %727 = vector.shape_cast %726 : vector<1x1x16xf32> to vector<1x16xf32>
    %c0_270 = arith.constant 0 : index
    %c112 = arith.constant 112 : index
    %728 = vector.load %arg5[%c0_270, %c112] : memref<1x256xf32, #tpu.memory_space<vmem>>, vector<1x16xf32>
    tpu.vector_store %arg5[%c0_270, %c112], %727 {strides = array<i32>} : memref<1x256xf32, #tpu.memory_space<vmem>>, vector<1x16xf32>,
    %729 = vector.extract_strided_slice %704 {offsets = [0, 8, 0], sizes = [1, 1, 16], strides = [1, 1, 1]} : vector<1x16x16xf32> to vector<1x1x16xf32>
    %730 = vector.shape_cast %729 : vector<1x1x16xf32> to vector<1x16xf32>
    %c0_271 = arith.constant 0 : index
    %c128 = arith.constant 128 : index
    %731 = vector.load %arg5[%c0_271, %c128] : memref<1x256xf32, #tpu.memory_space<vmem>>, vector<1x16xf32>
    tpu.vector_store %arg5[%c0_271, %c128], %730 {strides = array<i32>} : memref<1x256xf32, #tpu.memory_space<vmem>>, vector<1x16xf32>,
    %732 = vector.extract_strided_slice %704 {offsets = [0, 9, 0], sizes = [1, 1, 16], strides = [1, 1, 1]} : vector<1x16x16xf32> to vector<1x1x16xf32>
    %733 = vector.shape_cast %732 : vector<1x1x16xf32> to vector<1x16xf32>
    %c0_272 = arith.constant 0 : index
    %c144 = arith.constant 144 : index
    %734 = vector.load %arg5[%c0_272, %c144] : memref<1x256xf32, #tpu.memory_space<vmem>>, vector<1x16xf32>
    tpu.vector_store %arg5[%c0_272, %c144], %733 {strides = array<i32>} : memref<1x256xf32, #tpu.memory_space<vmem>>, vector<1x16xf32>,
    %735 = vector.extract_strided_slice %704 {offsets = [0, 10, 0], sizes = [1, 1, 16], strides = [1, 1, 1]} : vector<1x16x16xf32> to vector<1x1x16xf32>
    %736 = vector.shape_cast %735 : vector<1x1x16xf32> to vector<1x16xf32>
    %c0_273 = arith.constant 0 : index
    %c160 = arith.constant 160 : index
    %737 = vector.load %arg5[%c0_273, %c160] : memref<1x256xf32, #tpu.memory_space<vmem>>, vector<1x16xf32>
    tpu.vector_store %arg5[%c0_273, %c160], %736 {strides = array<i32>} : memref<1x256xf32, #tpu.memory_space<vmem>>, vector<1x16xf32>,
    %738 = vector.extract_strided_slice %704 {offsets = [0, 11, 0], sizes = [1, 1, 16], strides = [1, 1, 1]} : vector<1x16x16xf32> to vector<1x1x16xf32>
    %739 = vector.shape_cast %738 : vector<1x1x16xf32> to vector<1x16xf32>
    %c0_274 = arith.constant 0 : index
    %c176 = arith.constant 176 : index
    %740 = vector.load %arg5[%c0_274, %c176] : memref<1x256xf32, #tpu.memory_space<vmem>>, vector<1x16xf32>
    tpu.vector_store %arg5[%c0_274, %c176], %739 {strides = array<i32>} : memref<1x256xf32, #tpu.memory_space<vmem>>, vector<1x16xf32>,
    %741 = vector.extract_strided_slice %704 {offsets = [0, 12, 0], sizes = [1, 1, 16], strides = [1, 1, 1]} : vector<1x16x16xf32> to vector<1x1x16xf32>
    %742 = vector.shape_cast %741 : vector<1x1x16xf32> to vector<1x16xf32>
    %c0_275 = arith.constant 0 : index
    %c192 = arith.constant 192 : index
    %743 = vector.load %arg5[%c0_275, %c192] : memref<1x256xf32, #tpu.memory_space<vmem>>, vector<1x16xf32>
    tpu.vector_store %arg5[%c0_275, %c192], %742 {strides = array<i32>} : memref<1x256xf32, #tpu.memory_space<vmem>>, vector<1x16xf32>,
    %744 = vector.extract_strided_slice %704 {offsets = [0, 13, 0], sizes = [1, 1, 16], strides = [1, 1, 1]} : vector<1x16x16xf32> to vector<1x1x16xf32>
    %745 = vector.shape_cast %744 : vector<1x1x16xf32> to vector<1x16xf32>
    %c0_276 = arith.constant 0 : index
    %c208 = arith.constant 208 : index
    %746 = vector.load %arg5[%c0_276, %c208] : memref<1x256xf32, #tpu.memory_space<vmem>>, vector<1x16xf32>
    tpu.vector_store %arg5[%c0_276, %c208], %745 {strides = array<i32>} : memref<1x256xf32, #tpu.memory_space<vmem>>, vector<1x16xf32>,
    %747 = vector.extract_strided_slice %704 {offsets = [0, 14, 0], sizes = [1, 1, 16], strides = [1, 1, 1]} : vector<1x16x16xf32> to vector<1x1x16xf32>
    %748 = vector.shape_cast %747 : vector<1x1x16xf32> to vector<1x16xf32>
    %c0_277 = arith.constant 0 : index
    %c224 = arith.constant 224 : index
    %749 = vector.load %arg5[%c0_277, %c224] : memref<1x256xf32, #tpu.memory_space<vmem>>, vector<1x16xf32>
    tpu.vector_store %arg5[%c0_277, %c224], %748 {strides = array<i32>} : memref<1x256xf32, #tpu.memory_space<vmem>>, vector<1x16xf32>,
    %750 = vector.extract_strided_slice %704 {offsets = [0, 15, 0], sizes = [1, 1, 16], strides = [1, 1, 1]} : vector<1x16x16xf32> to vector<1x1x16xf32>
    %751 = vector.shape_cast %750 : vector<1x1x16xf32> to vector<1x16xf32>
    %c0_278 = arith.constant 0 : index
    %c240 = arith.constant 240 : index
    %752 = vector.load %arg5[%c0_278, %c240] : memref<1x256xf32, #tpu.memory_space<vmem>>, vector<1x16xf32>
    tpu.vector_store %arg5[%c0_278, %c240], %751 {strides = array<i32>} : memref<1x256xf32, #tpu.memory_space<vmem>>, vector<1x16xf32>,
    %c0_279 = arith.constant 0 : index
    %c0_280 = arith.constant 0 : index
    %753 = vector.load %arg5[%c0_279, %c0_280] : memref<1x256xf32, #tpu.memory_space<vmem>>, vector<1x256xf32>
    %c0_281 = arith.constant 0 : index
    %c0_282 = arith.constant 0 : index
    %c0_283 = arith.constant 0 : index
    %754 = vector.load %arg1[%c0_281, %c0_282, %c0_283] : memref<1x4x256xf32, #tpu.memory_space<vmem>>, vector<1x4x256xf32>
    %755 = vector.shape_cast %753 : vector<1x256xf32> to vector<1x1x256xf32>
    %756 = vector.broadcast %755 : vector<1x1x256xf32> to vector<1x4x256xf32>
    %757 = arith.mulf %754, %756 : vector<1x4x256xf32>
    %c0_284 = arith.constant 0 : index
    %c0_285 = arith.constant 0 : index
    %c0_286 = arith.constant 0 : index
    %758 = vector.load %arg3[%c0_284, %c0_285, %c0_286] : memref<1x4x256xf32, #tpu.memory_space<vmem>>, vector<1x4x256xf32>
    tpu.vector_store %arg3[%c0_284, %c0_285, %c0_286], %757 {strides = array<i32>} : memref<1x4x256xf32, #tpu.memory_space<vmem>>, vector<1x4x256xf32>,
    return
  }
  func.func @transform_0(%arg0: i32) -> (i32, i32, i32) {
    %c0_i32 = arith.constant 0 : i32
    %c0_i32_0 = arith.constant 0 : i32
    %c0_i32_1 = arith.constant 0 : i32
    return %arg0, %c0_i32, %c0_i32_0 : i32, i32, i32
  }
  func.func @transform_1(%arg0: i32) -> i32 {
    %c0_i32 = arith.constant 0 : i32
    %c0_i32_0 = arith.constant 0 : i32
    return %c0_i32 : i32
  }
  func.func @transform_2(%arg0: i32) -> (i32, i32, i32) {
    %c0_i32 = arith.constant 0 : i32
    %c0_i32_0 = arith.constant 0 : i32
    %c0_i32_1 = arith.constant 0 : i32
    return %arg0, %c0_i32, %c0_i32_0 : i32, i32, i32
  }
}

</mosaic_0001>

<llo_original>
// kernel: tpu_custom_call.1
$region0: #{tpu_custom_call.1}
  #allocation0 [shape = 'u32[]', space=smem, size = 0x4, offset = 0x4, fixed_abs, tag = 'smem constant byte address 0x4 - core index']
  #allocation1 [shape = 'u32[144,128]{1,0:T(1,128)}', space=vmem, size = 0x12000, scoped, tag = 'internal scratch']
  #allocation2 [shape = 'f32[2,1,22,128]{3,2,1,0:T(8,128)}', space=vmem, size = 0x6000, scoped, tag = 'scratch operand']
  #allocation3 [shape = 'f32[1,256]{1,0:T(1,128)}', space=vmem, size = 0x400, scoped, tag = 'scratch operand']
  %s0 = inlined_call_operand.hbm [shape: f32[2,4,256], index: 0, kind: input, shape index: {}]
  %s1 = inlined_call_operand.vmem [shape: f32[98], index: 1, kind: input, shape index: {}]
  %s2 = inlined_call_operand.hbm [shape: f32[2,4,256], index: 2, kind: output, shape index: {}]
  %s3 = sld [smem:[#allocation0]]
  $region49: #{tpu_custom_call.1} parent=0
    _
  %s5 = ssub.s32 1, %s3
  %s6 = scalar_select 0, %s5, %s3
  $region1: #{tpu_custom_call.1} parent=0
    #allocation4 [shape = 'u8[8192]{0}', space=vmem, size = 0x2000, scoped, tag = 'input window, operand 0']
    #allocation5 [shape = 's32[2]{0}', space=sflag, size = 0x8, scoped, tag = 'scoped memory for tpu_custom_call.1']
    #allocation6 [shape = 's32[2]{0}', space=sflag, size = 0x8, scoped, tag = 'scoped memory for tpu_custom_call.1']
    #allocation7 [shape = 's32[2]{0}', space=sflag, size = 0x8, scoped, tag = 'scoped memory for tpu_custom_call.1']
    #allocation8 [shape = 'u8[512]{0}', space=smem, size = 0x200, scoped, tag = 'input window, operand 1, single buffered']
    #allocation9 [shape = 'u8[8192]{0}', space=vmem, size = 0x2000, scoped, tag = 'output window, operand 0']
    %7 = vsyncpa [#allocation5], 0
    %s8 = scalar_lea.sflag [#allocation5], 1
    %9 = vsyncpa %s8, 0
    %10 = vsyncpa [#allocation7], 0
    %11 = vsyncpa [#allocation6], 0
    %s12 = scalar_lea.sflag [#allocation6], 1
    %13 = vsyncpa %s12, 0
    loop: start=0, step=1, limit=4
    $region2: #{tpu_custom_call.1} parent=1 // loop_pre_header
      _
    $region3: #{tpu_custom_call.1} parent=1 // loop_header
      %s15 = sphi 0, %s19
      %p16 = scmp.ge.s32.totalorder %s15, 4
      %s25 = sphi 0, %s27
      %s28 = sphi 0, %s25
      %s29 = sphi 0, %s28
      %s45 = sphi 0, %s29
      %s49 = sphi 0, %s49
      %s51 = sphi 0, %s49
      %s52 = sphi 0, %s51
      %s66 = sphi 0, %s52
      %s72 = sphi 0, %s74
      %s75 = sphi 0, %s72
      %s76 = sphi 0, %s75
      %s92 = sphi 0, %s76
    $region4: #{tpu_custom_call.1} parent=1 // loop_header_branch
      %18 = sbr.rel (%p16) target = $region8
    $region5: #{tpu_custom_call.1} parent=1 // loop_body
      %s20 = ssub.s32 %s15, 1
      %s21 = ssub.s32 %s15, 2
      %s22 = sadd.s32 %s15, 1
      %s23 = ssub.s32 %s15, %s22
      %p24 = scmp.eq.s32.totalorder %s23, 0
      %s26 = sadd.s32 %s25, 1
      %s27 = scalar_select %p24, %s25, %s26
      %p30 = pneg %p24
      %p31 = scmp.eq.s32.totalorder %s15, 1
      %p32 = por %p30, %p31
      %p33 = scmp.ne.s32.totalorder %s25, %s28
      %p34 = scmp.eq.s32.totalorder %s15, 0
      %p35 = por %p33, %p34
      %p36 = scmp.ne.s32.totalorder %s25, %s28
      %p37 = scmp.eq.s32.totalorder %s20, 1
      %p38 = por %p36, %p37
      %p39 = scmp.ne.s32.totalorder %s28, %s29
      %p40 = scmp.eq.s32.totalorder %s20, 0
      %p41 = por %p39, %p40
      %p42 = scmp.ne.s32.totalorder %s28, %s29
      %p43 = scmp.eq.s32.totalorder %s21, 1
      %p44 = por %p42, %p43
      %p46 = scmp.ne.s32.totalorder %s29, %s45
      %p47 = scmp.eq.s32.totalorder %s21, 0
      %p48 = por %p46, %p47
      %s50 = sadd.s32 %s49, 1
      %p53 = scmp.eq.s32.totalorder %s15, 1
      %p54 = scmp.ne.s32.totalorder %s49, %s51
      %p55 = scmp.eq.s32.totalorder %s15, 0
      %p56 = por %p54, %p55
      %p57 = scmp.ne.s32.totalorder %s49, %s51
      %p58 = scmp.eq.s32.totalorder %s20, 1
      %p59 = por %p57, %p58
      %p60 = scmp.ne.s32.totalorder %s51, %s52
      %p61 = scmp.eq.s32.totalorder %s20, 0
      %p62 = por %p60, %p61
      %p63 = scmp.ne.s32.totalorder %s51, %s52
      %p64 = scmp.eq.s32.totalorder %s21, 1
      %p65 = por %p63, %p64
      %p67 = scmp.ne.s32.totalorder %s52, %s66
      %p68 = scmp.eq.s32.totalorder %s21, 0
      %p69 = por %p67, %p68
      %s70 = ssub.s32 %s15, %s22
      %p71 = scmp.eq.s32.totalorder %s70, 0
      %s73 = sadd.s32 %s72, 1
      %s74 = scalar_select %p71, %s72, %s73
      %p77 = pneg %p71
      %p78 = scmp.eq.s32.totalorder %s15, 1
      %p79 = por %p77, %p78
      %p80 = scmp.ne.s32.totalorder %s72, %s75
      %p81 = scmp.eq.s32.totalorder %s15, 0
      %p82 = por %p80, %p81
      %p83 = scmp.ne.s32.totalorder %s72, %s75
      %p84 = scmp.eq.s32.totalorder %s20, 1
      %p85 = por %p83, %p84
      %p86 = scmp.ne.s32.totalorder %s75, %s76
      %p87 = scmp.eq.s32.totalorder %s20, 0
      %p88 = por %p86, %p87
      %p89 = scmp.ne.s32.totalorder %s75, %s76
      %p90 = scmp.eq.s32.totalorder %s21, 1
      %p91 = por %p89, %p90
      %p93 = scmp.ne.s32.totalorder %s76, %s92
      %p94 = scmp.eq.s32.totalorder %s21, 0
      %p95 = por %p93, %p94
      %p96 = scmp.le.s32.totalorder 1, %s15
      %p97 = scmp.lt.s32.totalorder %s15, 3
      %p98 = pnand %p96, %p97
      %p99 = pneg %p98
      // Predicated region
      $region9: #{tpu_custom_call.1} parent=5 // pred_check
        _
      $region10: #{tpu_custom_call.1} parent=5 // pred_check_branch
        %101 = sbr.rel (%p98) target = $region12
      $region11: #{tpu_custom_call.1} parent=5 // pred_region
        %s102 = ssub.s32 %s15, 1
        // Predicated region
        $region13: #{tpu_custom_call.1} parent=11 // pred_check
          %p103 = pneg %p62
        $region14: #{tpu_custom_call.1} parent=11 // pred_check_branch
          %105 = sbr.rel (%p103) target = $region16
        $region15: #{tpu_custom_call.1} parent=11 // pred_region
          %s107 = ssub.s32 16, 16
          %108 = vsyncadd [#allocation7], %s107
          %s110 = sshll.u32 %s1, 4
          %s111 = int_to_ptr.vmem [resolvable:$true] %s110
          %113 = dma.vmem_to_smem %s111, 16, [#allocation8], [#allocation7]
        $region16: #{tpu_custom_call.1} parent=11 // pred_fallthru
          _
      $region12: #{tpu_custom_call.1} parent=5 // pred_fallthru
        _
      %p114 = scmp.lt.s32.totalorder %s15, 2
      // Predicated region
      $region17: #{tpu_custom_call.1} parent=5 // pred_check
        %p115 = pneg %p114
      $region18: #{tpu_custom_call.1} parent=5 // pred_check_branch
        %117 = sbr.rel (%p115) target = $region20
      $region19: #{tpu_custom_call.1} parent=5 // pred_region
        // Predicated region
        $region21: #{tpu_custom_call.1} parent=19 // pred_check
          %p118 = pneg %p35
        $region22: #{tpu_custom_call.1} parent=19 // pred_check_branch
          %120 = sbr.rel (%p118) target = $region24
        $region23: #{tpu_custom_call.1} parent=19 // pred_region
          %s121 = sand.u32 %s25, 1
          %s122 = scalar_lea.sflag [#allocation5], %s121
          %s123 = sand.u32 %s25, 1
          %s124 = smul.addr %s123, 8
          %s125 = scalar_lea.vmem [#allocation4], %s124
          %s127 = ssub.s32 128, 128
          %128 = vsyncadd %s122, %s127
          %s129 = smul.addr %s15, 2
          %s130 = smul.addr %s129, 64
          %s131 = scalar_lea.hbm %s0, %s130
          %s133 = sshll.u32 %s125, 4
          %s134 = int_to_ptr.vmem [resolvable:$true] %s133
          %136 = dma.hbm_to_vmem [thread:$0]  %s131, 128, %s134, %s122
        $region24: #{tpu_custom_call.1} parent=19 // pred_fallthru
          _
      $region20: #{tpu_custom_call.1} parent=5 // pred_fallthru
        _
      %p137 = scmp.le.s32.totalorder 1, %s15
      %p138 = scmp.lt.s32.totalorder %s15, 3
      %p139 = pnand %p137, %p138
      %p140 = pneg %p139
      // Predicated region
      $region25: #{tpu_custom_call.1} parent=5 // pred_check
        _
      $region26: #{tpu_custom_call.1} parent=5 // pred_check_branch
        %142 = sbr.rel (%p139) target = $region28
      $region27: #{tpu_custom_call.1} parent=5 // pred_region
        %s143 = ssub.s32 %s15, 1
        %s144 = sand.u32 %s28, 1
        %s145 = scalar_lea.sflag [#allocation5], %s144
        %s146 = sand.u32 %s28, 1
        %s147 = smul.addr %s146, 8
        %s148 = scalar_lea.vmem [#allocation4], %s147
        // Predicated region
        $region29: #{tpu_custom_call.1} parent=27 // pred_check
          %p149 = pneg %p41
        $region30: #{tpu_custom_call.1} parent=27 // pred_check_branch
          %151 = sbr.rel (%p149) target = $region32
        $region31: #{tpu_custom_call.1} parent=27 // pred_region
          %152 = dma.done %s145, 128
        $region32: #{tpu_custom_call.1} parent=27 // pred_fallthru
          _
        // Predicated region
        $region33: #{tpu_custom_call.1} parent=27 // pred_check
          %p153 = pneg %p62
        $region34: #{tpu_custom_call.1} parent=27 // pred_check_branch
          %155 = sbr.rel (%p153) target = $region36
        $region35: #{tpu_custom_call.1} parent=27 // pred_region
          %156 = dma.done [#allocation7], 16
        $region36: #{tpu_custom_call.1} parent=27 // pred_fallthru
          _
        %157 = sfence
        %s158 = sand.u32 %s28, 1
        %s159 = scalar_lea.sflag [#allocation5], %s158
        %s160 = sand.u32 %s28, 1
        %s161 = smul.addr %s160, 8
        %s162 = scalar_lea.vmem [#allocation4], %s161
        %p163 = pneg %p41
        %p164 = pneg %p38
        %p165 = pneg %p62
        %p166 = pneg %p59
        %p167 = pneg %p88
        %p168 = pneg %p85
        %s169 = sand.u32 %s75, 1
        %s170 = scalar_lea.sflag [#allocation6], %s169
        %s171 = sand.u32 %s75, 1
        %s172 = smul.addr %s171, 8
        %s173 = scalar_lea.vmem [#allocation9], %s172
        %v174 = vld [vmem:[%s148] sm:$0xff]
        %v176 = vcombine.high %v174, %v174
        %vm178 = vcmask 1043456
        %v179 = vsel %vm178, %v174, 0.0
        %v180 = vrot.slane %v179, 4
        %v181 = vadd.f32 %v179, %v180
        %v182 = vrot.slane %v181, 2
        %v183 = vadd.f32 %v181, %v182
        %v184 = vrot.slane %v183, 1
        %v185 = vadd.f32 %v183, %v184
        %v186 = vsel %vm178, %v176, 0.0
        %v187 = vrot.slane %v186, 4
        %v188 = vadd.f32 %v186, %v187
        %v189 = vrot.slane %v188, 2
        %v190 = vadd.f32 %v188, %v189
        %v191 = vrot.slane %v190, 1
        %v192 = vadd.f32 %v190, %v191
        %v193 = vmul.f32 %v185, 0.25
        %v194 = vmul.f32 %v192, 0.25
        %v195 = vsel %vm178, %v174, -inf
        %v196 = vrot.slane %v195, 4
        %v197 = vmax.f32 %v195, %v196
        %v198 = vrot.slane %v197, 2
        %v199 = vmax.f32 %v197, %v198
        %v200 = vrot.slane %v199, 1
        %v201 = vmax.f32 %v199, %v200
        %v202 = vsel %vm178, %v176, -inf
        %v203 = vrot.slane %v202, 4
        %v204 = vmax.f32 %v202, %v203
        %v205 = vrot.slane %v204, 2
        %v206 = vmax.f32 %v204, %v205
        %v207 = vrot.slane %v206, 1
        %v208 = vmax.f32 %v206, %v207
        %vm209 = vcmask 23552
        %210 = vst.msk [vmem:[#allocation2] sm:$0xff] %vm209, 0.0
        %211 = vst.msk [vmem:[#allocation2 + $0x8] sm:$0xff] %vm209, 0.0
        %vm212 = vcmask 21504
        %213 = vst.msk [vmem:[#allocation2 + $0x10] sm:$0x3f] %vm212, 0.0
        %vm214 = vcmask 179352
        %215 = vst.msk [vmem:[#allocation2] sm:$0xff] %vm214, 0.0
        %216 = vst.msk [vmem:[#allocation2 + $0x8] sm:$0xff] %vm214, 0.0
        %vm217 = vcmask 177304
        %218 = vst.msk [vmem:[#allocation2 + $0x10] sm:$0x3f] %vm217, 0.0
        %vm219 = vcmask 172032
        %220 = vst.msk [vmem:[#allocation2] sm:$0x1] %vm219, 0.0
        %221 = vst.msk [vmem:[#allocation2 + $0x13] sm:$0x1] %vm219, 0.0
        %222 = vst.msk [vmem:[#allocation2 + $0x1] sm:$0x1] %vm219, 0.0
        %223 = vst.msk [vmem:[#allocation2 + $0x14] sm:$0x1] %vm219, 0.0
        %224 = vst.msk [vmem:[#allocation2 + $0x2] sm:$0x1] %vm219, 0.0
        %225 = vst.msk [vmem:[#allocation2 + $0x15] sm:$0x1] %vm219, 0.0
        %s226 = scalar_lea.vmem [#allocation2], 24
        %227 = vst.msk [vmem:[%s226] sm:$0xff] %vm209, 0.0
        %228 = vst.msk [vmem:[%s226 + $0x8] sm:$0xff] %vm209, 0.0
        %229 = vst.msk [vmem:[%s226 + $0x10] sm:$0x3f] %vm212, 0.0
        %230 = vst.msk [vmem:[%s226] sm:$0xff] %vm214, 0.0
        %231 = vst.msk [vmem:[%s226 + $0x8] sm:$0xff] %vm214, 0.0
        %232 = vst.msk [vmem:[%s226 + $0x10] sm:$0x3f] %vm217, 0.0
        %233 = vst.msk [vmem:[%s226] sm:$0x1] %vm219, 0.0
        %234 = vst.msk [vmem:[%s226 + $0x13] sm:$0x1] %vm219, 0.0
        %235 = vst.msk [vmem:[%s226 + $0x1] sm:$0x1] %vm219, 0.0
        %236 = vst.msk [vmem:[%s226 + $0x14] sm:$0x1] %vm219, 0.0
        %237 = vst.msk [vmem:[%s226 + $0x2] sm:$0x1] %vm219, 0.0
        %238 = vst.msk [vmem:[%s226 + $0x15] sm:$0x1] %vm219, 0.0
        %240 = vrot.lane.b32.xlu0 %v193, 3
        %v241 = vpop.permute.xlu0 %240
        %vm243 = vcmask 147480
        %244 = vst.msk [vmem:[#allocation2 + $0x3] sm:$0x1] %vm243, %v241
        %246 = vrot.lane.b32.xlu0 %v201, 3
        %v247 = vpop.permute.xlu0 %246
        %249 = vst.msk [vmem:[%s226 + $0x3] sm:$0x1] %vm243, %v247
        %250 = vrot.lane.b32.xlu0 %v193, 115
        %v251 = vpop.permute.xlu0 %250
        %253 = vst.msk [vmem:[#allocation2 + $0x4] sm:$0x1] %vm243, %v251
        %254 = vrot.lane.b32.xlu0 %v201, 115
        %v255 = vpop.permute.xlu0 %254
        %257 = vst.msk [vmem:[%s226 + $0x4] sm:$0x1] %vm243, %v255
        %258 = vrot.lane.b32.xlu0 %v193, 99
        %v259 = vpop.permute.xlu0 %258
        %261 = vst.msk [vmem:[#allocation2 + $0x5] sm:$0x1] %vm243, %v259
        %262 = vrot.lane.b32.xlu0 %v201, 99
        %v263 = vpop.permute.xlu0 %262
        %265 = vst.msk [vmem:[%s226 + $0x5] sm:$0x1] %vm243, %v263
        %266 = vrot.lane.b32.xlu0 %v193, 83
        %v267 = vpop.permute.xlu0 %266
        %269 = vst.msk [vmem:[#allocation2 + $0x6] sm:$0x1] %vm243, %v267
        %270 = vrot.lane.b32.xlu0 %v201, 83
        %v271 = vpop.permute.xlu0 %270
        %273 = vst.msk [vmem:[%s226 + $0x6] sm:$0x1] %vm243, %v271
        %274 = vrot.lane.b32.xlu0 %v193, 67
        %v275 = vpop.permute.xlu0 %274
        %277 = vst.msk [vmem:[#allocation2 + $0x7] sm:$0x1] %vm243, %v275
        %278 = vrot.lane.b32.xlu0 %v201, 67
        %v279 = vpop.permute.xlu0 %278
        %281 = vst.msk [vmem:[%s226 + $0x7] sm:$0x1] %vm243, %v279
        %282 = vrot.lane.b32.xlu0 %v193, 51
        %v283 = vpop.permute.xlu0 %282
        %285 = vst.msk [vmem:[#allocation2 + $0x8] sm:$0x1] %vm243, %v283
        %286 = vrot.lane.b32.xlu0 %v201, 51
        %v287 = vpop.permute.xlu0 %286
        %289 = vst.msk [vmem:[%s226 + $0x8] sm:$0x1] %vm243, %v287
        %290 = vrot.lane.b32.xlu0 %v193, 35
        %v291 = vpop.permute.xlu0 %290
        %293 = vst.msk [vmem:[#allocation2 + $0x9] sm:$0x1] %vm243, %v291
        %294 = vrot.lane.b32.xlu0 %v201, 35
        %v295 = vpop.permute.xlu0 %294
        %297 = vst.msk [vmem:[%s226 + $0x9] sm:$0x1] %vm243, %v295
        %298 = vrot.lane.b32.xlu0 %v193, 19
        %v299 = vpop.permute.xlu0 %298
        %301 = vst.msk [vmem:[#allocation2 + $0xa] sm:$0x1] %vm243, %v299
        %302 = vrot.lane.b32.xlu0 %v201, 19
        %v303 = vpop.permute.xlu0 %302
        %305 = vst.msk [vmem:[%s226 + $0xa] sm:$0x1] %vm243, %v303
        %307 = vrot.lane.b32.xlu0 %v194, 3
        %v308 = vpop.permute.xlu0 %307
        %310 = vst.msk [vmem:[#allocation2 + $0xb] sm:$0x1] %vm243, %v308
        %312 = vrot.lane.b32.xlu0 %v208, 3
        %v313 = vpop.permute.xlu0 %312
        %315 = vst.msk [vmem:[%s226 + $0xb] sm:$0x1] %vm243, %v313
        %316 = vrot.lane.b32.xlu0 %v194, 115
        %v317 = vpop.permute.xlu0 %316
        %319 = vst.msk [vmem:[#allocation2 + $0xc] sm:$0x1] %vm243, %v317
        %320 = vrot.lane.b32.xlu0 %v208, 115
        %v321 = vpop.permute.xlu0 %320
        %323 = vst.msk [vmem:[%s226 + $0xc] sm:$0x1] %vm243, %v321
        %324 = vrot.lane.b32.xlu0 %v194, 99
        %v325 = vpop.permute.xlu0 %324
        %327 = vst.msk [vmem:[#allocation2 + $0xd] sm:$0x1] %vm243, %v325
        %328 = vrot.lane.b32.xlu0 %v208, 99
        %v329 = vpop.permute.xlu0 %328
        %331 = vst.msk [vmem:[%s226 + $0xd] sm:$0x1] %vm243, %v329
        %332 = vrot.lane.b32.xlu0 %v194, 83
        %v333 = vpop.permute.xlu0 %332
        %335 = vst.msk [vmem:[#allocation2 + $0xe] sm:$0x1] %vm243, %v333
        %336 = vrot.lane.b32.xlu0 %v208, 83
        %v337 = vpop.permute.xlu0 %336
        %339 = vst.msk [vmem:[%s226 + $0xe] sm:$0x1] %vm243, %v337
        %340 = vrot.lane.b32.xlu0 %v194, 67
        %v341 = vpop.permute.xlu0 %340
        %343 = vst.msk [vmem:[#allocation2 + $0xf] sm:$0x1] %vm243, %v341
        %344 = vrot.lane.b32.xlu0 %v208, 67
        %v345 = vpop.permute.xlu0 %344
        %347 = vst.msk [vmem:[%s226 + $0xf] sm:$0x1] %vm243, %v345
        %348 = vrot.lane.b32.xlu0 %v194, 51
        %v349 = vpop.permute.xlu0 %348
        %351 = vst.msk [vmem:[#allocation2 + $0x10] sm:$0x1] %vm243, %v349
        %352 = vrot.lane.b32.xlu0 %v208, 51
        %v353 = vpop.permute.xlu0 %352
        %355 = vst.msk [vmem:[%s226 + $0x10] sm:$0x1] %vm243, %v353
        %356 = vrot.lane.b32.xlu0 %v194, 35
        %v357 = vpop.permute.xlu0 %356
        %359 = vst.msk [vmem:[#allocation2 + $0x11] sm:$0x1] %vm243, %v357
        %360 = vrot.lane.b32.xlu0 %v208, 35
        %v361 = vpop.permute.xlu0 %360
        %363 = vst.msk [vmem:[%s226 + $0x11] sm:$0x1] %vm243, %v361
        %364 = vrot.lane.b32.xlu0 %v194, 19
        %v365 = vpop.permute.xlu0 %364
        %367 = vst.msk [vmem:[#allocation2 + $0x12] sm:$0x1] %vm243, %v365
        %368 = vrot.lane.b32.xlu0 %v208, 19
        %v369 = vpop.permute.xlu0 %368
        %371 = vst.msk [vmem:[%s226 + $0x12] sm:$0x1] %vm243, %v369
        %v372 = vld [vmem:[#allocation2] sm:$0xff]
        %v373 = vld [vmem:[#allocation2 + $0x8] sm:$0xff]
        %v374 = vld [vmem:[#allocation2 + $0x10] sm:$0x3f]
        %s375 = sld [smem:[#allocation8]]
        %v376 = vstv %s375
        %v377 = vmul.f32 %v376, %v372
        %v378 = vmul.f32 %v376, %v373
        %s379 = sld [smem:[#allocation8 + $0x7]]
        %v380 = vstv %s379
        %v381 = vmul.f32 %v380, %v372
        %v382 = vmul.f32 %v380, %v373
        %v383 = vmul.f32 %v380, %v374
        %s384 = sld [smem:[#allocation8 + $0xe]]
        %v385 = vstv %s384
        %v386 = vmul.f32 %v385, %v372
        %v387 = vmul.f32 %v385, %v373
        %v388 = vmul.f32 %v385, %v374
        %s389 = sld [smem:[#allocation8 + $0x15]]
        %v390 = vstv %s389
        %v391 = vmul.f32 %v390, %v372
        %v392 = vmul.f32 %v390, %v373
        %v393 = vmul.f32 %v390, %v374
        %s394 = sld [smem:[#allocation8 + $0x1c]]
        %v395 = vstv %s394
        %v396 = vmul.f32 %v395, %v372
        %v397 = vmul.f32 %v395, %v373
        %v398 = vmul.f32 %v395, %v374
        %v402 = vrot.slane %v396, 4
        %v403 = vrot.slane %v397, 4
        %v404 = vsel %vm178, %v402, %v403
        %v405 = vrot.slane %v398, 4
        %v406 = vsel %vm178, %v403, %v405
        %v409 = vadd.f32 %v377, %v404
        %v410 = vadd.f32 %v378, %v406
        %s411 = sld [smem:[#allocation8 + $0x23]]
        %v412 = vstv %s411
        %v413 = vmul.f32 %v412, %v372
        %v414 = vmul.f32 %v412, %v373
        %v415 = vmul.f32 %v412, %v374
        %v419 = vrot.slane %v413, 4
        %v420 = vrot.slane %v414, 4
        %v421 = vsel %vm178, %v419, %v420
        %v422 = vrot.slane %v415, 4
        %v423 = vsel %vm178, %v420, %v422
        %v427 = vadd.f32 %v381, %v421
        %v428 = vadd.f32 %v382, %v423
        %v429 = vadd.f32 %v383, %v422
        %s430 = sld [smem:[#allocation8 + $0x2a]]
        %v431 = vstv %s430
        %v432 = vmul.f32 %v431, %v372
        %v433 = vmul.f32 %v431, %v373
        %v434 = vmul.f32 %v431, %v374
        %v438 = vrot.slane %v432, 4
        %v439 = vrot.slane %v433, 4
        %v440 = vsel %vm178, %v438, %v439
        %v441 = vrot.slane %v434, 4
        %v442 = vsel %vm178, %v439, %v441
        %v446 = vadd.f32 %v386, %v440
        %v447 = vadd.f32 %v387, %v442
        %v448 = vadd.f32 %v388, %v441
        %s449 = sld [smem:[#allocation8 + $0x1]]
        %v450 = vstv %s449
        %v451 = vmul.f32 %v450, %v372
        %v452 = vmul.f32 %v450, %v373
        %vm455 = vcmask 1042432
        %v456 = vrot.slane %v451, 5
        %v457 = vrot.slane %v452, 5
        %v458 = vsel %vm455, %v456, %v457
        %459 = vrot.lane.b32.xlu0 %v456, 127
        %v460 = vpop.permute.xlu0 %459
        %461 = vrot.lane.b32.xlu0 %v458, 127
        %v462 = vpop.permute.xlu0 %461
        %463 = vrot.lane.b32.xlu0 %v457, 127
        %v464 = vpop.permute.xlu0 %463
        %v468 = vadd.f32 %v391, %v460
        %v469 = vadd.f32 %v392, %v462
        %v470 = vadd.f32 %v393, %v464
        %s471 = sld [smem:[#allocation8 + $0x8]]
        %v472 = vstv %s471
        %v473 = vmul.f32 %v472, %v372
        %v474 = vmul.f32 %v472, %v373
        %v475 = vmul.f32 %v472, %v374
        %vm479 = vcmask 1046528
        %v480 = vrot.slane %v473, 1
        %v481 = vrot.slane %v474, 1
        %v482 = vsel %vm479, %v480, %v481
        %v483 = vrot.slane %v475, 1
        %v484 = vsel %vm479, %v481, %v483
        %485 = vrot.lane.b32.xlu0 %v482, 127
        %v486 = vpop.permute.xlu0 %485
        %487 = vrot.lane.b32.xlu0 %v484, 127
        %v488 = vpop.permute.xlu0 %487
        %v491 = vadd.f32 %v409, %v486
        %v492 = vadd.f32 %v410, %v488
        %s493 = sld [smem:[#allocation8 + $0xf]]
        %v494 = vstv %s493
        %v495 = vmul.f32 %v494, %v372
        %v496 = vmul.f32 %v494, %v373
        %v497 = vmul.f32 %v494, %v374
        %v501 = vrot.slane %v495, 1
        %v502 = vrot.slane %v496, 1
        %v503 = vsel %vm479, %v501, %v502
        %v504 = vrot.slane %v497, 1
        %v505 = vsel %vm479, %v502, %v504
        %506 = vrot.lane.b32.xlu0 %v503, 127
        %v507 = vpop.permute.xlu0 %506
        %508 = vrot.lane.b32.xlu0 %v505, 127
        %v509 = vpop.permute.xlu0 %508
        %510 = vrot.lane.b32.xlu0 %v504, 127
        %v511 = vpop.permute.xlu0 %510
        %v515 = vadd.f32 %v427, %v507
        %v516 = vadd.f32 %v428, %v509
        %v517 = vadd.f32 %v429, %v511
        %s518 = sld [smem:[#allocation8 + $0x16]]
        %v519 = vstv %s518
        %v520 = vmul.f32 %v519, %v372
        %v521 = vmul.f32 %v519, %v373
        %v522 = vmul.f32 %v519, %v374
        %v526 = vrot.slane %v520, 1
        %v527 = vrot.slane %v521, 1
        %v528 = vsel %vm479, %v526, %v527
        %v529 = vrot.slane %v522, 1
        %v530 = vsel %vm479, %v527, %v529
        %531 = vrot.lane.b32.xlu0 %v528, 127
        %v532 = vpop.permute.xlu0 %531
        %533 = vrot.lane.b32.xlu0 %v530, 127
        %v534 = vpop.permute.xlu0 %533
        %535 = vrot.lane.b32.xlu0 %v529, 127
        %v536 = vpop.permute.xlu0 %535
        %v540 = vadd.f32 %v446, %v532
        %v541 = vadd.f32 %v447, %v534
        %v542 = vadd.f32 %v448, %v536
        %s543 = sld [smem:[#allocation8 + $0x1d]]
        %v544 = vstv %s543
        %v545 = vmul.f32 %v544, %v372
        %v546 = vmul.f32 %v544, %v373
        %v547 = vmul.f32 %v544, %v374
        %v551 = vrot.slane %v545, 1
        %v552 = vrot.slane %v546, 1
        %v553 = vsel %vm479, %v551, %v552
        %v554 = vrot.slane %v547, 1
        %v555 = vsel %vm479, %v552, %v554
        %556 = vrot.lane.b32.xlu0 %v553, 127
        %v557 = vpop.permute.xlu0 %556
        %558 = vrot.lane.b32.xlu0 %v555, 127
        %v559 = vpop.permute.xlu0 %558
        %560 = vrot.lane.b32.xlu0 %v554, 127
        %v561 = vpop.permute.xlu0 %560
        %v565 = vadd.f32 %v468, %v557
        %v566 = vadd.f32 %v469, %v559
        %v567 = vadd.f32 %v470, %v561
        %s568 = sld [smem:[#allocation8 + $0x24]]
        %v569 = vstv %s568
        %v570 = vmul.f32 %v569, %v372
        %v571 = vmul.f32 %v569, %v373
        %v572 = vmul.f32 %v569, %v374
        %v576 = vrot.slane %v570, 5
        %v577 = vrot.slane %v571, 5
        %v578 = vsel %vm455, %v576, %v577
        %v579 = vrot.slane %v572, 5
        %v580 = vsel %vm455, %v577, %v579
        %581 = vrot.lane.b32.xlu0 %v578, 127
        %v582 = vpop.permute.xlu0 %581
        %583 = vrot.lane.b32.xlu0 %v580, 127
        %v584 = vpop.permute.xlu0 %583
        %v587 = vadd.f32 %v491, %v582
        %v588 = vadd.f32 %v492, %v584
        %s589 = sld [smem:[#allocation8 + $0x2b]]
        %v590 = vstv %s589
        %v591 = vmul.f32 %v590, %v372
        %v592 = vmul.f32 %v590, %v373
        %v593 = vmul.f32 %v590, %v374
        %v597 = vrot.slane %v591, 5
        %v598 = vrot.slane %v592, 5
        %v599 = vsel %vm455, %v597, %v598
        %v600 = vrot.slane %v593, 5
        %v601 = vsel %vm455, %v598, %v600
        %602 = vrot.lane.b32.xlu0 %v599, 127
        %v603 = vpop.permute.xlu0 %602
        %604 = vrot.lane.b32.xlu0 %v601, 127
        %v605 = vpop.permute.xlu0 %604
        %606 = vrot.lane.b32.xlu0 %v600, 127
        %v607 = vpop.permute.xlu0 %606
        %v611 = vadd.f32 %v515, %v603
        %v612 = vadd.f32 %v516, %v605
        %v613 = vadd.f32 %v517, %v607
        %s614 = sld [smem:[#allocation8 + $0x2]]
        %v615 = vstv %s614
        %v616 = vmul.f32 %v615, %v372
        %v617 = vmul.f32 %v615, %v373
        %vm620 = vcmask 1041408
        %v621 = vrot.slane %v616, 6
        %v622 = vrot.slane %v617, 6
        %v623 = vsel %vm620, %v621, %v622
        %624 = vrot.lane.b32.xlu0 %v621, 126
        %v625 = vpop.permute.xlu0 %624
        %626 = vrot.lane.b32.xlu0 %v623, 126
        %v627 = vpop.permute.xlu0 %626
        %628 = vrot.lane.b32.xlu0 %v622, 126
        %v629 = vpop.permute.xlu0 %628
        %v633 = vadd.f32 %v540, %v625
        %v634 = vadd.f32 %v541, %v627
        %v635 = vadd.f32 %v542, %v629
        %s636 = sld [smem:[#allocation8 + $0x9]]
        %v637 = vstv %s636
        %v638 = vmul.f32 %v637, %v372
        %v639 = vmul.f32 %v637, %v373
        %v640 = vmul.f32 %v637, %v374
        %v644 = vrot.slane %v638, 6
        %v645 = vrot.slane %v639, 6
        %v646 = vsel %vm620, %v644, %v645
        %v647 = vrot.slane %v640, 6
        %v648 = vsel %vm620, %v645, %v647
        %649 = vrot.lane.b32.xlu0 %v644, 126
        %v650 = vpop.permute.xlu0 %649
        %651 = vrot.lane.b32.xlu0 %v646, 126
        %v652 = vpop.permute.xlu0 %651
        %653 = vrot.lane.b32.xlu0 %v648, 126
        %v654 = vpop.permute.xlu0 %653
        %v658 = vadd.f32 %v565, %v650
        %v659 = vadd.f32 %v566, %v652
        %v660 = vadd.f32 %v567, %v654
        %s661 = sld [smem:[#allocation8 + $0x10]]
        %v662 = vstv %s661
        %v663 = vmul.f32 %v662, %v372
        %v664 = vmul.f32 %v662, %v373
        %v665 = vmul.f32 %v662, %v374
        %vm669 = vcmask 1045504
        %v670 = vrot.slane %v663, 2
        %v671 = vrot.slane %v664, 2
        %v672 = vsel %vm669, %v670, %v671
        %v673 = vrot.slane %v665, 2
        %v674 = vsel %vm669, %v671, %v673
        %675 = vrot.lane.b32.xlu0 %v672, 126
        %v676 = vpop.permute.xlu0 %675
        %677 = vrot.lane.b32.xlu0 %v674, 126
        %v678 = vpop.permute.xlu0 %677
        %v681 = vadd.f32 %v587, %v676
        %v682 = vadd.f32 %v588, %v678
        %s683 = sld [smem:[#allocation8 + $0x17]]
        %v684 = vstv %s683
        %v685 = vmul.f32 %v684, %v372
        %v686 = vmul.f32 %v684, %v373
        %v687 = vmul.f32 %v684, %v374
        %v691 = vrot.slane %v685, 2
        %v692 = vrot.slane %v686, 2
        %v693 = vsel %vm669, %v691, %v692
        %v694 = vrot.slane %v687, 2
        %v695 = vsel %vm669, %v692, %v694
        %696 = vrot.lane.b32.xlu0 %v693, 126
        %v697 = vpop.permute.xlu0 %696
        %698 = vrot.lane.b32.xlu0 %v695, 126
        %v699 = vpop.permute.xlu0 %698
        %700 = vrot.lane.b32.xlu0 %v694, 126
        %v701 = vpop.permute.xlu0 %700
        %v705 = vadd.f32 %v611, %v697
        %v706 = vadd.f32 %v612, %v699
        %v707 = vadd.f32 %v613, %v701
        %s708 = sld [smem:[#allocation8 + $0x1e]]
        %v709 = vstv %s708
        %v710 = vmul.f32 %v709, %v372
        %v711 = vmul.f32 %v709, %v373
        %v712 = vmul.f32 %v709, %v374
        %v716 = vrot.slane %v710, 2
        %v717 = vrot.slane %v711, 2
        %v718 = vsel %vm669, %v716, %v717
        %v719 = vrot.slane %v712, 2
        %v720 = vsel %vm669, %v717, %v719
        %721 = vrot.lane.b32.xlu0 %v718, 126
        %v722 = vpop.permute.xlu0 %721
        %723 = vrot.lane.b32.xlu0 %v720, 126
        %v724 = vpop.permute.xlu0 %723
        %725 = vrot.lane.b32.xlu0 %v719, 126
        %v726 = vpop.permute.xlu0 %725
        %v730 = vadd.f32 %v633, %v722
        %v731 = vadd.f32 %v634, %v724
        %v732 = vadd.f32 %v635, %v726
        %s733 = sld [smem:[#allocation8 + $0x25]]
        %v734 = vstv %s733
        %v735 = vmul.f32 %v734, %v372
        %v736 = vmul.f32 %v734, %v373
        %v737 = vmul.f32 %v734, %v374
        %v741 = vrot.slane %v735, 2
        %v742 = vrot.slane %v736, 2
        %v743 = vsel %vm669, %v741, %v742
        %v744 = vrot.slane %v737, 2
        %v745 = vsel %vm669, %v742, %v744
        %746 = vrot.lane.b32.xlu0 %v743, 126
        %v747 = vpop.permute.xlu0 %746
        %748 = vrot.lane.b32.xlu0 %v745, 126
        %v749 = vpop.permute.xlu0 %748
        %750 = vrot.lane.b32.xlu0 %v744, 126
        %v751 = vpop.permute.xlu0 %750
        %v755 = vadd.f32 %v658, %v747
        %v756 = vadd.f32 %v659, %v749
        %v757 = vadd.f32 %v660, %v751
        %s758 = sld [smem:[#allocation8 + $0x2c]]
        %v759 = vstv %s758
        %v760 = vmul.f32 %v759, %v372
        %v761 = vmul.f32 %v759, %v373
        %v762 = vmul.f32 %v759, %v374
        %v766 = vrot.slane %v760, 6
        %v767 = vrot.slane %v761, 6
        %v768 = vsel %vm620, %v766, %v767
        %v769 = vrot.slane %v762, 6
        %v770 = vsel %vm620, %v767, %v769
        %771 = vrot.lane.b32.xlu0 %v768, 126
        %v772 = vpop.permute.xlu0 %771
        %773 = vrot.lane.b32.xlu0 %v770, 126
        %v774 = vpop.permute.xlu0 %773
        %v777 = vadd.f32 %v681, %v772
        %v778 = vadd.f32 %v682, %v774
        %s779 = sld [smem:[#allocation8 + $0x3]]
        %v780 = vstv %s779
        %v781 = vmul.f32 %v780, %v372
        %v782 = vmul.f32 %v780, %v373
        %vm785 = vcmask 1040384
        %v786 = vrot.slane %v781, 7
        %v787 = vrot.slane %v782, 7
        %v788 = vsel %vm785, %v786, %v787
        %789 = vrot.lane.b32.xlu0 %v786, 125
        %v790 = vpop.permute.xlu0 %789
        %791 = vrot.lane.b32.xlu0 %v788, 125
        %v792 = vpop.permute.xlu0 %791
        %793 = vrot.lane.b32.xlu0 %v787, 125
        %v794 = vpop.permute.xlu0 %793
        %v798 = vadd.f32 %v705, %v790
        %v799 = vadd.f32 %v706, %v792
        %v800 = vadd.f32 %v707, %v794
        %s801 = sld [smem:[#allocation8 + $0xa]]
        %v802 = vstv %s801
        %v803 = vmul.f32 %v802, %v372
        %v804 = vmul.f32 %v802, %v373
        %v805 = vmul.f32 %v802, %v374
        %v809 = vrot.slane %v803, 7
        %v810 = vrot.slane %v804, 7
        %v811 = vsel %vm785, %v809, %v810
        %v812 = vrot.slane %v805, 7
        %v813 = vsel %vm785, %v810, %v812
        %814 = vrot.lane.b32.xlu0 %v809, 125
        %v815 = vpop.permute.xlu0 %814
        %816 = vrot.lane.b32.xlu0 %v811, 125
        %v817 = vpop.permute.xlu0 %816
        %818 = vrot.lane.b32.xlu0 %v813, 125
        %v819 = vpop.permute.xlu0 %818
        %v823 = vadd.f32 %v730, %v815
        %v824 = vadd.f32 %v731, %v817
        %v825 = vadd.f32 %v732, %v819
        %s826 = sld [smem:[#allocation8 + $0x11]]
        %v827 = vstv %s826
        %v828 = vmul.f32 %v827, %v372
        %v829 = vmul.f32 %v827, %v373
        %v830 = vmul.f32 %v827, %v374
        %v834 = vrot.slane %v828, 7
        %v835 = vrot.slane %v829, 7
        %v836 = vsel %vm785, %v834, %v835
        %v837 = vrot.slane %v830, 7
        %v838 = vsel %vm785, %v835, %v837
        %839 = vrot.lane.b32.xlu0 %v834, 125
        %v840 = vpop.permute.xlu0 %839
        %841 = vrot.lane.b32.xlu0 %v836, 125
        %v842 = vpop.permute.xlu0 %841
        %843 = vrot.lane.b32.xlu0 %v838, 125
        %v844 = vpop.permute.xlu0 %843
        %v848 = vadd.f32 %v755, %v840
        %v849 = vadd.f32 %v756, %v842
        %v850 = vadd.f32 %v757, %v844
        %s851 = sld [smem:[#allocation8 + $0x18]]
        %v852 = vstv %s851
        %v853 = vmul.f32 %v852, %v372
        %v854 = vmul.f32 %v852, %v373
        %v855 = vmul.f32 %v852, %v374
        %vm859 = vcmask 1044480
        %v860 = vrot.slane %v853, 3
        %v861 = vrot.slane %v854, 3
        %v862 = vsel %vm859, %v860, %v861
        %v863 = vrot.slane %v855, 3
        %v864 = vsel %vm859, %v861, %v863
        %865 = vrot.lane.b32.xlu0 %v862, 125
        %v866 = vpop.permute.xlu0 %865
        %867 = vrot.lane.b32.xlu0 %v864, 125
        %v868 = vpop.permute.xlu0 %867
        %v871 = vadd.f32 %v777, %v866
        %v872 = vadd.f32 %v778, %v868
        %s873 = sld [smem:[#allocation8 + $0x1f]]
        %v874 = vstv %s873
        %v875 = vmul.f32 %v874, %v372
        %v876 = vmul.f32 %v874, %v373
        %v877 = vmul.f32 %v874, %v374
        %v881 = vrot.slane %v875, 3
        %v882 = vrot.slane %v876, 3
        %v883 = vsel %vm859, %v881, %v882
        %v884 = vrot.slane %v877, 3
        %v885 = vsel %vm859, %v882, %v884
        %886 = vrot.lane.b32.xlu0 %v883, 125
        %v887 = vpop.permute.xlu0 %886
        %888 = vrot.lane.b32.xlu0 %v885, 125
        %v889 = vpop.permute.xlu0 %888
        %890 = vrot.lane.b32.xlu0 %v884, 125
        %v891 = vpop.permute.xlu0 %890
        %v895 = vadd.f32 %v798, %v887
        %v896 = vadd.f32 %v799, %v889
        %v897 = vadd.f32 %v800, %v891
        %s898 = sld [smem:[#allocation8 + $0x26]]
        %v899 = vstv %s898
        %v900 = vmul.f32 %v899, %v372
        %v901 = vmul.f32 %v899, %v373
        %v902 = vmul.f32 %v899, %v374
        %v906 = vrot.slane %v900, 3
        %v907 = vrot.slane %v901, 3
        %v908 = vsel %vm859, %v906, %v907
        %v909 = vrot.slane %v902, 3
        %v910 = vsel %vm859, %v907, %v909
        %911 = vrot.lane.b32.xlu0 %v908, 125
        %v912 = vpop.permute.xlu0 %911
        %913 = vrot.lane.b32.xlu0 %v910, 125
        %v914 = vpop.permute.xlu0 %913
        %915 = vrot.lane.b32.xlu0 %v909, 125
        %v916 = vpop.permute.xlu0 %915
        %v920 = vadd.f32 %v823, %v912
        %v921 = vadd.f32 %v824, %v914
        %v922 = vadd.f32 %v825, %v916
        %s923 = sld [smem:[#allocation8 + $0x2d]]
        %v924 = vstv %s923
        %v925 = vmul.f32 %v924, %v372
        %v926 = vmul.f32 %v924, %v373
        %v927 = vmul.f32 %v924, %v374
        %v931 = vrot.slane %v925, 3
        %v932 = vrot.slane %v926, 3
        %v933 = vsel %vm859, %v931, %v932
        %v934 = vrot.slane %v927, 3
        %v935 = vsel %vm859, %v932, %v934
        %936 = vrot.lane.b32.xlu0 %v933, 125
        %v937 = vpop.permute.xlu0 %936
        %938 = vrot.lane.b32.xlu0 %v935, 125
        %v939 = vpop.permute.xlu0 %938
        %940 = vrot.lane.b32.xlu0 %v934, 125
        %v941 = vpop.permute.xlu0 %940
        %v945 = vadd.f32 %v848, %v937
        %v946 = vadd.f32 %v849, %v939
        %v947 = vadd.f32 %v850, %v941
        %s948 = sld [smem:[#allocation8 + $0x4]]
        %v949 = vstv %s948
        %v950 = vmul.f32 %v949, %v372
        %v951 = vmul.f32 %v949, %v373
        %954 = vrot.lane.b32.xlu0 %v950, 124
        %v955 = vpop.permute.xlu0 %954
        %956 = vrot.lane.b32.xlu0 %v951, 124
        %v957 = vpop.permute.xlu0 %956
        %v960 = vadd.f32 %v871, %v955
        %v961 = vadd.f32 %v872, %v957
        %s962 = sld [smem:[#allocation8 + $0xb]]
        %v963 = vstv %s962
        %v964 = vmul.f32 %v963, %v372
        %v965 = vmul.f32 %v963, %v373
        %v966 = vmul.f32 %v963, %v374
        %970 = vrot.lane.b32.xlu0 %v964, 124
        %v971 = vpop.permute.xlu0 %970
        %972 = vrot.lane.b32.xlu0 %v965, 124
        %v973 = vpop.permute.xlu0 %972
        %974 = vrot.lane.b32.xlu0 %v966, 124
        %v975 = vpop.permute.xlu0 %974
        %v979 = vadd.f32 %v895, %v971
        %v980 = vadd.f32 %v896, %v973
        %v981 = vadd.f32 %v897, %v975
        %s982 = sld [smem:[#allocation8 + $0x12]]
        %v983 = vstv %s982
        %v984 = vmul.f32 %v983, %v372
        %v985 = vmul.f32 %v983, %v373
        %v986 = vmul.f32 %v983, %v374
        %990 = vrot.lane.b32.xlu0 %v984, 124
        %v991 = vpop.permute.xlu0 %990
        %992 = vrot.lane.b32.xlu0 %v985, 124
        %v993 = vpop.permute.xlu0 %992
        %994 = vrot.lane.b32.xlu0 %v986, 124
        %v995 = vpop.permute.xlu0 %994
        %v999 = vadd.f32 %v920, %v991
        %v1000 = vadd.f32 %v921, %v993
        %v1001 = vadd.f32 %v922, %v995
        %s1002 = sld [smem:[#allocation8 + $0x19]]
        %v1003 = vstv %s1002
        %v1004 = vmul.f32 %v1003, %v372
        %v1005 = vmul.f32 %v1003, %v373
        %v1006 = vmul.f32 %v1003, %v374
        %1010 = vrot.lane.b32.xlu0 %v1004, 124
        %v1011 = vpop.permute.xlu0 %1010
        %1012 = vrot.lane.b32.xlu0 %v1005, 124
        %v1013 = vpop.permute.xlu0 %1012
        %1014 = vrot.lane.b32.xlu0 %v1006, 124
        %v1015 = vpop.permute.xlu0 %1014
        %v1019 = vadd.f32 %v945, %v1011
        %v1020 = vadd.f32 %v946, %v1013
        %v1021 = vadd.f32 %v947, %v1015
        %s1022 = sld [smem:[#allocation8 + $0x20]]
        %v1023 = vstv %s1022
        %v1024 = vmul.f32 %v1023, %v372
        %v1025 = vmul.f32 %v1023, %v373
        %v1026 = vmul.f32 %v1023, %v374
        %v1030 = vrot.slane %v1024, 4
        %v1031 = vrot.slane %v1025, 4
        %v1032 = vsel %vm178, %v1030, %v1031
        %v1033 = vrot.slane %v1026, 4
        %v1034 = vsel %vm178, %v1031, %v1033
        %1035 = vrot.lane.b32.xlu0 %v1032, 124
        %v1036 = vpop.permute.xlu0 %1035
        %1037 = vrot.lane.b32.xlu0 %v1034, 124
        %v1038 = vpop.permute.xlu0 %1037
        %v1041 = vadd.f32 %v960, %v1036
        %v1042 = vadd.f32 %v961, %v1038
        %s1043 = sld [smem:[#allocation8 + $0x27]]
        %v1044 = vstv %s1043
        %v1045 = vmul.f32 %v1044, %v372
        %v1046 = vmul.f32 %v1044, %v373
        %v1047 = vmul.f32 %v1044, %v374
        %v1051 = vrot.slane %v1045, 4
        %v1052 = vrot.slane %v1046, 4
        %v1053 = vsel %vm178, %v1051, %v1052
        %v1054 = vrot.slane %v1047, 4
        %v1055 = vsel %vm178, %v1052, %v1054
        %1056 = vrot.lane.b32.xlu0 %v1053, 124
        %v1057 = vpop.permute.xlu0 %1056
        %1058 = vrot.lane.b32.xlu0 %v1055, 124
        %v1059 = vpop.permute.xlu0 %1058
        %1060 = vrot.lane.b32.xlu0 %v1054, 124
        %v1061 = vpop.permute.xlu0 %1060
        %v1065 = vadd.f32 %v979, %v1057
        %v1066 = vadd.f32 %v980, %v1059
        %v1067 = vadd.f32 %v981, %v1061
        %s1068 = sld [smem:[#allocation8 + $0x2e]]
        %v1069 = vstv %s1068
        %v1070 = vmul.f32 %v1069, %v372
        %v1071 = vmul.f32 %v1069, %v373
        %v1072 = vmul.f32 %v1069, %v374
        %v1076 = vrot.slane %v1070, 4
        %v1077 = vrot.slane %v1071, 4
        %v1078 = vsel %vm178, %v1076, %v1077
        %v1079 = vrot.slane %v1072, 4
        %v1080 = vsel %vm178, %v1077, %v1079
        %1081 = vrot.lane.b32.xlu0 %v1078, 124
        %v1082 = vpop.permute.xlu0 %1081
        %1083 = vrot.lane.b32.xlu0 %v1080, 124
        %v1084 = vpop.permute.xlu0 %1083
        %1085 = vrot.lane.b32.xlu0 %v1079, 124
        %v1086 = vpop.permute.xlu0 %1085
        %v1090 = vadd.f32 %v999, %v1082
        %v1091 = vadd.f32 %v1000, %v1084
        %v1092 = vadd.f32 %v1001, %v1086
        %s1093 = sld [smem:[#allocation8 + $0x5]]
        %v1094 = vstv %s1093
        %v1095 = vmul.f32 %v1094, %v372
        %v1096 = vmul.f32 %v1094, %v373
        %v1099 = vrot.slane %v1095, 5
        %v1100 = vrot.slane %v1096, 5
        %v1101 = vsel %vm455, %v1099, %v1100
        %1102 = vrot.lane.b32.xlu0 %v1099, 123
        %v1103 = vpop.permute.xlu0 %1102
        %1104 = vrot.lane.b32.xlu0 %v1101, 123
        %v1105 = vpop.permute.xlu0 %1104
        %1106 = vrot.lane.b32.xlu0 %v1100, 123
        %v1107 = vpop.permute.xlu0 %1106
        %v1111 = vadd.f32 %v1019, %v1103
        %v1112 = vadd.f32 %v1020, %v1105
        %v1113 = vadd.f32 %v1021, %v1107
        %s1114 = sld [smem:[#allocation8 + $0xc]]
        %v1115 = vstv %s1114
        %v1116 = vmul.f32 %v1115, %v372
        %v1117 = vmul.f32 %v1115, %v373
        %v1118 = vmul.f32 %v1115, %v374
        %v1122 = vrot.slane %v1116, 1
        %v1123 = vrot.slane %v1117, 1
        %v1124 = vsel %vm479, %v1122, %v1123
        %v1125 = vrot.slane %v1118, 1
        %v1126 = vsel %vm479, %v1123, %v1125
        %1127 = vrot.lane.b32.xlu0 %v1124, 123
        %v1128 = vpop.permute.xlu0 %1127
        %1129 = vrot.lane.b32.xlu0 %v1126, 123
        %v1130 = vpop.permute.xlu0 %1129
        %v1133 = vadd.f32 %v1041, %v1128
        %v1134 = vadd.f32 %v1042, %v1130
        %s1135 = sld [smem:[#allocation8 + $0x13]]
        %v1136 = vstv %s1135
        %v1137 = vmul.f32 %v1136, %v372
        %v1138 = vmul.f32 %v1136, %v373
        %v1139 = vmul.f32 %v1136, %v374
        %v1143 = vrot.slane %v1137, 1
        %v1144 = vrot.slane %v1138, 1
        %v1145 = vsel %vm479, %v1143, %v1144
        %v1146 = vrot.slane %v1139, 1
        %v1147 = vsel %vm479, %v1144, %v1146
        %1148 = vrot.lane.b32.xlu0 %v1145, 123
        %v1149 = vpop.permute.xlu0 %1148
        %1150 = vrot.lane.b32.xlu0 %v1147, 123
        %v1151 = vpop.permute.xlu0 %1150
        %1152 = vrot.lane.b32.xlu0 %v1146, 123
        %v1153 = vpop.permute.xlu0 %1152
        %v1157 = vadd.f32 %v1065, %v1149
        %v1158 = vadd.f32 %v1066, %v1151
        %v1159 = vadd.f32 %v1067, %v1153
        %s1160 = sld [smem:[#allocation8 + $0x1a]]
        %v1161 = vstv %s1160
        %v1162 = vmul.f32 %v1161, %v372
        %v1163 = vmul.f32 %v1161, %v373
        %v1164 = vmul.f32 %v1161, %v374
        %v1168 = vrot.slane %v1162, 1
        %v1169 = vrot.slane %v1163, 1
        %v1170 = vsel %vm479, %v1168, %v1169
        %v1171 = vrot.slane %v1164, 1
        %v1172 = vsel %vm479, %v1169, %v1171
        %1173 = vrot.lane.b32.xlu0 %v1170, 123
        %v1174 = vpop.permute.xlu0 %1173
        %1175 = vrot.lane.b32.xlu0 %v1172, 123
        %v1176 = vpop.permute.xlu0 %1175
        %1177 = vrot.lane.b32.xlu0 %v1171, 123
        %v1178 = vpop.permute.xlu0 %1177
        %v1182 = vadd.f32 %v1090, %v1174
        %v1183 = vadd.f32 %v1091, %v1176
        %v1184 = vadd.f32 %v1092, %v1178
        %s1185 = sld [smem:[#allocation8 + $0x21]]
        %v1186 = vstv %s1185
        %v1187 = vmul.f32 %v1186, %v372
        %v1188 = vmul.f32 %v1186, %v373
        %v1189 = vmul.f32 %v1186, %v374
        %v1193 = vrot.slane %v1187, 1
        %v1194 = vrot.slane %v1188, 1
        %v1195 = vsel %vm479, %v1193, %v1194
        %v1196 = vrot.slane %v1189, 1
        %v1197 = vsel %vm479, %v1194, %v1196
        %1198 = vrot.lane.b32.xlu0 %v1195, 123
        %v1199 = vpop.permute.xlu0 %1198
        %1200 = vrot.lane.b32.xlu0 %v1197, 123
        %v1201 = vpop.permute.xlu0 %1200
        %1202 = vrot.lane.b32.xlu0 %v1196, 123
        %v1203 = vpop.permute.xlu0 %1202
        %v1207 = vadd.f32 %v1111, %v1199
        %v1208 = vadd.f32 %v1112, %v1201
        %v1209 = vadd.f32 %v1113, %v1203
        %s1210 = sld [smem:[#allocation8 + $0x28]]
        %v1211 = vstv %s1210
        %v1212 = vmul.f32 %v1211, %v372
        %v1213 = vmul.f32 %v1211, %v373
        %v1214 = vmul.f32 %v1211, %v374
        %v1218 = vrot.slane %v1212, 5
        %v1219 = vrot.slane %v1213, 5
        %v1220 = vsel %vm455, %v1218, %v1219
        %v1221 = vrot.slane %v1214, 5
        %v1222 = vsel %vm455, %v1219, %v1221
        %1223 = vrot.lane.b32.xlu0 %v1220, 123
        %v1224 = vpop.permute.xlu0 %1223
        %1225 = vrot.lane.b32.xlu0 %v1222, 123
        %v1226 = vpop.permute.xlu0 %1225
        %v1229 = vadd.f32 %v1133, %v1224
        %v1230 = vadd.f32 %v1134, %v1226
        %s1231 = sld [smem:[#allocation8 + $0x2f]]
        %v1232 = vstv %s1231
        %v1233 = vmul.f32 %v1232, %v372
        %v1234 = vmul.f32 %v1232, %v373
        %v1235 = vmul.f32 %v1232, %v374
        %v1239 = vrot.slane %v1233, 5
        %v1240 = vrot.slane %v1234, 5
        %v1241 = vsel %vm455, %v1239, %v1240
        %v1242 = vrot.slane %v1235, 5
        %v1243 = vsel %vm455, %v1240, %v1242
        %1244 = vrot.lane.b32.xlu0 %v1241, 123
        %v1245 = vpop.permute.xlu0 %1244
        %1246 = vrot.lane.b32.xlu0 %v1243, 123
        %v1247 = vpop.permute.xlu0 %1246
        %1248 = vrot.lane.b32.xlu0 %v1242, 123
        %v1249 = vpop.permute.xlu0 %1248
        %v1253 = vadd.f32 %v1157, %v1245
        %v1254 = vadd.f32 %v1158, %v1247
        %v1255 = vadd.f32 %v1159, %v1249
        %s1256 = sld [smem:[#allocation8 + $0x6]]
        %v1257 = vstv %s1256
        %v1258 = vmul.f32 %v1257, %v372
        %v1259 = vmul.f32 %v1257, %v373
        %v1262 = vrot.slane %v1258, 6
        %v1263 = vrot.slane %v1259, 6
        %v1264 = vsel %vm620, %v1262, %v1263
        %1265 = vrot.lane.b32.xlu0 %v1262, 122
        %v1266 = vpop.permute.xlu0 %1265
        %1267 = vrot.lane.b32.xlu0 %v1264, 122
        %v1268 = vpop.permute.xlu0 %1267
        %1269 = vrot.lane.b32.xlu0 %v1263, 122
        %v1270 = vpop.permute.xlu0 %1269
        %v1274 = vadd.f32 %v1182, %v1266
        %v1275 = vadd.f32 %v1183, %v1268
        %v1276 = vadd.f32 %v1184, %v1270
        %s1277 = sld [smem:[#allocation8 + $0xd]]
        %v1278 = vstv %s1277
        %v1279 = vmul.f32 %v1278, %v372
        %v1280 = vmul.f32 %v1278, %v373
        %v1281 = vmul.f32 %v1278, %v374
        %v1285 = vrot.slane %v1279, 6
        %v1286 = vrot.slane %v1280, 6
        %v1287 = vsel %vm620, %v1285, %v1286
        %v1288 = vrot.slane %v1281, 6
        %v1289 = vsel %vm620, %v1286, %v1288
        %1290 = vrot.lane.b32.xlu0 %v1285, 122
        %v1291 = vpop.permute.xlu0 %1290
        %1292 = vrot.lane.b32.xlu0 %v1287, 122
        %v1293 = vpop.permute.xlu0 %1292
        %1294 = vrot.lane.b32.xlu0 %v1289, 122
        %v1295 = vpop.permute.xlu0 %1294
        %v1299 = vadd.f32 %v1207, %v1291
        %v1300 = vadd.f32 %v1208, %v1293
        %v1301 = vadd.f32 %v1209, %v1295
        %s1302 = sld [smem:[#allocation8 + $0x14]]
        %v1303 = vstv %s1302
        %v1304 = vmul.f32 %v1303, %v372
        %v1305 = vmul.f32 %v1303, %v373
        %v1306 = vmul.f32 %v1303, %v374
        %v1310 = vrot.slane %v1304, 2
        %v1311 = vrot.slane %v1305, 2
        %v1312 = vsel %vm669, %v1310, %v1311
        %v1313 = vrot.slane %v1306, 2
        %v1314 = vsel %vm669, %v1311, %v1313
        %1315 = vrot.lane.b32.xlu0 %v1312, 122
        %v1316 = vpop.permute.xlu0 %1315
        %1317 = vrot.lane.b32.xlu0 %v1314, 122
        %v1318 = vpop.permute.xlu0 %1317
        %v1321 = vadd.f32 %v1229, %v1316
        %v1322 = vadd.f32 %v1230, %v1318
        %s1323 = sld [smem:[#allocation8 + $0x1b]]
        %v1324 = vstv %s1323
        %v1325 = vmul.f32 %v1324, %v372
        %v1326 = vmul.f32 %v1324, %v373
        %v1327 = vmul.f32 %v1324, %v374
        %v1331 = vrot.slane %v1325, 2
        %v1332 = vrot.slane %v1326, 2
        %v1333 = vsel %vm669, %v1331, %v1332
        %v1334 = vrot.slane %v1327, 2
        %v1335 = vsel %vm669, %v1332, %v1334
        %1336 = vrot.lane.b32.xlu0 %v1333, 122
        %v1337 = vpop.permute.xlu0 %1336
        %1338 = vrot.lane.b32.xlu0 %v1335, 122
        %v1339 = vpop.permute.xlu0 %1338
        %1340 = vrot.lane.b32.xlu0 %v1334, 122
        %v1341 = vpop.permute.xlu0 %1340
        %v1345 = vadd.f32 %v1253, %v1337
        %v1346 = vadd.f32 %v1254, %v1339
        %v1347 = vadd.f32 %v1255, %v1341
        %s1348 = sld [smem:[#allocation8 + $0x22]]
        %v1349 = vstv %s1348
        %v1350 = vmul.f32 %v1349, %v372
        %v1351 = vmul.f32 %v1349, %v373
        %v1352 = vmul.f32 %v1349, %v374
        %v1356 = vrot.slane %v1350, 2
        %v1357 = vrot.slane %v1351, 2
        %v1358 = vsel %vm669, %v1356, %v1357
        %v1359 = vrot.slane %v1352, 2
        %v1360 = vsel %vm669, %v1357, %v1359
        %1361 = vrot.lane.b32.xlu0 %v1358, 122
        %v1362 = vpop.permute.xlu0 %1361
        %1363 = vrot.lane.b32.xlu0 %v1360, 122
        %v1364 = vpop.permute.xlu0 %1363
        %1365 = vrot.lane.b32.xlu0 %v1359, 122
        %v1366 = vpop.permute.xlu0 %1365
        %v1370 = vadd.f32 %v1274, %v1362
        %v1371 = vadd.f32 %v1275, %v1364
        %v1372 = vadd.f32 %v1276, %v1366
        %s1373 = sld [smem:[#allocation8 + $0x29]]
        %v1374 = vstv %s1373
        %v1375 = vmul.f32 %v1374, %v372
        %v1376 = vmul.f32 %v1374, %v373
        %v1377 = vmul.f32 %v1374, %v374
        %v1381 = vrot.slane %v1375, 2
        %v1382 = vrot.slane %v1376, 2
        %v1383 = vsel %vm669, %v1381, %v1382
        %v1384 = vrot.slane %v1377, 2
        %v1385 = vsel %vm669, %v1382, %v1384
        %1386 = vrot.lane.b32.xlu0 %v1383, 122
        %v1387 = vpop.permute.xlu0 %1386
        %1388 = vrot.lane.b32.xlu0 %v1385, 122
        %v1389 = vpop.permute.xlu0 %1388
        %1390 = vrot.lane.b32.xlu0 %v1384, 122
        %v1391 = vpop.permute.xlu0 %1390
        %v1395 = vadd.f32 %v1299, %v1387
        %v1396 = vadd.f32 %v1300, %v1389
        %v1397 = vadd.f32 %v1301, %v1391
        %s1398 = sld [smem:[#allocation8 + $0x30]]
        %v1399 = vstv %s1398
        %v1400 = vmul.f32 %v1399, %v372
        %v1401 = vmul.f32 %v1399, %v373
        %v1402 = vmul.f32 %v1399, %v374
        %v1406 = vrot.slane %v1400, 6
        %v1407 = vrot.slane %v1401, 6
        %v1408 = vsel %vm620, %v1406, %v1407
        %v1409 = vrot.slane %v1402, 6
        %v1410 = vsel %vm620, %v1407, %v1409
        %1411 = vrot.lane.b32.xlu0 %v1408, 122
        %v1412 = vpop.permute.xlu0 %1411
        %1413 = vrot.lane.b32.xlu0 %v1410, 122
        %v1414 = vpop.permute.xlu0 %1413
        %v1417 = vadd.f32 %v1321, %v1412
        %v1418 = vadd.f32 %v1322, %v1414
        %v1419 = vld [vmem:[%s226] sm:$0xff]
        %v1420 = vld [vmem:[%s226 + $0x8] sm:$0xff]
        %v1421 = vld [vmem:[%s226 + $0x10] sm:$0x3f]
        %s1422 = sld [smem:[#allocation8 + $0x31]]
        %v1423 = vstv %s1422
        %v1424 = vmul.f32 %v1423, %v1419
        %v1425 = vmul.f32 %v1423, %v1420
        %v1428 = vrot.slane %v1424, 7
        %v1429 = vrot.slane %v1425, 7
        %v1430 = vsel %vm785, %v1428, %v1429
        %v1434 = vadd.f32 %v1345, %v1428
        %v1435 = vadd.f32 %v1346, %v1430
        %v1436 = vadd.f32 %v1347, %v1429
        %s1437 = sld [smem:[#allocation8 + $0x38]]
        %v1438 = vstv %s1437
        %v1439 = vmul.f32 %v1438, %v1419
        %v1440 = vmul.f32 %v1438, %v1420
        %v1441 = vmul.f32 %v1438, %v1421
        %v1445 = vrot.slane %v1439, 7
        %v1446 = vrot.slane %v1440, 7
        %v1447 = vsel %vm785, %v1445, %v1446
        %v1448 = vrot.slane %v1441, 7
        %v1449 = vsel %vm785, %v1446, %v1448
        %v1453 = vadd.f32 %v1370, %v1445
        %v1454 = vadd.f32 %v1371, %v1447
        %v1455 = vadd.f32 %v1372, %v1449
        %s1456 = sld [smem:[#allocation8 + $0x3f]]
        %v1457 = vstv %s1456
        %v1458 = vmul.f32 %v1457, %v1419
        %v1459 = vmul.f32 %v1457, %v1420
        %v1460 = vmul.f32 %v1457, %v1421
        %v1464 = vrot.slane %v1458, 7
        %v1465 = vrot.slane %v1459, 7
        %v1466 = vsel %vm785, %v1464, %v1465
        %v1467 = vrot.slane %v1460, 7
        %v1468 = vsel %vm785, %v1465, %v1467
        %v1472 = vadd.f32 %v1395, %v1464
        %v1473 = vadd.f32 %v1396, %v1466
        %v1474 = vadd.f32 %v1397, %v1468
        %s1475 = sld [smem:[#allocation8 + $0x46]]
        %v1476 = vstv %s1475
        %v1477 = vmul.f32 %v1476, %v1419
        %v1478 = vmul.f32 %v1476, %v1420
        %v1479 = vmul.f32 %v1476, %v1421
        %v1483 = vrot.slane %v1477, 3
        %v1484 = vrot.slane %v1478, 3
        %v1485 = vsel %vm859, %v1483, %v1484
        %v1486 = vrot.slane %v1479, 3
        %v1487 = vsel %vm859, %v1484, %v1486
        %v1490 = vadd.f32 %v1417, %v1485
        %v1491 = vadd.f32 %v1418, %v1487
        %s1492 = sld [smem:[#allocation8 + $0x4d]]
        %v1493 = vstv %s1492
        %v1494 = vmul.f32 %v1493, %v1419
        %v1495 = vmul.f32 %v1493, %v1420
        %v1496 = vmul.f32 %v1493, %v1421
        %v1500 = vrot.slane %v1494, 3
        %v1501 = vrot.slane %v1495, 3
        %v1502 = vsel %vm859, %v1500, %v1501
        %v1503 = vrot.slane %v1496, 3
        %v1504 = vsel %vm859, %v1501, %v1503
        %v1508 = vadd.f32 %v1434, %v1502
        %v1509 = vadd.f32 %v1435, %v1504
        %v1510 = vadd.f32 %v1436, %v1503
        %s1511 = sld [smem:[#allocation8 + $0x54]]
        %v1512 = vstv %s1511
        %v1513 = vmul.f32 %v1512, %v1419
        %v1514 = vmul.f32 %v1512, %v1420
        %v1515 = vmul.f32 %v1512, %v1421
        %v1519 = vrot.slane %v1513, 3
        %v1520 = vrot.slane %v1514, 3
        %v1521 = vsel %vm859, %v1519, %v1520
        %v1522 = vrot.slane %v1515, 3
        %v1523 = vsel %vm859, %v1520, %v1522
        %v1527 = vadd.f32 %v1453, %v1521
        %v1528 = vadd.f32 %v1454, %v1523
        %v1529 = vadd.f32 %v1455, %v1522
        %s1530 = sld [smem:[#allocation8 + $0x5b]]
        %v1531 = vstv %s1530
        %v1532 = vmul.f32 %v1531, %v1419
        %v1533 = vmul.f32 %v1531, %v1420
        %v1534 = vmul.f32 %v1531, %v1421
        %v1538 = vrot.slane %v1532, 3
        %v1539 = vrot.slane %v1533, 3
        %v1540 = vsel %vm859, %v1538, %v1539
        %v1541 = vrot.slane %v1534, 3
        %v1542 = vsel %vm859, %v1539, %v1541
        %v1546 = vadd.f32 %v1472, %v1540
        %v1547 = vadd.f32 %v1473, %v1542
        %v1548 = vadd.f32 %v1474, %v1541
        %s1549 = sld [smem:[#allocation8 + $0x32]]
        %v1550 = vstv %s1549
        %v1551 = vmul.f32 %v1550, %v1419
        %v1552 = vmul.f32 %v1550, %v1420
        %1555 = vrot.lane.b32.xlu0 %v1551, 127
        %v1556 = vpop.permute.xlu0 %1555
        %1557 = vrot.lane.b32.xlu0 %v1552, 127
        %v1558 = vpop.permute.xlu0 %1557
        %v1561 = vadd.f32 %v1490, %v1556
        %v1562 = vadd.f32 %v1491, %v1558
        %s1563 = sld [smem:[#allocation8 + $0x39]]
        %v1564 = vstv %s1563
        %v1565 = vmul.f32 %v1564, %v1419
        %v1566 = vmul.f32 %v1564, %v1420
        %v1567 = vmul.f32 %v1564, %v1421
        %1571 = vrot.lane.b32.xlu0 %v1565, 127
        %v1572 = vpop.permute.xlu0 %1571
        %1573 = vrot.lane.b32.xlu0 %v1566, 127
        %v1574 = vpop.permute.xlu0 %1573
        %1575 = vrot.lane.b32.xlu0 %v1567, 127
        %v1576 = vpop.permute.xlu0 %1575
        %v1580 = vadd.f32 %v1508, %v1572
        %v1581 = vadd.f32 %v1509, %v1574
        %v1582 = vadd.f32 %v1510, %v1576
        %s1583 = sld [smem:[#allocation8 + $0x40]]
        %v1584 = vstv %s1583
        %v1585 = vmul.f32 %v1584, %v1419
        %v1586 = vmul.f32 %v1584, %v1420
        %v1587 = vmul.f32 %v1584, %v1421
        %1591 = vrot.lane.b32.xlu0 %v1585, 127
        %v1592 = vpop.permute.xlu0 %1591
        %1593 = vrot.lane.b32.xlu0 %v1586, 127
        %v1594 = vpop.permute.xlu0 %1593
        %1595 = vrot.lane.b32.xlu0 %v1587, 127
        %v1596 = vpop.permute.xlu0 %1595
        %v1600 = vadd.f32 %v1527, %v1592
        %v1601 = vadd.f32 %v1528, %v1594
        %v1602 = vadd.f32 %v1529, %v1596
        %s1603 = sld [smem:[#allocation8 + $0x47]]
        %v1604 = vstv %s1603
        %v1605 = vmul.f32 %v1604, %v1419
        %v1606 = vmul.f32 %v1604, %v1420
        %v1607 = vmul.f32 %v1604, %v1421
        %1611 = vrot.lane.b32.xlu0 %v1605, 127
        %v1612 = vpop.permute.xlu0 %1611
        %1613 = vrot.lane.b32.xlu0 %v1606, 127
        %v1614 = vpop.permute.xlu0 %1613
        %1615 = vrot.lane.b32.xlu0 %v1607, 127
        %v1616 = vpop.permute.xlu0 %1615
        %v1620 = vadd.f32 %v1546, %v1612
        %v1621 = vadd.f32 %v1547, %v1614
        %v1622 = vadd.f32 %v1548, %v1616
        %s1623 = sld [smem:[#allocation8 + $0x4e]]
        %v1624 = vstv %s1623
        %v1625 = vmul.f32 %v1624, %v1419
        %v1626 = vmul.f32 %v1624, %v1420
        %v1627 = vmul.f32 %v1624, %v1421
        %v1631 = vrot.slane %v1625, 4
        %v1632 = vrot.slane %v1626, 4
        %v1633 = vsel %vm178, %v1631, %v1632
        %v1634 = vrot.slane %v1627, 4
        %v1635 = vsel %vm178, %v1632, %v1634
        %1636 = vrot.lane.b32.xlu0 %v1633, 127
        %v1637 = vpop.permute.xlu0 %1636
        %1638 = vrot.lane.b32.xlu0 %v1635, 127
        %v1639 = vpop.permute.xlu0 %1638
        %v1642 = vadd.f32 %v1561, %v1637
        %v1643 = vadd.f32 %v1562, %v1639
        %s1644 = sld [smem:[#allocation8 + $0x55]]
        %v1645 = vstv %s1644
        %v1646 = vmul.f32 %v1645, %v1419
        %v1647 = vmul.f32 %v1645, %v1420
        %v1648 = vmul.f32 %v1645, %v1421
        %v1652 = vrot.slane %v1646, 4
        %v1653 = vrot.slane %v1647, 4
        %v1654 = vsel %vm178, %v1652, %v1653
        %v1655 = vrot.slane %v1648, 4
        %v1656 = vsel %vm178, %v1653, %v1655
        %1657 = vrot.lane.b32.xlu0 %v1654, 127
        %v1658 = vpop.permute.xlu0 %1657
        %1659 = vrot.lane.b32.xlu0 %v1656, 127
        %v1660 = vpop.permute.xlu0 %1659
        %1661 = vrot.lane.b32.xlu0 %v1655, 127
        %v1662 = vpop.permute.xlu0 %1661
        %v1666 = vadd.f32 %v1580, %v1658
        %v1667 = vadd.f32 %v1581, %v1660
        %v1668 = vadd.f32 %v1582, %v1662
        %s1669 = sld [smem:[#allocation8 + $0x5c]]
        %v1670 = vstv %s1669
        %v1671 = vmul.f32 %v1670, %v1419
        %v1672 = vmul.f32 %v1670, %v1420
        %v1673 = vmul.f32 %v1670, %v1421
        %v1677 = vrot.slane %v1671, 4
        %v1678 = vrot.slane %v1672, 4
        %v1679 = vsel %vm178, %v1677, %v1678
        %v1680 = vrot.slane %v1673, 4
        %v1681 = vsel %vm178, %v1678, %v1680
        %1682 = vrot.lane.b32.xlu0 %v1679, 127
        %v1683 = vpop.permute.xlu0 %1682
        %1684 = vrot.lane.b32.xlu0 %v1681, 127
        %v1685 = vpop.permute.xlu0 %1684
        %1686 = vrot.lane.b32.xlu0 %v1680, 127
        %v1687 = vpop.permute.xlu0 %1686
        %v1691 = vadd.f32 %v1600, %v1683
        %v1692 = vadd.f32 %v1601, %v1685
        %v1693 = vadd.f32 %v1602, %v1687
        %s1694 = sld [smem:[#allocation8 + $0x33]]
        %v1695 = vstv %s1694
        %v1696 = vmul.f32 %v1695, %v1419
        %v1697 = vmul.f32 %v1695, %v1420
        %v1700 = vrot.slane %v1696, 5
        %v1701 = vrot.slane %v1697, 5
        %v1702 = vsel %vm455, %v1700, %v1701
        %1703 = vrot.lane.b32.xlu0 %v1700, 126
        %v1704 = vpop.permute.xlu0 %1703
        %1705 = vrot.lane.b32.xlu0 %v1702, 126
        %v1706 = vpop.permute.xlu0 %1705
        %1707 = vrot.lane.b32.xlu0 %v1701, 126
        %v1708 = vpop.permute.xlu0 %1707
        %v1712 = vadd.f32 %v1620, %v1704
        %v1713 = vadd.f32 %v1621, %v1706
        %v1714 = vadd.f32 %v1622, %v1708
        %s1715 = sld [smem:[#allocation8 + $0x3a]]
        %v1716 = vstv %s1715
        %v1717 = vmul.f32 %v1716, %v1419
        %v1718 = vmul.f32 %v1716, %v1420
        %v1719 = vmul.f32 %v1716, %v1421
        %v1723 = vrot.slane %v1717, 1
        %v1724 = vrot.slane %v1718, 1
        %v1725 = vsel %vm479, %v1723, %v1724
        %v1726 = vrot.slane %v1719, 1
        %v1727 = vsel %vm479, %v1724, %v1726
        %1728 = vrot.lane.b32.xlu0 %v1725, 126
        %v1729 = vpop.permute.xlu0 %1728
        %1730 = vrot.lane.b32.xlu0 %v1727, 126
        %v1731 = vpop.permute.xlu0 %1730
        %v1734 = vadd.f32 %v1642, %v1729
        %v1735 = vadd.f32 %v1643, %v1731
        %s1736 = sld [smem:[#allocation8 + $0x41]]
        %v1737 = vstv %s1736
        %v1738 = vmul.f32 %v1737, %v1419
        %v1739 = vmul.f32 %v1737, %v1420
        %v1740 = vmul.f32 %v1737, %v1421
        %v1744 = vrot.slane %v1738, 1
        %v1745 = vrot.slane %v1739, 1
        %v1746 = vsel %vm479, %v1744, %v1745
        %v1747 = vrot.slane %v1740, 1
        %v1748 = vsel %vm479, %v1745, %v1747
        %1749 = vrot.lane.b32.xlu0 %v1746, 126
        %v1750 = vpop.permute.xlu0 %1749
        %1751 = vrot.lane.b32.xlu0 %v1748, 126
        %v1752 = vpop.permute.xlu0 %1751
        %1753 = vrot.lane.b32.xlu0 %v1747, 126
        %v1754 = vpop.permute.xlu0 %1753
        %v1758 = vadd.f32 %v1666, %v1750
        %v1759 = vadd.f32 %v1667, %v1752
        %v1760 = vadd.f32 %v1668, %v1754
        %s1761 = sld [smem:[#allocation8 + $0x48]]
        %v1762 = vstv %s1761
        %v1763 = vmul.f32 %v1762, %v1419
        %v1764 = vmul.f32 %v1762, %v1420
        %v1765 = vmul.f32 %v1762, %v1421
        %v1769 = vrot.slane %v1763, 1
        %v1770 = vrot.slane %v1764, 1
        %v1771 = vsel %vm479, %v1769, %v1770
        %v1772 = vrot.slane %v1765, 1
        %v1773 = vsel %vm479, %v1770, %v1772
        %1774 = vrot.lane.b32.xlu0 %v1771, 126
        %v1775 = vpop.permute.xlu0 %1774
        %1776 = vrot.lane.b32.xlu0 %v1773, 126
        %v1777 = vpop.permute.xlu0 %1776
        %1778 = vrot.lane.b32.xlu0 %v1772, 126
        %v1779 = vpop.permute.xlu0 %1778
        %v1783 = vadd.f32 %v1691, %v1775
        %v1784 = vadd.f32 %v1692, %v1777
        %v1785 = vadd.f32 %v1693, %v1779
        %s1786 = sld [smem:[#allocation8 + $0x4f]]
        %v1787 = vstv %s1786
        %v1788 = vmul.f32 %v1787, %v1419
        %v1789 = vmul.f32 %v1787, %v1420
        %v1790 = vmul.f32 %v1787, %v1421
        %v1794 = vrot.slane %v1788, 1
        %v1795 = vrot.slane %v1789, 1
        %v1796 = vsel %vm479, %v1794, %v1795
        %v1797 = vrot.slane %v1790, 1
        %v1798 = vsel %vm479, %v1795, %v1797
        %1799 = vrot.lane.b32.xlu0 %v1796, 126
        %v1800 = vpop.permute.xlu0 %1799
        %1801 = vrot.lane.b32.xlu0 %v1798, 126
        %v1802 = vpop.permute.xlu0 %1801
        %1803 = vrot.lane.b32.xlu0 %v1797, 126
        %v1804 = vpop.permute.xlu0 %1803
        %v1808 = vadd.f32 %v1712, %v1800
        %v1809 = vadd.f32 %v1713, %v1802
        %v1810 = vadd.f32 %v1714, %v1804
        %s1811 = sld [smem:[#allocation8 + $0x56]]
        %v1812 = vstv %s1811
        %v1813 = vmul.f32 %v1812, %v1419
        %v1814 = vmul.f32 %v1812, %v1420
        %v1815 = vmul.f32 %v1812, %v1421
        %v1819 = vrot.slane %v1813, 5
        %v1820 = vrot.slane %v1814, 5
        %v1821 = vsel %vm455, %v1819, %v1820
        %v1822 = vrot.slane %v1815, 5
        %v1823 = vsel %vm455, %v1820, %v1822
        %1824 = vrot.lane.b32.xlu0 %v1821, 126
        %v1825 = vpop.permute.xlu0 %1824
        %1826 = vrot.lane.b32.xlu0 %v1823, 126
        %v1827 = vpop.permute.xlu0 %1826
        %v1830 = vadd.f32 %v1734, %v1825
        %v1831 = vadd.f32 %v1735, %v1827
        %s1832 = sld [smem:[#allocation8 + $0x5d]]
        %v1833 = vstv %s1832
        %v1834 = vmul.f32 %v1833, %v1419
        %v1835 = vmul.f32 %v1833, %v1420
        %v1836 = vmul.f32 %v1833, %v1421
        %v1840 = vrot.slane %v1834, 5
        %v1841 = vrot.slane %v1835, 5
        %v1842 = vsel %vm455, %v1840, %v1841
        %v1843 = vrot.slane %v1836, 5
        %v1844 = vsel %vm455, %v1841, %v1843
        %1845 = vrot.lane.b32.xlu0 %v1842, 126
        %v1846 = vpop.permute.xlu0 %1845
        %1847 = vrot.lane.b32.xlu0 %v1844, 126
        %v1848 = vpop.permute.xlu0 %1847
        %1849 = vrot.lane.b32.xlu0 %v1843, 126
        %v1850 = vpop.permute.xlu0 %1849
        %v1854 = vadd.f32 %v1758, %v1846
        %v1855 = vadd.f32 %v1759, %v1848
        %v1856 = vadd.f32 %v1760, %v1850
        %s1857 = sld [smem:[#allocation8 + $0x34]]
        %v1858 = vstv %s1857
        %v1859 = vmul.f32 %v1858, %v1419
        %v1860 = vmul.f32 %v1858, %v1420
        %v1863 = vrot.slane %v1859, 6
        %v1864 = vrot.slane %v1860, 6
        %v1865 = vsel %vm620, %v1863, %v1864
        %1866 = vrot.lane.b32.xlu0 %v1863, 125
        %v1867 = vpop.permute.xlu0 %1866
        %1868 = vrot.lane.b32.xlu0 %v1865, 125
        %v1869 = vpop.permute.xlu0 %1868
        %1870 = vrot.lane.b32.xlu0 %v1864, 125
        %v1871 = vpop.permute.xlu0 %1870
        %v1875 = vadd.f32 %v1783, %v1867
        %v1876 = vadd.f32 %v1784, %v1869
        %v1877 = vadd.f32 %v1785, %v1871
        %s1878 = sld [smem:[#allocation8 + $0x3b]]
        %v1879 = vstv %s1878
        %v1880 = vmul.f32 %v1879, %v1419
        %v1881 = vmul.f32 %v1879, %v1420
        %v1882 = vmul.f32 %v1879, %v1421
        %v1886 = vrot.slane %v1880, 6
        %v1887 = vrot.slane %v1881, 6
        %v1888 = vsel %vm620, %v1886, %v1887
        %v1889 = vrot.slane %v1882, 6
        %v1890 = vsel %vm620, %v1887, %v1889
        %1891 = vrot.lane.b32.xlu0 %v1886, 125
        %v1892 = vpop.permute.xlu0 %1891
        %1893 = vrot.lane.b32.xlu0 %v1888, 125
        %v1894 = vpop.permute.xlu0 %1893
        %1895 = vrot.lane.b32.xlu0 %v1890, 125
        %v1896 = vpop.permute.xlu0 %1895
        %v1900 = vadd.f32 %v1808, %v1892
        %v1901 = vadd.f32 %v1809, %v1894
        %v1902 = vadd.f32 %v1810, %v1896
        %s1903 = sld [smem:[#allocation8 + $0x42]]
        %v1904 = vstv %s1903
        %v1905 = vmul.f32 %v1904, %v1419
        %v1906 = vmul.f32 %v1904, %v1420
        %v1907 = vmul.f32 %v1904, %v1421
        %v1911 = vrot.slane %v1905, 2
        %v1912 = vrot.slane %v1906, 2
        %v1913 = vsel %vm669, %v1911, %v1912
        %v1914 = vrot.slane %v1907, 2
        %v1915 = vsel %vm669, %v1912, %v1914
        %1916 = vrot.lane.b32.xlu0 %v1913, 125
        %v1917 = vpop.permute.xlu0 %1916
        %1918 = vrot.lane.b32.xlu0 %v1915, 125
        %v1919 = vpop.permute.xlu0 %1918
        %v1922 = vadd.f32 %v1830, %v1917
        %v1923 = vadd.f32 %v1831, %v1919
        %s1924 = sld [smem:[#allocation8 + $0x49]]
        %v1925 = vstv %s1924
        %v1926 = vmul.f32 %v1925, %v1419
        %v1927 = vmul.f32 %v1925, %v1420
        %v1928 = vmul.f32 %v1925, %v1421
        %v1932 = vrot.slane %v1926, 2
        %v1933 = vrot.slane %v1927, 2
        %v1934 = vsel %vm669, %v1932, %v1933
        %v1935 = vrot.slane %v1928, 2
        %v1936 = vsel %vm669, %v1933, %v1935
        %1937 = vrot.lane.b32.xlu0 %v1934, 125
        %v1938 = vpop.permute.xlu0 %1937
        %1939 = vrot.lane.b32.xlu0 %v1936, 125
        %v1940 = vpop.permute.xlu0 %1939
        %1941 = vrot.lane.b32.xlu0 %v1935, 125
        %v1942 = vpop.permute.xlu0 %1941
        %v1946 = vadd.f32 %v1854, %v1938
        %v1947 = vadd.f32 %v1855, %v1940
        %v1948 = vadd.f32 %v1856, %v1942
        %s1949 = sld [smem:[#allocation8 + $0x50]]
        %v1950 = vstv %s1949
        %v1951 = vmul.f32 %v1950, %v1419
        %v1952 = vmul.f32 %v1950, %v1420
        %v1953 = vmul.f32 %v1950, %v1421
        %v1957 = vrot.slane %v1951, 2
        %v1958 = vrot.slane %v1952, 2
        %v1959 = vsel %vm669, %v1957, %v1958
        %v1960 = vrot.slane %v1953, 2
        %v1961 = vsel %vm669, %v1958, %v1960
        %1962 = vrot.lane.b32.xlu0 %v1959, 125
        %v1963 = vpop.permute.xlu0 %1962
        %1964 = vrot.lane.b32.xlu0 %v1961, 125
        %v1965 = vpop.permute.xlu0 %1964
        %1966 = vrot.lane.b32.xlu0 %v1960, 125
        %v1967 = vpop.permute.xlu0 %1966
        %v1971 = vadd.f32 %v1875, %v1963
        %v1972 = vadd.f32 %v1876, %v1965
        %v1973 = vadd.f32 %v1877, %v1967
        %s1974 = sld [smem:[#allocation8 + $0x57]]
        %v1975 = vstv %s1974
        %v1976 = vmul.f32 %v1975, %v1419
        %v1977 = vmul.f32 %v1975, %v1420
        %v1978 = vmul.f32 %v1975, %v1421
        %v1982 = vrot.slane %v1976, 2
        %v1983 = vrot.slane %v1977, 2
        %v1984 = vsel %vm669, %v1982, %v1983
        %v1985 = vrot.slane %v1978, 2
        %v1986 = vsel %vm669, %v1983, %v1985
        %1987 = vrot.lane.b32.xlu0 %v1984, 125
        %v1988 = vpop.permute.xlu0 %1987
        %1989 = vrot.lane.b32.xlu0 %v1986, 125
        %v1990 = vpop.permute.xlu0 %1989
        %1991 = vrot.lane.b32.xlu0 %v1985, 125
        %v1992 = vpop.permute.xlu0 %1991
        %v1996 = vadd.f32 %v1900, %v1988
        %v1997 = vadd.f32 %v1901, %v1990
        %v1998 = vadd.f32 %v1902, %v1992
        %s1999 = sld [smem:[#allocation8 + $0x5e]]
        %v2000 = vstv %s1999
        %v2001 = vmul.f32 %v2000, %v1419
        %v2002 = vmul.f32 %v2000, %v1420
        %v2003 = vmul.f32 %v2000, %v1421
        %v2007 = vrot.slane %v2001, 6
        %v2008 = vrot.slane %v2002, 6
        %v2009 = vsel %vm620, %v2007, %v2008
        %v2010 = vrot.slane %v2003, 6
        %v2011 = vsel %vm620, %v2008, %v2010
        %2012 = vrot.lane.b32.xlu0 %v2009, 125
        %v2013 = vpop.permute.xlu0 %2012
        %2014 = vrot.lane.b32.xlu0 %v2011, 125
        %v2015 = vpop.permute.xlu0 %2014
        %v2018 = vadd.f32 %v1922, %v2013
        %v2019 = vadd.f32 %v1923, %v2015
        %s2020 = sld [smem:[#allocation8 + $0x35]]
        %v2021 = vstv %s2020
        %v2022 = vmul.f32 %v2021, %v1419
        %v2023 = vmul.f32 %v2021, %v1420
        %v2026 = vrot.slane %v2022, 7
        %v2027 = vrot.slane %v2023, 7
        %v2028 = vsel %vm785, %v2026, %v2027
        %2029 = vrot.lane.b32.xlu0 %v2026, 124
        %v2030 = vpop.permute.xlu0 %2029
        %2031 = vrot.lane.b32.xlu0 %v2028, 124
        %v2032 = vpop.permute.xlu0 %2031
        %2033 = vrot.lane.b32.xlu0 %v2027, 124
        %v2034 = vpop.permute.xlu0 %2033
        %v2038 = vadd.f32 %v1946, %v2030
        %v2039 = vadd.f32 %v1947, %v2032
        %v2040 = vadd.f32 %v1948, %v2034
        %s2041 = sld [smem:[#allocation8 + $0x3c]]
        %v2042 = vstv %s2041
        %v2043 = vmul.f32 %v2042, %v1419
        %v2044 = vmul.f32 %v2042, %v1420
        %v2045 = vmul.f32 %v2042, %v1421
        %v2049 = vrot.slane %v2043, 7
        %v2050 = vrot.slane %v2044, 7
        %v2051 = vsel %vm785, %v2049, %v2050
        %v2052 = vrot.slane %v2045, 7
        %v2053 = vsel %vm785, %v2050, %v2052
        %2054 = vrot.lane.b32.xlu0 %v2049, 124
        %v2055 = vpop.permute.xlu0 %2054
        %2056 = vrot.lane.b32.xlu0 %v2051, 124
        %v2057 = vpop.permute.xlu0 %2056
        %2058 = vrot.lane.b32.xlu0 %v2053, 124
        %v2059 = vpop.permute.xlu0 %2058
        %v2063 = vadd.f32 %v1971, %v2055
        %v2064 = vadd.f32 %v1972, %v2057
        %v2065 = vadd.f32 %v1973, %v2059
        %s2066 = sld [smem:[#allocation8 + $0x43]]
        %v2067 = vstv %s2066
        %v2068 = vmul.f32 %v2067, %v1419
        %v2069 = vmul.f32 %v2067, %v1420
        %v2070 = vmul.f32 %v2067, %v1421
        %v2074 = vrot.slane %v2068, 7
        %v2075 = vrot.slane %v2069, 7
        %v2076 = vsel %vm785, %v2074, %v2075
        %v2077 = vrot.slane %v2070, 7
        %v2078 = vsel %vm785, %v2075, %v2077
        %2079 = vrot.lane.b32.xlu0 %v2074, 124
        %v2080 = vpop.permute.xlu0 %2079
        %2081 = vrot.lane.b32.xlu0 %v2076, 124
        %v2082 = vpop.permute.xlu0 %2081
        %2083 = vrot.lane.b32.xlu0 %v2078, 124
        %v2084 = vpop.permute.xlu0 %2083
        %v2088 = vadd.f32 %v1996, %v2080
        %v2089 = vadd.f32 %v1997, %v2082
        %v2090 = vadd.f32 %v1998, %v2084
        %s2091 = sld [smem:[#allocation8 + $0x4a]]
        %v2092 = vstv %s2091
        %v2093 = vmul.f32 %v2092, %v1419
        %v2094 = vmul.f32 %v2092, %v1420
        %v2095 = vmul.f32 %v2092, %v1421
        %v2099 = vrot.slane %v2093, 3
        %v2100 = vrot.slane %v2094, 3
        %v2101 = vsel %vm859, %v2099, %v2100
        %v2102 = vrot.slane %v2095, 3
        %v2103 = vsel %vm859, %v2100, %v2102
        %2104 = vrot.lane.b32.xlu0 %v2101, 124
        %v2105 = vpop.permute.xlu0 %2104
        %2106 = vrot.lane.b32.xlu0 %v2103, 124
        %v2107 = vpop.permute.xlu0 %2106
        %v2110 = vadd.f32 %v2018, %v2105
        %v2111 = vadd.f32 %v2019, %v2107
        %s2112 = sld [smem:[#allocation8 + $0x51]]
        %v2113 = vstv %s2112
        %v2114 = vmul.f32 %v2113, %v1419
        %v2115 = vmul.f32 %v2113, %v1420
        %v2116 = vmul.f32 %v2113, %v1421
        %v2120 = vrot.slane %v2114, 3
        %v2121 = vrot.slane %v2115, 3
        %v2122 = vsel %vm859, %v2120, %v2121
        %v2123 = vrot.slane %v2116, 3
        %v2124 = vsel %vm859, %v2121, %v2123
        %2125 = vrot.lane.b32.xlu0 %v2122, 124
        %v2126 = vpop.permute.xlu0 %2125
        %2127 = vrot.lane.b32.xlu0 %v2124, 124
        %v2128 = vpop.permute.xlu0 %2127
        %2129 = vrot.lane.b32.xlu0 %v2123, 124
        %v2130 = vpop.permute.xlu0 %2129
        %v2134 = vadd.f32 %v2038, %v2126
        %v2135 = vadd.f32 %v2039, %v2128
        %v2136 = vadd.f32 %v2040, %v2130
        %s2137 = sld [smem:[#allocation8 + $0x58]]
        %v2138 = vstv %s2137
        %v2139 = vmul.f32 %v2138, %v1419
        %v2140 = vmul.f32 %v2138, %v1420
        %v2141 = vmul.f32 %v2138, %v1421
        %v2145 = vrot.slane %v2139, 3
        %v2146 = vrot.slane %v2140, 3
        %v2147 = vsel %vm859, %v2145, %v2146
        %v2148 = vrot.slane %v2141, 3
        %v2149 = vsel %vm859, %v2146, %v2148
        %2150 = vrot.lane.b32.xlu0 %v2147, 124
        %v2151 = vpop.permute.xlu0 %2150
        %2152 = vrot.lane.b32.xlu0 %v2149, 124
        %v2153 = vpop.permute.xlu0 %2152
        %2154 = vrot.lane.b32.xlu0 %v2148, 124
        %v2155 = vpop.permute.xlu0 %2154
        %v2159 = vadd.f32 %v2063, %v2151
        %v2160 = vadd.f32 %v2064, %v2153
        %v2161 = vadd.f32 %v2065, %v2155
        %s2162 = sld [smem:[#allocation8 + $0x5f]]
        %v2163 = vstv %s2162
        %v2164 = vmul.f32 %v2163, %v1419
        %v2165 = vmul.f32 %v2163, %v1420
        %v2166 = vmul.f32 %v2163, %v1421
        %v2170 = vrot.slane %v2164, 3
        %v2171 = vrot.slane %v2165, 3
        %v2172 = vsel %vm859, %v2170, %v2171
        %v2173 = vrot.slane %v2166, 3
        %v2174 = vsel %vm859, %v2171, %v2173
        %2175 = vrot.lane.b32.xlu0 %v2172, 124
        %v2176 = vpop.permute.xlu0 %2175
        %2177 = vrot.lane.b32.xlu0 %v2174, 124
        %v2178 = vpop.permute.xlu0 %2177
        %2179 = vrot.lane.b32.xlu0 %v2173, 124
        %v2180 = vpop.permute.xlu0 %2179
        %v2184 = vadd.f32 %v2088, %v2176
        %v2185 = vadd.f32 %v2089, %v2178
        %v2186 = vadd.f32 %v2090, %v2180
        %s2187 = sld [smem:[#allocation8 + $0x36]]
        %v2188 = vstv %s2187
        %v2189 = vmul.f32 %v2188, %v1419
        %v2190 = vmul.f32 %v2188, %v1420
        %2193 = vrot.lane.b32.xlu0 %v2189, 123
        %v2194 = vpop.permute.xlu0 %2193
        %2195 = vrot.lane.b32.xlu0 %v2190, 123
        %v2196 = vpop.permute.xlu0 %2195
        %v2199 = vadd.f32 %v2110, %v2194
        %v2200 = vadd.f32 %v2111, %v2196
        %s2201 = sld [smem:[#allocation8 + $0x3d]]
        %v2202 = vstv %s2201
        %v2203 = vmul.f32 %v2202, %v1419
        %v2204 = vmul.f32 %v2202, %v1420
        %v2205 = vmul.f32 %v2202, %v1421
        %2209 = vrot.lane.b32.xlu0 %v2203, 123
        %v2210 = vpop.permute.xlu0 %2209
        %2211 = vrot.lane.b32.xlu0 %v2204, 123
        %v2212 = vpop.permute.xlu0 %2211
        %2213 = vrot.lane.b32.xlu0 %v2205, 123
        %v2214 = vpop.permute.xlu0 %2213
        %v2218 = vadd.f32 %v2134, %v2210
        %v2219 = vadd.f32 %v2135, %v2212
        %v2220 = vadd.f32 %v2136, %v2214
        %s2221 = sld [smem:[#allocation8 + $0x44]]
        %v2222 = vstv %s2221
        %v2223 = vmul.f32 %v2222, %v1419
        %v2224 = vmul.f32 %v2222, %v1420
        %v2225 = vmul.f32 %v2222, %v1421
        %2229 = vrot.lane.b32.xlu0 %v2223, 123
        %v2230 = vpop.permute.xlu0 %2229
        %2231 = vrot.lane.b32.xlu0 %v2224, 123
        %v2232 = vpop.permute.xlu0 %2231
        %2233 = vrot.lane.b32.xlu0 %v2225, 123
        %v2234 = vpop.permute.xlu0 %2233
        %v2238 = vadd.f32 %v2159, %v2230
        %v2239 = vadd.f32 %v2160, %v2232
        %v2240 = vadd.f32 %v2161, %v2234
        %s2241 = sld [smem:[#allocation8 + $0x4b]]
        %v2242 = vstv %s2241
        %v2243 = vmul.f32 %v2242, %v1419
        %v2244 = vmul.f32 %v2242, %v1420
        %v2245 = vmul.f32 %v2242, %v1421
        %2249 = vrot.lane.b32.xlu0 %v2243, 123
        %v2250 = vpop.permute.xlu0 %2249
        %2251 = vrot.lane.b32.xlu0 %v2244, 123
        %v2252 = vpop.permute.xlu0 %2251
        %2253 = vrot.lane.b32.xlu0 %v2245, 123
        %v2254 = vpop.permute.xlu0 %2253
        %v2258 = vadd.f32 %v2184, %v2250
        %v2259 = vadd.f32 %v2185, %v2252
        %v2260 = vadd.f32 %v2186, %v2254
        %s2261 = sld [smem:[#allocation8 + $0x52]]
        %v2262 = vstv %s2261
        %v2263 = vmul.f32 %v2262, %v1419
        %v2264 = vmul.f32 %v2262, %v1420
        %v2265 = vmul.f32 %v2262, %v1421
        %v2269 = vrot.slane %v2263, 4
        %v2270 = vrot.slane %v2264, 4
        %v2271 = vsel %vm178, %v2269, %v2270
        %v2272 = vrot.slane %v2265, 4
        %v2273 = vsel %vm178, %v2270, %v2272
        %2274 = vrot.lane.b32.xlu0 %v2271, 123
        %v2275 = vpop.permute.xlu0 %2274
        %2276 = vrot.lane.b32.xlu0 %v2273, 123
        %v2277 = vpop.permute.xlu0 %2276
        %v2280 = vadd.f32 %v2199, %v2275
        %v2281 = vadd.f32 %v2200, %v2277
        %s2282 = sld [smem:[#allocation8 + $0x59]]
        %v2283 = vstv %s2282
        %v2284 = vmul.f32 %v2283, %v1419
        %v2285 = vmul.f32 %v2283, %v1420
        %v2286 = vmul.f32 %v2283, %v1421
        %v2290 = vrot.slane %v2284, 4
        %v2291 = vrot.slane %v2285, 4
        %v2292 = vsel %vm178, %v2290, %v2291
        %v2293 = vrot.slane %v2286, 4
        %v2294 = vsel %vm178, %v2291, %v2293
        %2295 = vrot.lane.b32.xlu0 %v2292, 123
        %v2296 = vpop.permute.xlu0 %2295
        %2297 = vrot.lane.b32.xlu0 %v2294, 123
        %v2298 = vpop.permute.xlu0 %2297
        %2299 = vrot.lane.b32.xlu0 %v2293, 123
        %v2300 = vpop.permute.xlu0 %2299
        %v2304 = vadd.f32 %v2218, %v2296
        %v2305 = vadd.f32 %v2219, %v2298
        %v2306 = vadd.f32 %v2220, %v2300
        %s2307 = sld [smem:[#allocation8 + $0x60]]
        %v2308 = vstv %s2307
        %v2309 = vmul.f32 %v2308, %v1419
        %v2310 = vmul.f32 %v2308, %v1420
        %v2311 = vmul.f32 %v2308, %v1421
        %v2315 = vrot.slane %v2309, 4
        %v2316 = vrot.slane %v2310, 4
        %v2317 = vsel %vm178, %v2315, %v2316
        %v2318 = vrot.slane %v2311, 4
        %v2319 = vsel %vm178, %v2316, %v2318
        %2320 = vrot.lane.b32.xlu0 %v2317, 123
        %v2321 = vpop.permute.xlu0 %2320
        %2322 = vrot.lane.b32.xlu0 %v2319, 123
        %v2323 = vpop.permute.xlu0 %2322
        %2324 = vrot.lane.b32.xlu0 %v2318, 123
        %v2325 = vpop.permute.xlu0 %2324
        %v2329 = vadd.f32 %v2238, %v2321
        %v2330 = vadd.f32 %v2239, %v2323
        %v2331 = vadd.f32 %v2240, %v2325
        %s2332 = sld [smem:[#allocation8 + $0x37]]
        %v2333 = vstv %s2332
        %v2334 = vmul.f32 %v2333, %v1419
        %v2335 = vmul.f32 %v2333, %v1420
        %v2338 = vrot.slane %v2334, 5
        %v2339 = vrot.slane %v2335, 5
        %v2340 = vsel %vm455, %v2338, %v2339
        %2341 = vrot.lane.b32.xlu0 %v2338, 122
        %v2342 = vpop.permute.xlu0 %2341
        %2343 = vrot.lane.b32.xlu0 %v2340, 122
        %v2344 = vpop.permute.xlu0 %2343
        %2345 = vrot.lane.b32.xlu0 %v2339, 122
        %v2346 = vpop.permute.xlu0 %2345
        %v2350 = vadd.f32 %v2258, %v2342
        %v2351 = vadd.f32 %v2259, %v2344
        %v2352 = vadd.f32 %v2260, %v2346
        %s2353 = sld [smem:[#allocation8 + $0x3e]]
        %v2354 = vstv %s2353
        %v2355 = vmul.f32 %v2354, %v1419
        %v2356 = vmul.f32 %v2354, %v1420
        %v2357 = vmul.f32 %v2354, %v1421
        %v2361 = vrot.slane %v2355, 1
        %v2362 = vrot.slane %v2356, 1
        %v2363 = vsel %vm479, %v2361, %v2362
        %v2364 = vrot.slane %v2357, 1
        %v2365 = vsel %vm479, %v2362, %v2364
        %2366 = vrot.lane.b32.xlu0 %v2363, 122
        %v2367 = vpop.permute.xlu0 %2366
        %2368 = vrot.lane.b32.xlu0 %v2365, 122
        %v2369 = vpop.permute.xlu0 %2368
        %v2372 = vadd.f32 %v2280, %v2367
        %v2373 = vadd.f32 %v2281, %v2369
        %s2374 = sld [smem:[#allocation8 + $0x45]]
        %v2375 = vstv %s2374
        %v2376 = vmul.f32 %v2375, %v1419
        %v2377 = vmul.f32 %v2375, %v1420
        %v2378 = vmul.f32 %v2375, %v1421
        %v2382 = vrot.slane %v2376, 1
        %v2383 = vrot.slane %v2377, 1
        %v2384 = vsel %vm479, %v2382, %v2383
        %v2385 = vrot.slane %v2378, 1
        %v2386 = vsel %vm479, %v2383, %v2385
        %2387 = vrot.lane.b32.xlu0 %v2384, 122
        %v2388 = vpop.permute.xlu0 %2387
        %2389 = vrot.lane.b32.xlu0 %v2386, 122
        %v2390 = vpop.permute.xlu0 %2389
        %2391 = vrot.lane.b32.xlu0 %v2385, 122
        %v2392 = vpop.permute.xlu0 %2391
        %v2396 = vadd.f32 %v2304, %v2388
        %v2397 = vadd.f32 %v2305, %v2390
        %v2398 = vadd.f32 %v2306, %v2392
        %s2399 = sld [smem:[#allocation8 + $0x4c]]
        %v2400 = vstv %s2399
        %v2401 = vmul.f32 %v2400, %v1419
        %v2402 = vmul.f32 %v2400, %v1420
        %v2403 = vmul.f32 %v2400, %v1421
        %v2407 = vrot.slane %v2401, 1
        %v2408 = vrot.slane %v2402, 1
        %v2409 = vsel %vm479, %v2407, %v2408
        %v2410 = vrot.slane %v2403, 1
        %v2411 = vsel %vm479, %v2408, %v2410
        %2412 = vrot.lane.b32.xlu0 %v2409, 122
        %v2413 = vpop.permute.xlu0 %2412
        %2414 = vrot.lane.b32.xlu0 %v2411, 122
        %v2415 = vpop.permute.xlu0 %2414
        %2416 = vrot.lane.b32.xlu0 %v2410, 122
        %v2417 = vpop.permute.xlu0 %2416
        %v2421 = vadd.f32 %v2329, %v2413
        %v2422 = vadd.f32 %v2330, %v2415
        %v2423 = vadd.f32 %v2331, %v2417
        %s2424 = sld [smem:[#allocation8 + $0x53]]
        %v2425 = vstv %s2424
        %v2426 = vmul.f32 %v2425, %v1419
        %v2427 = vmul.f32 %v2425, %v1420
        %v2428 = vmul.f32 %v2425, %v1421
        %v2432 = vrot.slane %v2426, 1
        %v2433 = vrot.slane %v2427, 1
        %v2434 = vsel %vm479, %v2432, %v2433
        %v2435 = vrot.slane %v2428, 1
        %v2436 = vsel %vm479, %v2433, %v2435
        %2437 = vrot.lane.b32.xlu0 %v2434, 122
        %v2438 = vpop.permute.xlu0 %2437
        %2439 = vrot.lane.b32.xlu0 %v2436, 122
        %v2440 = vpop.permute.xlu0 %2439
        %2441 = vrot.lane.b32.xlu0 %v2435, 122
        %v2442 = vpop.permute.xlu0 %2441
        %v2446 = vadd.f32 %v2350, %v2438
        %v2447 = vadd.f32 %v2351, %v2440
        %v2448 = vadd.f32 %v2352, %v2442
        %s2449 = sld [smem:[#allocation8 + $0x5a]]
        %v2450 = vstv %s2449
        %v2451 = vmul.f32 %v2450, %v1419
        %v2452 = vmul.f32 %v2450, %v1420
        %v2453 = vmul.f32 %v2450, %v1421
        %v2457 = vrot.slane %v2451, 5
        %v2458 = vrot.slane %v2452, 5
        %v2459 = vsel %vm455, %v2457, %v2458
        %v2460 = vrot.slane %v2453, 5
        %v2461 = vsel %vm455, %v2458, %v2460
        %2462 = vrot.lane.b32.xlu0 %v2459, 122
        %v2463 = vpop.permute.xlu0 %2462
        %2464 = vrot.lane.b32.xlu0 %v2461, 122
        %v2465 = vpop.permute.xlu0 %2464
        %v2468 = vadd.f32 %v2372, %v2463
        %v2469 = vadd.f32 %v2373, %v2465
        %s2470 = sld [smem:[#allocation8 + $0x61]]
        %v2471 = vstv %s2470
        %v2472 = vmul.f32 %v2471, %v1419
        %v2473 = vmul.f32 %v2471, %v1420
        %v2474 = vmul.f32 %v2471, %v1421
        %v2478 = vrot.slane %v2472, 5
        %v2479 = vrot.slane %v2473, 5
        %v2480 = vsel %vm455, %v2478, %v2479
        %v2481 = vrot.slane %v2474, 5
        %v2482 = vsel %vm455, %v2479, %v2481
        %2483 = vrot.lane.b32.xlu0 %v2480, 122
        %v2484 = vpop.permute.xlu0 %2483
        %2485 = vrot.lane.b32.xlu0 %v2482, 122
        %v2486 = vpop.permute.xlu0 %2485
        %2487 = vrot.lane.b32.xlu0 %v2481, 122
        %v2488 = vpop.permute.xlu0 %2487
        %v2492 = vadd.f32 %v2396, %v2484
        %v2493 = vadd.f32 %v2397, %v2486
        %v2494 = vadd.f32 %v2398, %v2488
        %v2498 = vrot.slane %v2492, 1
        %v2499 = vrot.slane %v2493, 1
        %v2500 = vsel %vm479, %v2498, %v2499
        %v2501 = vrot.slane %v2494, 1
        %v2502 = vsel %vm479, %v2499, %v2501
        %v2505 = vadd.f32 %v2468, %v2500
        %v2506 = vadd.f32 %v2469, %v2502
        %v2510 = vrot.slane %v2446, 1
        %v2511 = vrot.slane %v2447, 1
        %v2512 = vsel %vm479, %v2510, %v2511
        %v2513 = vrot.slane %v2448, 1
        %v2514 = vsel %vm479, %v2511, %v2513
        %v2518 = vadd.f32 %v2421, %v2512
        %v2519 = vadd.f32 %v2422, %v2514
        %v2520 = vadd.f32 %v2423, %v2513
        %v2524 = vrot.slane %v2518, 2
        %v2525 = vrot.slane %v2519, 2
        %v2526 = vsel %vm669, %v2524, %v2525
        %v2527 = vrot.slane %v2520, 2
        %v2528 = vsel %vm669, %v2525, %v2527
        %v2531 = vadd.f32 %v2505, %v2526
        %v2532 = vadd.f32 %v2506, %v2528
        %v2533 = vxor.u32 %v2531, 2147483648
        %v2534 = vxor.u32 %v2532, 2147483648
        %v2535 = vmul.f32 %v2533, 1.442695
        %v2536 = vpow.pop %v2535
        %v2537 = vmul.f32 %v2534, 1.442695
        %v2538 = vpow.pop %v2537
        %v2539 = vadd.f32 %v2536, 1.0
        %v2540 = vadd.f32 %v2538, 1.0
        %v2541 = vrcp.pop %v2539
        %v2542 = vmul.f32 1.0, %v2541
        %v2543 = vrcp.pop %v2540
        %v2544 = vmul.f32 1.0, %v2543
        %v2545 = vlaneseq
        %vm2546 = vcmp.ge.s32.totalorder %v2545, 0
        %vm2547 = vcmp.lt.s32.totalorder %v2545, 16
        %vm2548 = vmand %vm2546, %vm2547
        %2549 = vst.msk [vmem:[#allocation3] sm:$0x1] %vm2548, %v2542
        %v2552 = vunpack.c.l.s4 1966171168
        %v2553 = vunpack.c.0.s8 %v2552
        %v2554 = vlaneseq
        %v2555 = vshrl.u32 %v2554, 7
        %v2556 = vsub.s32 %v2553, %v2555
        %v2557 = vrot.slane %v2542, %v2556
        %v2558 = vcombine.high %v2557, %v2557
        %v2560 = vunpack.c.l.s4 1966171168
        %v2561 = vunpack.c.0.s8 %v2560
        %v2562 = vlaneseq
        %v2563 = vshrl.u32 %v2562, 7
        %v2564 = vsub.s32 %v2561, %v2563
        %v2565 = vrot.slane %v2557, %v2564
        %v2567 = vunpack.c.l.s4 1966171168
        %v2568 = vunpack.c.0.s8 %v2567
        %v2569 = vlaneseq
        %v2570 = vshrl.u32 %v2569, 7
        %v2571 = vsub.s32 %v2568, %v2570
        %v2572 = vrot.slane %v2558, %v2571
        %2573 = vrot.lane.b32.xlu0 %v2572, 16
        %v2574 = vpop.permute.xlu0 %2573
        %vm2576 = vcmp.ge.s32.totalorder %v2545, 16
        %vm2577 = vcmp.lt.s32.totalorder %v2545, 32
        %vm2578 = vmand %vm2576, %vm2577
        %2579 = vst.msk [vmem:[#allocation3] sm:$0x1] %vm2578, %v2574
        %v2580 = vcombine.high %v2565, %v2565
        %2581 = vrot.lane.b32.xlu0 %v2580, 32
        %v2582 = vpop.permute.xlu0 %2581
        %vm2584 = vcmp.ge.s32.totalorder %v2545, 32
        %vm2585 = vcmp.lt.s32.totalorder %v2545, 48
        %vm2586 = vmand %vm2584, %vm2585
        %2587 = vst.msk [vmem:[#allocation3] sm:$0x1] %vm2586, %v2582
        %v2588 = vcombine.high %v2572, %v2572
        %2589 = vrot.lane.b32.xlu0 %v2588, 48
        %v2590 = vpop.permute.xlu0 %2589
        %vm2592 = vcmp.ge.s32.totalorder %v2545, 48
        %vm2593 = vcmp.lt.s32.totalorder %v2545, 64
        %vm2594 = vmand %vm2592, %vm2593
        %2595 = vst.msk [vmem:[#allocation3] sm:$0x1] %vm2594, %v2590
        %v2596 = vcombine.high %v2542, %v2542
        %v2598 = vunpack.c.l.s4 1966171168
        %v2599 = vunpack.c.0.s8 %v2598
        %v2600 = vlaneseq
        %v2601 = vshrl.u32 %v2600, 7
        %v2602 = vsub.s32 %v2599, %v2601
        %v2603 = vrot.slane %v2596, %v2602
        %v2605 = vunpack.c.l.s4 1966171168
        %v2606 = vunpack.c.0.s8 %v2605
        %v2607 = vlaneseq
        %v2608 = vshrl.u32 %v2607, 7
        %v2609 = vsub.s32 %v2606, %v2608
        %v2610 = vrot.slane %v2603, %v2609
        %2611 = vrot.lane.b32.xlu0 %v2610, 64
        %v2612 = vpop.permute.xlu0 %2611
        %vm2614 = vcmp.ge.s32.totalorder %v2545, 64
        %vm2615 = vcmp.lt.s32.totalorder %v2545, 80
        %vm2616 = vmand %vm2614, %vm2615
        %2617 = vst.msk [vmem:[#allocation3] sm:$0x1] %vm2616, %v2612
        %v2618 = vcombine.high %v2603, %v2603
        %v2620 = vunpack.c.l.s4 1966171168
        %v2621 = vunpack.c.0.s8 %v2620
        %v2622 = vlaneseq
        %v2623 = vshrl.u32 %v2622, 7
        %v2624 = vsub.s32 %v2621, %v2623
        %v2625 = vrot.slane %v2618, %v2624
        %2626 = vrot.lane.b32.xlu0 %v2625, 80
        %v2627 = vpop.permute.xlu0 %2626
        %vm2629 = vcmp.ge.s32.totalorder %v2545, 80
        %vm2630 = vcmp.lt.s32.totalorder %v2545, 96
        %vm2631 = vmand %vm2629, %vm2630
        %2632 = vst.msk [vmem:[#allocation3] sm:$0x1] %vm2631, %v2627
        %v2633 = vcombine.high %v2610, %v2610
        %2634 = vrot.lane.b32.xlu0 %v2633, 96
        %v2635 = vpop.permute.xlu0 %2634
        %vm2637 = vcmp.ge.s32.totalorder %v2545, 96
        %vm2638 = vcmp.lt.s32.totalorder %v2545, 112
        %vm2639 = vmand %vm2637, %vm2638
        %2640 = vst.msk [vmem:[#allocation3] sm:$0x1] %vm2639, %v2635
        %v2641 = vcombine.high %v2625, %v2625
        %2642 = vrot.lane.b32.xlu0 %v2641, 112
        %v2643 = vpop.permute.xlu0 %2642
        %vm2645 = vcmp.ge.s32.totalorder %v2545, 112
        %vm2646 = vcmp.lt.s32.totalorder %v2545, 128
        %vm2647 = vmand %vm2645, %vm2646
        %2648 = vst.msk [vmem:[#allocation3] sm:$0x1] %vm2647, %v2643
        %2649 = vst.msk [vmem:[#allocation3 + $0x1] sm:$0x1] %vm2548, %v2544
        %v2652 = vunpack.c.l.s4 1966171168
        %v2653 = vunpack.c.0.s8 %v2652
        %v2654 = vlaneseq
        %v2655 = vshrl.u32 %v2654, 7
        %v2656 = vsub.s32 %v2653, %v2655
        %v2657 = vrot.slane %v2544, %v2656
        %v2658 = vcombine.high %v2657, %v2657
        %v2660 = vunpack.c.l.s4 1966171168
        %v2661 = vunpack.c.0.s8 %v2660
        %v2662 = vlaneseq
        %v2663 = vshrl.u32 %v2662, 7
        %v2664 = vsub.s32 %v2661, %v2663
        %v2665 = vrot.slane %v2657, %v2664
        %v2667 = vunpack.c.l.s4 1966171168
        %v2668 = vunpack.c.0.s8 %v2667
        %v2669 = vlaneseq
        %v2670 = vshrl.u32 %v2669, 7
        %v2671 = vsub.s32 %v2668, %v2670
        %v2672 = vrot.slane %v2658, %v2671
        %2673 = vrot.lane.b32.xlu0 %v2672, 16
        %v2674 = vpop.permute.xlu0 %2673
        %2676 = vst.msk [vmem:[#allocation3 + $0x1] sm:$0x1] %vm2578, %v2674
        %v2677 = vcombine.high %v2665, %v2665
        %2678 = vrot.lane.b32.xlu0 %v2677, 32
        %v2679 = vpop.permute.xlu0 %2678
        %2681 = vst.msk [vmem:[#allocation3 + $0x1] sm:$0x1] %vm2586, %v2679
        %v2682 = vcombine.high %v2672, %v2672
        %2683 = vrot.lane.b32.xlu0 %v2682, 48
        %v2684 = vpop.permute.xlu0 %2683
        %2686 = vst.msk [vmem:[#allocation3 + $0x1] sm:$0x1] %vm2594, %v2684
        %v2687 = vcombine.high %v2544, %v2544
        %v2689 = vunpack.c.l.s4 1966171168
        %v2690 = vunpack.c.0.s8 %v2689
        %v2691 = vlaneseq
        %v2692 = vshrl.u32 %v2691, 7
        %v2693 = vsub.s32 %v2690, %v2692
        %v2694 = vrot.slane %v2687, %v2693
        %v2696 = vunpack.c.l.s4 1966171168
        %v2697 = vunpack.c.0.s8 %v2696
        %v2698 = vlaneseq
        %v2699 = vshrl.u32 %v2698, 7
        %v2700 = vsub.s32 %v2697, %v2699
        %v2701 = vrot.slane %v2694, %v2700
        %2702 = vrot.lane.b32.xlu0 %v2701, 64
        %v2703 = vpop.permute.xlu0 %2702
        %2705 = vst.msk [vmem:[#allocation3 + $0x1] sm:$0x1] %vm2616, %v2703
        %v2706 = vcombine.high %v2694, %v2694
        %v2708 = vunpack.c.l.s4 1966171168
        %v2709 = vunpack.c.0.s8 %v2708
        %v2710 = vlaneseq
        %v2711 = vshrl.u32 %v2710, 7
        %v2712 = vsub.s32 %v2709, %v2711
        %v2713 = vrot.slane %v2706, %v2712
        %2714 = vrot.lane.b32.xlu0 %v2713, 80
        %v2715 = vpop.permute.xlu0 %2714
        %2717 = vst.msk [vmem:[#allocation3 + $0x1] sm:$0x1] %vm2631, %v2715
        %v2718 = vcombine.high %v2701, %v2701
        %2719 = vrot.lane.b32.xlu0 %v2718, 96
        %v2720 = vpop.permute.xlu0 %2719
        %2722 = vst.msk [vmem:[#allocation3 + $0x1] sm:$0x1] %vm2639, %v2720
        %v2723 = vcombine.high %v2713, %v2713
        %2724 = vrot.lane.b32.xlu0 %v2723, 112
        %v2725 = vpop.permute.xlu0 %2724
        %2727 = vst.msk [vmem:[#allocation3 + $0x1] sm:$0x1] %vm2647, %v2725
        %v2728 = vld [vmem:[#allocation3] sm:$0x3]
        %v2729 = vld [vmem:[%s148] sm:$0xff]
        %v2731 = vlaneseq
        %v2732 = vshrl.u32 %v2731, 7
        %v2733 = vsub.s32 0, %v2732
        %v2734 = vrot.slane %v2728, %v2733
        %v2735 = vlaneseq
        %v2736 = vshrl.u32 %v2735, 7
        %v2737 = vsub.s32 1, %v2736
        %v2738 = vrot.slane %v2728, %v2737
        %v2739 = vcombine.low %v2734, %v2738
        %v2741 = vmul.f32 %v2729, %v2739
        %2742 = vst [vmem:[%s173] sm:$0xff] %v2741
        %s2743 = sand.u32 %s75, 1
        %s2744 = scalar_lea.sflag [#allocation6], %s2743
        %s2745 = sand.u32 %s75, 1
        %s2746 = smul.addr %s2745, 8
        %s2747 = scalar_lea.vmem [#allocation9], %s2746
        // Predicated region
        $region37: #{tpu_custom_call.1} parent=27 // pred_check
          %p2748 = pneg %p85
        $region38: #{tpu_custom_call.1} parent=27 // pred_check_branch
          %2750 = sbr.rel (%p2748) target = $region40
        $region39: #{tpu_custom_call.1} parent=27 // pred_region
          %s2752 = ssub.s32 128, 128
          %2753 = vsyncadd %s2744, %s2752
          %s2754 = smul.addr %s20, 2
          %s2755 = smul.addr %s2754, 64
          %s2756 = scalar_lea.hbm %s2, %s2755
          %s2758 = sshll.u32 %s2747, 4
          %s2759 = int_to_ptr.vmem [resolvable:$true] %s2758
          %2761 = dma.vmem_to_hbm [thread:$0]  %s2759, 128, %s2756, %s2744
        $region40: #{tpu_custom_call.1} parent=27 // pred_fallthru
          _
      $region28: #{tpu_custom_call.1} parent=5 // pred_fallthru
        _
      %p2762 = scmp.le.s32.totalorder 2, %s15
      // Predicated region
      $region41: #{tpu_custom_call.1} parent=5 // pred_check
        %p2763 = pneg %p2762
      $region42: #{tpu_custom_call.1} parent=5 // pred_check_branch
        %2765 = sbr.rel (%p2763) target = $region44
      $region43: #{tpu_custom_call.1} parent=5 // pred_region
        %s2766 = ssub.s32 %s15, 2
        // Predicated region
        $region45: #{tpu_custom_call.1} parent=43 // pred_check
          %p2767 = pneg %p91
        $region46: #{tpu_custom_call.1} parent=43 // pred_check_branch
          %2769 = sbr.rel (%p2767) target = $region48
        $region47: #{tpu_custom_call.1} parent=43 // pred_region
          %s2770 = sand.u32 %s76, 1
          %s2771 = scalar_lea.sflag [#allocation6], %s2770
          %s2772 = sand.u32 %s76, 1
          %s2773 = smul.addr %s2772, 8
          %s2774 = scalar_lea.vmem [#allocation9], %s2773
          %2775 = dma.done %s2771, 128
        $region48: #{tpu_custom_call.1} parent=43 // pred_fallthru
          _
      $region44: #{tpu_custom_call.1} parent=5 // pred_fallthru
        _
    $region6: #{tpu_custom_call.1} parent=1 // loop_footer
      %s19 = sadd.s32 1, %s15
    $region7: #{tpu_custom_call.1} parent=1 // loop_footer_branch
      %14 = sbr.rel target = $region3
    $region8: #{tpu_custom_call.1} parent=1 // loop_exit
      _
    %2776 = vsyncpa [#allocation5], 1
    %s2777 = scalar_lea.sflag [#allocation5], 1
    %2778 = vsyncpa %s2777, 1
    %2779 = vsyncpa [#allocation6], 1
    %s2780 = scalar_lea.sflag [#allocation6], 1
    %2781 = vsyncpa %s2780, 1
    %2782 = vsyncpa [#allocation7], 1
    %s2783 = scalar_lea.sflag [#allocation7], 1
    %2784 = vsyncpa %s2783, 1

</llo_original>
